<compile_context>
chip_gen: v5e
topology: v5e:2x2
jax: 0.10.0
libtpu: 0.0.40
codegen_flags: <defaults>
</compile_context>

<pallas_src>
import jax
import jax.numpy as jnp
from jax.experimental import pallas as pl
from jax.experimental.pallas import tpu as pltpu

COMPUTE_DTYPE = jnp.bfloat16      # MXU input dtype (use jnp.float32 for bit-closer parity)
OUT_CHANNELS = 96                 # true output channels of the module


def _round_up(n, m):
    return (n + m - 1) // m * m


def _pick_batch_block(batch, length, target_rows=256):
    """Pick NB batch elements per grid step so NB*L ~ target_rows (MXU M axis),
    while keeping >= 2 grid steps when batch allows (both v7x TCs get work)."""
    nb = max(1, min(batch, target_rows // max(length, 1)))
    if batch >= 2 and -(-batch // nb) < 2:     # would collapse to a 1-step grid
        nb = max(1, -(-batch // 2))            # ceil(batch/2) -> 2 grid steps
    return nb


def _fused_cnn_kernel(x_ref, w1_ref, w2_ref, w3_ref, s1_ref, s2_ref, s3_ref, o_ref):
    """All three Conv1d(k=3,pad=1)+BN(eval)+ReLU layers for NB batch elements.

    x_ref : (NB, L, C0)          channels-last input slab (f32)
    wX_ref: (3, CinX, CoutX)     per-tap weights, BN scale folded in (bf16)
    sX_ref: (1, CoutX)           folded shift = (bias - running_mean)*scale + beta (f32)
    o_ref : (NB, L, C3)          layer-3 output, channels padded to 128 (lane-dense store)
    """
    nb, L, _ = x_ref.shape
    cdt = w1_ref.dtype

    def conv_bn_relu(x2d, w_ref, s_ref):
        cout = w_ref.shape[-1]
        # One MXU matmul per tap on the *aligned* (NB*L, Cin) activation slab.
        z0 = jnp.dot(x2d, w_ref[0], preferred_element_type=jnp.float32)
        z1 = jnp.dot(x2d, w_ref[1], preferred_element_type=jnp.float32) + s_ref[...]
        z2 = jnp.dot(x2d, w_ref[2], preferred_element_type=jnp.float32)
        z0 = z0.reshape(nb, L, cout)
        z1 = z1.reshape(nb, L, cout)
        z2 = z2.reshape(nb, L, cout)
        # pad=1 handled per batch element on the narrow Cout side:
        #   out[l] = z0[l-1] + z1[l] + z2[l+1], with zero rows at the boundaries.
        zero = jnp.zeros((nb, 1, cout), jnp.float32)
        y = (z1
             + jnp.concatenate([zero, z0[:, :L - 1, :]], axis=1)
             + jnp.concatenate([z2[:, 1:, :], zero], axis=1))
        return jnp.maximum(y, 0.0)                       # (NB, L, Cout) f32

    x = x_ref[...].astype(cdt).reshape(nb * L, -1)
    y1 = conv_bn_relu(x, w1_ref, s1_ref)
    y2 = conv_bn_relu(y1.astype(cdt).reshape(nb * L, -1), w2_ref, s2_ref)
    y3 = conv_bn_relu(y2.astype(cdt).reshape(nb * L, -1), w3_ref, s3_ref)
    o_ref[...] = y3.astype(o_ref.dtype)


def prepare_params(params, eps=1e-5, compute_dtype=COMPUTE_DTYPE):
    """Fold eval-mode BatchNorm into the conv weights and lay them out for the kernel.

    params: list of 3 tuples with PyTorch-layout tensors
        (weight (Cout, Cin, 3), bias (Cout,), gamma, beta, running_mean, running_var)
    Returns (weights, shifts): weights[i] (3, Cin_pad, Cout_pad) in `compute_dtype`
    (per-tap slabs), shifts[i] (1, Cout_pad) f32.  Channel dims zero-padded to
    multiples of 128.  Done once, outside the per-call path.
    """
    weights, shifts = [], []
    for (w, b, gamma, beta, mean, var) in params:
        cout, cin, k = w.shape
        scale = gamma / jnp.sqrt(var + eps)                       # (Cout,)
        shift = (b - mean) * scale + beta                         # (Cout,)
        wf = jnp.transpose(w, (2, 1, 0)) * scale[None, None, :]   # (3, Cin, Cout), scale folded
        cin_p, cout_p = _round_up(cin, 128), _round_up(cout, 128)
        wf = jnp.pad(wf, ((0, 0), (0, cin_p - cin), (0, cout_p - cout)))
        weights.append(wf.astype(compute_dtype))                  # (3, Cin_pad, Cout_pad)
        shifts.append(jnp.pad(shift, (0, cout_p - cout))[None, :].astype(jnp.float32))
    return weights, shifts


def cnn_forward(x, weights, shifts, out_channels=OUT_CHANNELS, batch_block=None):
    """x: (B, L, C_in) — the tensor the PyTorch forward receives (pre-transpose).
    Returns (B, out_channels, L), matching the PyTorch module's output layout."""
    B, L, c_in = x.shape
    c0 = _round_up(c_in, 128)
    if c0 != c_in:                                           # not hit for C_in=768
        x = jnp.pad(x, ((0, 0), (0, 0), (0, c0 - c_in)))
    w1, w2, w3 = weights
    s1, s2, s3 = shifts
    c1, c2, c3 = w1.shape[2], w2.shape[2], w3.shape[2]
    assert w1.shape == (3, c0, c1) and w2.shape == (3, c1, c2) and w3.shape == (3, c2, c3)

    nb = batch_block if batch_block is not None else _pick_batch_block(B, L)
    b_pad = _round_up(B, nb)
    if b_pad != B:
        x = jnp.pad(x, ((0, b_pad - B), (0, 0), (0, 0)))
    grid = (b_pad // nb,)

    flops = 2 * b_pad * L * 3 * (c0 * c1 + c1 * c2 + c2 * c3)
    bytes_accessed = (int(x.size) * x.dtype.itemsize
                      + sum(int(w.size) * w.dtype.itemsize for w in weights)
                      + sum(int(s.size) * s.dtype.itemsize for s in shifts)
                      + b_pad * L * c3 * 4)
    cost = pl.CostEstimate(flops=int(flops), transcendentals=0,
                           bytes_accessed=int(bytes_accessed))

    out = pl.pallas_call(
        _fused_cnn_kernel,
        out_shape=jax.ShapeDtypeStruct((b_pad, L, c3), jnp.float32),
        grid_spec=pltpu.PrefetchScalarGridSpec(
            num_scalar_prefetch=0,
            grid=grid,
            in_specs=[
                pl.BlockSpec((nb, L, c0), lambda b: (b, 0, 0)),
                # Weight / shift blocks have constant index maps -> DMA'd once,
                # resident in VMEM across the whole (parallel) batch grid.
                pl.BlockSpec((3, c0, c1), lambda b: (0, 0, 0)),
                pl.BlockSpec((3, c1, c2), lambda b: (0, 0, 0)),
                pl.BlockSpec((3, c2, c3), lambda b: (0, 0, 0)),
                pl.BlockSpec((1, c1), lambda b: (0, 0)),
                pl.BlockSpec((1, c2), lambda b: (0, 0)),
                pl.BlockSpec((1, c3), lambda b: (0, 0)),
            ],
            out_specs=pl.BlockSpec((nb, L, c3), lambda b: (b, 0, 0)),
        ),
        compiler_params=pltpu.CompilerParams(
            dimension_semantics=("parallel",),       # batch-block axis -> 2 TCs on v7x
            vmem_limit_bytes=32 * 1024 * 1024,       # safe on v5e/v6e/v7x; >> footprint
        ),
        cost_estimate=cost,
    )(x, w1, w2, w3, s1, s2, s3)

    # Match the PyTorch layout: drop batch/channel padding, (B, L, C) -> (B, C, L).
    return jnp.transpose(out[:B, :, :out_channels], (0, 2, 1))


def _reference(x, params, eps=1e-5):
    """Pure-JAX f32 mirror of the PyTorch module in eval mode (for self-check)."""
    h = jnp.transpose(x, (0, 2, 1))                          # (B, C, L)
    for (w, b, gamma, beta, mean, var) in params:
        h = jax.lax.conv_general_dilated(
            h, w, window_strides=(1,), padding=((1, 1),),
            dimension_numbers=("NCH", "OIH", "NCH"))
        h = h + b[None, :, None]
        scale = gamma / jnp.sqrt(var + eps)
        h = (h - mean[None, :, None]) * scale[None, :, None] + beta[None, :, None]
        h = jnp.maximum(h, 0.0)
    return h


if __name__ == "__main__":
    key = jax.random.PRNGKey(0)
    B, L, C_IN = 4, 16, 768
    channels = [C_IN, 384, 192, 96]

    keys = jax.random.split(key, 1 + 6 * 3)
    x = jax.random.normal(keys[0], (B, L, C_IN), dtype=jnp.float32)

    # PyTorch-layout parameters: weight (Cout, Cin, 3), bias, gamma, beta, mean, var.
    params = []
    ki = 1
    for i in range(3):
        cin, cout = channels[i], channels[i + 1]
        w = jax.random.normal(keys[ki], (cout, cin, 3), jnp.float32) / jnp.sqrt(3.0 * cin); ki += 1
        b = 0.01 * jax.random.normal(keys[ki], (cout,), jnp.float32); ki += 1
        gamma = 1.0 + 0.1 * jax.random.normal(keys[ki], (cout,), jnp.float32); ki += 1
        beta = 0.1 * jax.random.normal(keys[ki], (cout,), jnp.float32); ki += 1
        mean = 0.1 * jax.random.normal(keys[ki], (cout,), jnp.float32); ki += 1
        var = jnp.abs(jax.random.normal(keys[ki], (cout,), jnp.float32)) + 0.5; ki += 1
        params.append((w, b, gamma, beta, mean, var))

    weights, shifts = prepare_params(params)                 # one-time param prep
    fwd = jax.jit(cnn_forward)
    out = jax.block_until_ready(fwd(x, weights, shifts))

    assert out.shape == (B, 96, L), out.shape
    assert bool(jnp.all(out >= 0.0))                         # ReLU output
    ref = jax.block_until_ready(_reference(x, params))
    max_err = float(jnp.max(jnp.abs(out - ref)))
    assert bool(jnp.allclose(out, ref, rtol=0.1, atol=0.1)), max_err  # bf16 tolerance
    print("KERNEL_OK")
</pallas_src>

<mosaic_0001>
module attributes {stable_mosaic.version = 11 : i64} {
  func.func @_fused_cnn_kernel(%arg0: i32, %arg1: memref<2x16x768xf32, #tpu.memory_space<vmem>>, %arg2: memref<3x768x384xbf16, #tpu.memory_space<vmem>>, %arg3: memref<3x384x256xbf16, #tpu.memory_space<vmem>>, %arg4: memref<3x256x128xbf16, #tpu.memory_space<vmem>>, %arg5: memref<1x384xf32, #tpu.memory_space<vmem>>, %arg6: memref<1x256xf32, #tpu.memory_space<vmem>>, %arg7: memref<1x128xf32, #tpu.memory_space<vmem>>, %arg8: memref<2x16x128xf32, #tpu.memory_space<vmem>>) attributes {dimension_semantics = [#tpu.dimension_semantics<parallel>], iteration_bounds = array<i64: 2>, scalar_prefetch = 0 : i64, scratch_operands = 0 : i64, tpu.core_type = #tpu.core_type<tc>, window_params = [{transform_indices = @transform_0, window_bounds = array<i64: 2, 16, 768>}, {pipeline_mode = #tpu.pipeline_mode<synchronous>, transform_indices = @transform_1, window_bounds = array<i64: 3, 768, 384>}, {pipeline_mode = #tpu.pipeline_mode<synchronous>, transform_indices = @transform_2, window_bounds = array<i64: 3, 384, 256>}, {pipeline_mode = #tpu.pipeline_mode<synchronous>, transform_indices = @transform_3, window_bounds = array<i64: 3, 256, 128>}, {pipeline_mode = #tpu.pipeline_mode<synchronous>, transform_indices = @transform_4, window_bounds = array<i64: 1, 384>}, {pipeline_mode = #tpu.pipeline_mode<synchronous>, transform_indices = @transform_5, window_bounds = array<i64: 1, 256>}, {pipeline_mode = #tpu.pipeline_mode<synchronous>, transform_indices = @transform_6, window_bounds = array<i64: 1, 128>}, {transform_indices = @transform_7, window_bounds = array<i64: 2, 16, 128>}]} {
    %c0 = arith.constant 0 : index
    %c0_0 = arith.constant 0 : index
    %c0_1 = arith.constant 0 : index
    %0 = vector.load %arg1[%c0, %c0_0, %c0_1] : memref<2x16x768xf32, #tpu.memory_space<vmem>>, vector<2x16x768xf32>
    %1 = arith.truncf %0 : vector<2x16x768xf32> to vector<2x16x768xbf16>
    %2 = vector.shape_cast %1 : vector<2x16x768xbf16> to vector<32x768xbf16>
    %c0_2 = arith.constant 0 : index
    %c0_3 = arith.constant 0 : index
    %c0_4 = arith.constant 0 : index
    %3 = vector.load %arg2[%c0_2, %c0_3, %c0_4] : memref<3x768x384xbf16, #tpu.memory_space<vmem>>, vector<1x768x384xbf16>
    %4 = vector.shape_cast %3 : vector<1x768x384xbf16> to vector<768x384xbf16>
    %cst = arith.constant dense<0.000000e+00> : vector<32x384xf32>
    %5 = tpu.matmul %2, %4, %cst {dimension_numbers = #tpu.dot_dimension_numbers<[1], [0], [0], [1], [0, 0, 1, 1], [], []>} : vector<32x768xbf16>, vector<768x384xbf16>, vector<32x384xf32> -> vector<32x384xf32>
    %c1 = arith.constant 1 : index
    %c0_5 = arith.constant 0 : index
    %c0_6 = arith.constant 0 : index
    %6 = vector.load %arg2[%c1, %c0_5, %c0_6] : memref<3x768x384xbf16, #tpu.memory_space<vmem>>, vector<1x768x384xbf16>
    %7 = vector.shape_cast %6 : vector<1x768x384xbf16> to vector<768x384xbf16>
    %cst_7 = arith.constant dense<0.000000e+00> : vector<32x384xf32>
    %8 = tpu.matmul %2, %7, %cst_7 {dimension_numbers = #tpu.dot_dimension_numbers<[1], [0], [0], [1], [0, 0, 1, 1], [], []>} : vector<32x768xbf16>, vector<768x384xbf16>, vector<32x384xf32> -> vector<32x384xf32>
    %c0_8 = arith.constant 0 : index
    %c0_9 = arith.constant 0 : index
    %9 = vector.load %arg5[%c0_8, %c0_9] : memref<1x384xf32, #tpu.memory_space<vmem>>, vector<1x384xf32>
    %10 = vector.broadcast %9 : vector<1x384xf32> to vector<32x384xf32>
    %11 = arith.addf %8, %10 : vector<32x384xf32>
    %c2 = arith.constant 2 : index
    %c0_10 = arith.constant 0 : index
    %c0_11 = arith.constant 0 : index
    %12 = vector.load %arg2[%c2, %c0_10, %c0_11] : memref<3x768x384xbf16, #tpu.memory_space<vmem>>, vector<1x768x384xbf16>
    %13 = vector.shape_cast %12 : vector<1x768x384xbf16> to vector<768x384xbf16>
    %cst_12 = arith.constant dense<0.000000e+00> : vector<32x384xf32>
    %14 = tpu.matmul %2, %13, %cst_12 {dimension_numbers = #tpu.dot_dimension_numbers<[1], [0], [0], [1], [0, 0, 1, 1], [], []>} : vector<32x768xbf16>, vector<768x384xbf16>, vector<32x384xf32> -> vector<32x384xf32>
    %15 = vector.shape_cast %5 : vector<32x384xf32> to vector<2x16x384xf32>
    %16 = vector.shape_cast %11 : vector<32x384xf32> to vector<2x16x384xf32>
    %17 = vector.shape_cast %14 : vector<32x384xf32> to vector<2x16x384xf32>
    %cst_13 = arith.constant 0.000000e+00 : f32
    %18 = vector.broadcast %cst_13 : f32 to vector<2x1x384xf32>
    %19 = vector.extract_strided_slice %15 {offsets = [0, 0, 0], sizes = [2, 15, 384], strides = [1, 1, 1]} : vector<2x16x384xf32> to vector<2x15x384xf32>
    %20 = tpu.concatenate %18, %19 in 1 : vector<2x1x384xf32>, vector<2x15x384xf32> -> vector<2x16x384xf32>
    %21 = arith.addf %16, %20 : vector<2x16x384xf32>
    %22 = vector.extract_strided_slice %17 {offsets = [0, 1, 0], sizes = [2, 15, 384], strides = [1, 1, 1]} : vector<2x16x384xf32> to vector<2x15x384xf32>
    %23 = tpu.concatenate %22, %18 in 1 : vector<2x15x384xf32>, vector<2x1x384xf32> -> vector<2x16x384xf32>
    %24 = arith.addf %21, %23 : vector<2x16x384xf32>
    %cst_14 = arith.constant 0.000000e+00 : f32
    %25 = vector.broadcast %cst_14 : f32 to vector<2x16x384xf32>
    %26 = arith.maximumf %24, %25 : vector<2x16x384xf32>
    %27 = arith.truncf %26 : vector<2x16x384xf32> to vector<2x16x384xbf16>
    %28 = vector.shape_cast %27 : vector<2x16x384xbf16> to vector<32x384xbf16>
    %c0_15 = arith.constant 0 : index
    %c0_16 = arith.constant 0 : index
    %c0_17 = arith.constant 0 : index
    %29 = vector.load %arg3[%c0_15, %c0_16, %c0_17] : memref<3x384x256xbf16, #tpu.memory_space<vmem>>, vector<1x384x256xbf16>
    %30 = vector.shape_cast %29 : vector<1x384x256xbf16> to vector<384x256xbf16>
    %cst_18 = arith.constant dense<0.000000e+00> : vector<32x256xf32>
    %31 = tpu.matmul %28, %30, %cst_18 {dimension_numbers = #tpu.dot_dimension_numbers<[1], [0], [0], [1], [0, 0, 1, 1], [], []>} : vector<32x384xbf16>, vector<384x256xbf16>, vector<32x256xf32> -> vector<32x256xf32>
    %c1_19 = arith.constant 1 : index
    %c0_20 = arith.constant 0 : index
    %c0_21 = arith.constant 0 : index
    %32 = vector.load %arg3[%c1_19, %c0_20, %c0_21] : memref<3x384x256xbf16, #tpu.memory_space<vmem>>, vector<1x384x256xbf16>
    %33 = vector.shape_cast %32 : vector<1x384x256xbf16> to vector<384x256xbf16>
    %cst_22 = arith.constant dense<0.000000e+00> : vector<32x256xf32>
    %34 = tpu.matmul %28, %33, %cst_22 {dimension_numbers = #tpu.dot_dimension_numbers<[1], [0], [0], [1], [0, 0, 1, 1], [], []>} : vector<32x384xbf16>, vector<384x256xbf16>, vector<32x256xf32> -> vector<32x256xf32>
    %c0_23 = arith.constant 0 : index
    %c0_24 = arith.constant 0 : index
    %35 = vector.load %arg6[%c0_23, %c0_24] : memref<1x256xf32, #tpu.memory_space<vmem>>, vector<1x256xf32>
    %36 = vector.broadcast %35 : vector<1x256xf32> to vector<32x256xf32>
    %37 = arith.addf %34, %36 : vector<32x256xf32>
    %c2_25 = arith.constant 2 : index
    %c0_26 = arith.constant 0 : index
    %c0_27 = arith.constant 0 : index
    %38 = vector.load %arg3[%c2_25, %c0_26, %c0_27] : memref<3x384x256xbf16, #tpu.memory_space<vmem>>, vector<1x384x256xbf16>
    %39 = vector.shape_cast %38 : vector<1x384x256xbf16> to vector<384x256xbf16>
    %cst_28 = arith.constant dense<0.000000e+00> : vector<32x256xf32>
    %40 = tpu.matmul %28, %39, %cst_28 {dimension_numbers = #tpu.dot_dimension_numbers<[1], [0], [0], [1], [0, 0, 1, 1], [], []>} : vector<32x384xbf16>, vector<384x256xbf16>, vector<32x256xf32> -> vector<32x256xf32>
    %41 = vector.shape_cast %31 : vector<32x256xf32> to vector<2x16x256xf32>
    %42 = vector.shape_cast %37 : vector<32x256xf32> to vector<2x16x256xf32>
    %43 = vector.shape_cast %40 : vector<32x256xf32> to vector<2x16x256xf32>
    %cst_29 = arith.constant 0.000000e+00 : f32
    %44 = vector.broadcast %cst_29 : f32 to vector<2x1x256xf32>
    %45 = vector.extract_strided_slice %41 {offsets = [0, 0, 0], sizes = [2, 15, 256], strides = [1, 1, 1]} : vector<2x16x256xf32> to vector<2x15x256xf32>
    %46 = tpu.concatenate %44, %45 in 1 : vector<2x1x256xf32>, vector<2x15x256xf32> -> vector<2x16x256xf32>
    %47 = arith.addf %42, %46 : vector<2x16x256xf32>
    %48 = vector.extract_strided_slice %43 {offsets = [0, 1, 0], sizes = [2, 15, 256], strides = [1, 1, 1]} : vector<2x16x256xf32> to vector<2x15x256xf32>
    %49 = tpu.concatenate %48, %44 in 1 : vector<2x15x256xf32>, vector<2x1x256xf32> -> vector<2x16x256xf32>
    %50 = arith.addf %47, %49 : vector<2x16x256xf32>
    %cst_30 = arith.constant 0.000000e+00 : f32
    %51 = vector.broadcast %cst_30 : f32 to vector<2x16x256xf32>
    %52 = arith.maximumf %50, %51 : vector<2x16x256xf32>
    %53 = arith.truncf %52 : vector<2x16x256xf32> to vector<2x16x256xbf16>
    %54 = vector.shape_cast %53 : vector<2x16x256xbf16> to vector<32x256xbf16>
    %c0_31 = arith.constant 0 : index
    %c0_32 = arith.constant 0 : index
    %c0_33 = arith.constant 0 : index
    %55 = vector.load %arg4[%c0_31, %c0_32, %c0_33] : memref<3x256x128xbf16, #tpu.memory_space<vmem>>, vector<1x256x128xbf16>
    %56 = vector.shape_cast %55 : vector<1x256x128xbf16> to vector<256x128xbf16>
    %cst_34 = arith.constant dense<0.000000e+00> : vector<32x128xf32>
    %57 = tpu.matmul %54, %56, %cst_34 {dimension_numbers = #tpu.dot_dimension_numbers<[1], [0], [0], [1], [0, 0, 1, 1], [], []>} : vector<32x256xbf16>, vector<256x128xbf16>, vector<32x128xf32> -> vector<32x128xf32>
    %c1_35 = arith.constant 1 : index
    %c0_36 = arith.constant 0 : index
    %c0_37 = arith.constant 0 : index
    %58 = vector.load %arg4[%c1_35, %c0_36, %c0_37] : memref<3x256x128xbf16, #tpu.memory_space<vmem>>, vector<1x256x128xbf16>
    %59 = vector.shape_cast %58 : vector<1x256x128xbf16> to vector<256x128xbf16>
    %cst_38 = arith.constant dense<0.000000e+00> : vector<32x128xf32>
    %60 = tpu.matmul %54, %59, %cst_38 {dimension_numbers = #tpu.dot_dimension_numbers<[1], [0], [0], [1], [0, 0, 1, 1], [], []>} : vector<32x256xbf16>, vector<256x128xbf16>, vector<32x128xf32> -> vector<32x128xf32>
    %c0_39 = arith.constant 0 : index
    %c0_40 = arith.constant 0 : index
    %61 = vector.load %arg7[%c0_39, %c0_40] : memref<1x128xf32, #tpu.memory_space<vmem>>, vector<1x128xf32>
    %62 = vector.broadcast %61 : vector<1x128xf32> to vector<32x128xf32>
    %63 = arith.addf %60, %62 : vector<32x128xf32>
    %c2_41 = arith.constant 2 : index
    %c0_42 = arith.constant 0 : index
    %c0_43 = arith.constant 0 : index
    %64 = vector.load %arg4[%c2_41, %c0_42, %c0_43] : memref<3x256x128xbf16, #tpu.memory_space<vmem>>, vector<1x256x128xbf16>
    %65 = vector.shape_cast %64 : vector<1x256x128xbf16> to vector<256x128xbf16>
    %cst_44 = arith.constant dense<0.000000e+00> : vector<32x128xf32>
    %66 = tpu.matmul %54, %65, %cst_44 {dimension_numbers = #tpu.dot_dimension_numbers<[1], [0], [0], [1], [0, 0, 1, 1], [], []>} : vector<32x256xbf16>, vector<256x128xbf16>, vector<32x128xf32> -> vector<32x128xf32>
    %67 = vector.shape_cast %57 : vector<32x128xf32> to vector<2x16x128xf32>
    %68 = vector.shape_cast %63 : vector<32x128xf32> to vector<2x16x128xf32>
    %69 = vector.shape_cast %66 : vector<32x128xf32> to vector<2x16x128xf32>
    %cst_45 = arith.constant 0.000000e+00 : f32
    %70 = vector.broadcast %cst_45 : f32 to vector<2x1x128xf32>
    %71 = vector.extract_strided_slice %67 {offsets = [0, 0, 0], sizes = [2, 15, 128], strides = [1, 1, 1]} : vector<2x16x128xf32> to vector<2x15x128xf32>
    %72 = tpu.concatenate %70, %71 in 1 : vector<2x1x128xf32>, vector<2x15x128xf32> -> vector<2x16x128xf32>
    %73 = arith.addf %68, %72 : vector<2x16x128xf32>
    %74 = vector.extract_strided_slice %69 {offsets = [0, 1, 0], sizes = [2, 15, 128], strides = [1, 1, 1]} : vector<2x16x128xf32> to vector<2x15x128xf32>
    %75 = tpu.concatenate %74, %70 in 1 : vector<2x15x128xf32>, vector<2x1x128xf32> -> vector<2x16x128xf32>
    %76 = arith.addf %73, %75 : vector<2x16x128xf32>
    %cst_46 = arith.constant 0.000000e+00 : f32
    %77 = vector.broadcast %cst_46 : f32 to vector<2x16x128xf32>
    %78 = arith.maximumf %76, %77 : vector<2x16x128xf32>
    %c0_47 = arith.constant 0 : index
    %c0_48 = arith.constant 0 : index
    %c0_49 = arith.constant 0 : index
    %79 = vector.load %arg8[%c0_47, %c0_48, %c0_49] : memref<2x16x128xf32, #tpu.memory_space<vmem>>, vector<2x16x128xf32>
    tpu.vector_store %arg8[%c0_47, %c0_48, %c0_49], %78 {strides = array<i32>} : memref<2x16x128xf32, #tpu.memory_space<vmem>>, vector<2x16x128xf32>,
    return
  }
  func.func @transform_0(%arg0: i32) -> (i32, i32, i32) {
    %c0_i32 = arith.constant 0 : i32
    %c0_i32_0 = arith.constant 0 : i32
    %c0_i32_1 = arith.constant 0 : i32
    return %arg0, %c0_i32, %c0_i32_0 : i32, i32, i32
  }
  func.func @transform_1(%arg0: i32) -> (i32, i32, i32) {
    %c0_i32 = arith.constant 0 : i32
    %c0_i32_0 = arith.constant 0 : i32
    %c0_i32_1 = arith.constant 0 : i32
    %c0_i32_2 = arith.constant 0 : i32
    return %c0_i32, %c0_i32_0, %c0_i32_1 : i32, i32, i32
  }
  func.func @transform_2(%arg0: i32) -> (i32, i32, i32) {
    %c0_i32 = arith.constant 0 : i32
    %c0_i32_0 = arith.constant 0 : i32
    %c0_i32_1 = arith.constant 0 : i32
    %c0_i32_2 = arith.constant 0 : i32
    return %c0_i32, %c0_i32_0, %c0_i32_1 : i32, i32, i32
  }
  func.func @transform_3(%arg0: i32) -> (i32, i32, i32) {
    %c0_i32 = arith.constant 0 : i32
    %c0_i32_0 = arith.constant 0 : i32
    %c0_i32_1 = arith.constant 0 : i32
    %c0_i32_2 = arith.constant 0 : i32
    return %c0_i32, %c0_i32_0, %c0_i32_1 : i32, i32, i32
  }
  func.func @transform_4(%arg0: i32) -> (i32, i32) {
    %c0_i32 = arith.constant 0 : i32
    %c0_i32_0 = arith.constant 0 : i32
    %c0_i32_1 = arith.constant 0 : i32
    return %c0_i32, %c0_i32_0 : i32, i32
  }
  func.func @transform_5(%arg0: i32) -> (i32, i32) {
    %c0_i32 = arith.constant 0 : i32
    %c0_i32_0 = arith.constant 0 : i32
    %c0_i32_1 = arith.constant 0 : i32
    return %c0_i32, %c0_i32_0 : i32, i32
  }
  func.func @transform_6(%arg0: i32) -> (i32, i32) {
    %c0_i32 = arith.constant 0 : i32
    %c0_i32_0 = arith.constant 0 : i32
    %c0_i32_1 = arith.constant 0 : i32
    return %c0_i32, %c0_i32_0 : i32, i32
  }
  func.func @transform_7(%arg0: i32) -> (i32, i32, i32) {
    %c0_i32 = arith.constant 0 : i32
    %c0_i32_0 = arith.constant 0 : i32
    %c0_i32_1 = arith.constant 0 : i32
    return %arg0, %c0_i32, %c0_i32_0 : i32, i32, i32
  }
}

</mosaic_0001>

<llo_original>
// kernel: cnn_forward.1
$region0: #{cnn_forward.1}
  #allocation0 [shape = 'u32[]', space=smem, size = 0x4, offset = 0x4, fixed_abs, tag = 'smem constant byte address 0x4 - core index']
  #allocation1 [shape = 'u32[72,128]{1,0:T(1,128)}', space=vmem, size = 0x9000, scoped, tag = 'internal scratch']
  %s0 = inlined_call_operand.hbm [shape: f32[4,16,768], index: 0, kind: input, shape index: {}]
  %s1 = inlined_call_operand.hbm [shape: bf16[3,768,384], index: 1, kind: input, shape index: {}]
  %s2 = inlined_call_operand.hbm [shape: bf16[3,384,256], index: 2, kind: input, shape index: {}]
  %s3 = inlined_call_operand.hbm [shape: bf16[3,256,128], index: 3, kind: input, shape index: {}]
  %s4 = inlined_call_operand.hbm [shape: f32[1,384], index: 4, kind: input, shape index: {}]
  %s5 = inlined_call_operand.hbm [shape: f32[1,256], index: 5, kind: input, shape index: {}]
  %s6 = inlined_call_operand.hbm [shape: f32[1,128], index: 6, kind: input, shape index: {}]
  %s7 = inlined_call_operand.vmem [shape: f32[4,16,128], index: 7, kind: output, shape index: {}]
  %s8 = sld [smem:[#allocation0]]
  $region89: #{cnn_forward.1} parent=0
    _
  %s10 = ssub.s32 1, %s8
  %s11 = scalar_select 0, %s10, %s8
  $region1: #{cnn_forward.1} parent=0
    #allocation2 [shape = 'u8[196608]{0}', space=vmem, size = 0x30000, scoped, tag = 'input window, operand 0']
    #allocation3 [shape = 's32[2]{0}', space=sflag, size = 0x8, scoped, tag = 'scoped memory for cnn_forward.1']
    #allocation4 [shape = 'u8[1769472]{0}', space=vmem, size = 0x1b0000, scoped, tag = 'input window, operand 1, single buffered']
    #allocation5 [shape = 's32[1]{0}', space=sflag, size = 0x4, scoped, tag = 'scoped memory for cnn_forward.1']
    #allocation6 [shape = 'u8[589824]{0}', space=vmem, size = 0x90000, scoped, tag = 'input window, operand 2, single buffered']
    #allocation7 [shape = 'u8[196608]{0}', space=vmem, size = 0x30000, scoped, tag = 'input window, operand 3, single buffered']
    #allocation8 [shape = 's32[1]{0}', space=sflag, size = 0x4, scoped, tag = 'scoped memory for cnn_forward.1']
    #allocation9 [shape = 'u8[1536]{0}', space=vmem, size = 0x800, scoped, tag = 'input window, operand 4, single buffered']
    #allocation10 [shape = 'u8[1024]{0}', space=vmem, size = 0x400, scoped, tag = 'input window, operand 5, single buffered']
    #allocation11 [shape = 's32[1]{0}', space=sflag, size = 0x4, scoped, tag = 'scoped memory for cnn_forward.1']
    #allocation12 [shape = 'u8[512]{0}', space=vmem, size = 0x400, scoped, tag = 'input window, operand 6, single buffered']
    %12 = vsyncpa [#allocation3], 0
    %s13 = scalar_lea.sflag [#allocation3], 1
    %14 = vsyncpa %s13, 0
    %15 = vsyncpa [#allocation5], 0
    %16 = vsyncpa [#allocation8], 0
    %17 = vsyncpa [#allocation11], 0
    loop: start=0, step=1, limit=4
    $region2: #{cnn_forward.1} parent=1 // loop_pre_header
      _
    $region3: #{cnn_forward.1} parent=1 // loop_header
      %s19 = sphi 0, %s23
      %p20 = scmp.ge.s32.totalorder %s19, 4
      %s29 = sphi 0, %s31
      %s32 = sphi 0, %s29
      %s33 = sphi 0, %s32
      %s49 = sphi 0, %s33
      %s53 = sphi 0, %s53
      %s55 = sphi 0, %s53
      %s56 = sphi 0, %s55
      %s70 = sphi 0, %s56
      %s74 = sphi 0, %s74
      %s76 = sphi 0, %s74
      %s77 = sphi 0, %s76
      %s91 = sphi 0, %s77
      %s95 = sphi 0, %s95
      %s97 = sphi 0, %s95
      %s98 = sphi 0, %s97
      %s112 = sphi 0, %s98
      %s116 = sphi 0, %s116
      %s118 = sphi 0, %s116
      %s119 = sphi 0, %s118
      %s133 = sphi 0, %s119
      %s137 = sphi 0, %s137
      %s139 = sphi 0, %s137
      %s140 = sphi 0, %s139
      %s154 = sphi 0, %s140
      %s158 = sphi 0, %s158
      %s160 = sphi 0, %s158
      %s161 = sphi 0, %s160
      %s175 = sphi 0, %s161
      %s181 = sphi 0, %s183
      %s184 = sphi 0, %s181
      %s185 = sphi 0, %s184
      %s201 = sphi 0, %s185
    $region4: #{cnn_forward.1} parent=1 // loop_header_branch
      %22 = sbr.rel (%p20) target = $region8
    $region5: #{cnn_forward.1} parent=1 // loop_body
      %s24 = ssub.s32 %s19, 1
      %s25 = ssub.s32 %s19, 2
      %s26 = sadd.s32 %s19, 1
      %s27 = ssub.s32 %s19, %s26
      %p28 = scmp.eq.s32.totalorder %s27, 0
      %s30 = sadd.s32 %s29, 1
      %s31 = scalar_select %p28, %s29, %s30
      %p34 = pneg %p28
      %p35 = scmp.eq.s32.totalorder %s19, 1
      %p36 = por %p34, %p35
      %p37 = scmp.ne.s32.totalorder %s29, %s32
      %p38 = scmp.eq.s32.totalorder %s19, 0
      %p39 = por %p37, %p38
      %p40 = scmp.ne.s32.totalorder %s29, %s32
      %p41 = scmp.eq.s32.totalorder %s24, 1
      %p42 = por %p40, %p41
      %p43 = scmp.ne.s32.totalorder %s32, %s33
      %p44 = scmp.eq.s32.totalorder %s24, 0
      %p45 = por %p43, %p44
      %p46 = scmp.ne.s32.totalorder %s32, %s33
      %p47 = scmp.eq.s32.totalorder %s25, 1
      %p48 = por %p46, %p47
      %p50 = scmp.ne.s32.totalorder %s33, %s49
      %p51 = scmp.eq.s32.totalorder %s25, 0
      %p52 = por %p50, %p51
      %s54 = sadd.s32 %s53, 1
      %p57 = scmp.eq.s32.totalorder %s19, 1
      %p58 = scmp.ne.s32.totalorder %s53, %s55
      %p59 = scmp.eq.s32.totalorder %s19, 0
      %p60 = por %p58, %p59
      %p61 = scmp.ne.s32.totalorder %s53, %s55
      %p62 = scmp.eq.s32.totalorder %s24, 1
      %p63 = por %p61, %p62
      %p64 = scmp.ne.s32.totalorder %s55, %s56
      %p65 = scmp.eq.s32.totalorder %s24, 0
      %p66 = por %p64, %p65
      %p67 = scmp.ne.s32.totalorder %s55, %s56
      %p68 = scmp.eq.s32.totalorder %s25, 1
      %p69 = por %p67, %p68
      %p71 = scmp.ne.s32.totalorder %s56, %s70
      %p72 = scmp.eq.s32.totalorder %s25, 0
      %p73 = por %p71, %p72
      %s75 = sadd.s32 %s74, 1
      %p78 = scmp.eq.s32.totalorder %s19, 1
      %p79 = scmp.ne.s32.totalorder %s74, %s76
      %p80 = scmp.eq.s32.totalorder %s19, 0
      %p81 = por %p79, %p80
      %p82 = scmp.ne.s32.totalorder %s74, %s76
      %p83 = scmp.eq.s32.totalorder %s24, 1
      %p84 = por %p82, %p83
      %p85 = scmp.ne.s32.totalorder %s76, %s77
      %p86 = scmp.eq.s32.totalorder %s24, 0
      %p87 = por %p85, %p86
      %p88 = scmp.ne.s32.totalorder %s76, %s77
      %p89 = scmp.eq.s32.totalorder %s25, 1
      %p90 = por %p88, %p89
      %p92 = scmp.ne.s32.totalorder %s77, %s91
      %p93 = scmp.eq.s32.totalorder %s25, 0
      %p94 = por %p92, %p93
      %s96 = sadd.s32 %s95, 1
      %p99 = scmp.eq.s32.totalorder %s19, 1
      %p100 = scmp.ne.s32.totalorder %s95, %s97
      %p101 = scmp.eq.s32.totalorder %s19, 0
      %p102 = por %p100, %p101
      %p103 = scmp.ne.s32.totalorder %s95, %s97
      %p104 = scmp.eq.s32.totalorder %s24, 1
      %p105 = por %p103, %p104
      %p106 = scmp.ne.s32.totalorder %s97, %s98
      %p107 = scmp.eq.s32.totalorder %s24, 0
      %p108 = por %p106, %p107
      %p109 = scmp.ne.s32.totalorder %s97, %s98
      %p110 = scmp.eq.s32.totalorder %s25, 1
      %p111 = por %p109, %p110
      %p113 = scmp.ne.s32.totalorder %s98, %s112
      %p114 = scmp.eq.s32.totalorder %s25, 0
      %p115 = por %p113, %p114
      %s117 = sadd.s32 %s116, 1
      %p120 = scmp.eq.s32.totalorder %s19, 1
      %p121 = scmp.ne.s32.totalorder %s116, %s118
      %p122 = scmp.eq.s32.totalorder %s19, 0
      %p123 = por %p121, %p122
      %p124 = scmp.ne.s32.totalorder %s116, %s118
      %p125 = scmp.eq.s32.totalorder %s24, 1
      %p126 = por %p124, %p125
      %p127 = scmp.ne.s32.totalorder %s118, %s119
      %p128 = scmp.eq.s32.totalorder %s24, 0
      %p129 = por %p127, %p128
      %p130 = scmp.ne.s32.totalorder %s118, %s119
      %p131 = scmp.eq.s32.totalorder %s25, 1
      %p132 = por %p130, %p131
      %p134 = scmp.ne.s32.totalorder %s119, %s133
      %p135 = scmp.eq.s32.totalorder %s25, 0
      %p136 = por %p134, %p135
      %s138 = sadd.s32 %s137, 1
      %p141 = scmp.eq.s32.totalorder %s19, 1
      %p142 = scmp.ne.s32.totalorder %s137, %s139
      %p143 = scmp.eq.s32.totalorder %s19, 0
      %p144 = por %p142, %p143
      %p145 = scmp.ne.s32.totalorder %s137, %s139
      %p146 = scmp.eq.s32.totalorder %s24, 1
      %p147 = por %p145, %p146
      %p148 = scmp.ne.s32.totalorder %s139, %s140
      %p149 = scmp.eq.s32.totalorder %s24, 0
      %p150 = por %p148, %p149
      %p151 = scmp.ne.s32.totalorder %s139, %s140
      %p152 = scmp.eq.s32.totalorder %s25, 1
      %p153 = por %p151, %p152
      %p155 = scmp.ne.s32.totalorder %s140, %s154
      %p156 = scmp.eq.s32.totalorder %s25, 0
      %p157 = por %p155, %p156
      %s159 = sadd.s32 %s158, 1
      %p162 = scmp.eq.s32.totalorder %s19, 1
      %p163 = scmp.ne.s32.totalorder %s158, %s160
      %p164 = scmp.eq.s32.totalorder %s19, 0
      %p165 = por %p163, %p164
      %p166 = scmp.ne.s32.totalorder %s158, %s160
      %p167 = scmp.eq.s32.totalorder %s24, 1
      %p168 = por %p166, %p167
      %p169 = scmp.ne.s32.totalorder %s160, %s161
      %p170 = scmp.eq.s32.totalorder %s24, 0
      %p171 = por %p169, %p170
      %p172 = scmp.ne.s32.totalorder %s160, %s161
      %p173 = scmp.eq.s32.totalorder %s25, 1
      %p174 = por %p172, %p173
      %p176 = scmp.ne.s32.totalorder %s161, %s175
      %p177 = scmp.eq.s32.totalorder %s25, 0
      %p178 = por %p176, %p177
      %s179 = ssub.s32 %s19, %s26
      %p180 = scmp.eq.s32.totalorder %s179, 0
      %s182 = sadd.s32 %s181, 1
      %s183 = scalar_select %p180, %s181, %s182
      %p186 = pneg %p180
      %p187 = scmp.eq.s32.totalorder %s19, 1
      %p188 = por %p186, %p187
      %p189 = scmp.ne.s32.totalorder %s181, %s184
      %p190 = scmp.eq.s32.totalorder %s19, 0
      %p191 = por %p189, %p190
      %p192 = scmp.ne.s32.totalorder %s181, %s184
      %p193 = scmp.eq.s32.totalorder %s24, 1
      %p194 = por %p192, %p193
      %p195 = scmp.ne.s32.totalorder %s184, %s185
      %p196 = scmp.eq.s32.totalorder %s24, 0
      %p197 = por %p195, %p196
      %p198 = scmp.ne.s32.totalorder %s184, %s185
      %p199 = scmp.eq.s32.totalorder %s25, 1
      %p200 = por %p198, %p199
      %p202 = scmp.ne.s32.totalorder %s185, %s201
      %p203 = scmp.eq.s32.totalorder %s25, 0
      %p204 = por %p202, %p203
      %p205 = scmp.le.s32.totalorder 1, %s19
      %p206 = scmp.lt.s32.totalorder %s19, 3
      %p207 = pnand %p205, %p206
      %p208 = pneg %p207
      // Predicated region
      $region9: #{cnn_forward.1} parent=5 // pred_check
        _
      $region10: #{cnn_forward.1} parent=5 // pred_check_branch
        %210 = sbr.rel (%p207) target = $region12
      $region11: #{cnn_forward.1} parent=5 // pred_region
        %s211 = ssub.s32 %s19, 1
        // Predicated region
        $region13: #{cnn_forward.1} parent=11 // pred_check
          %p212 = pneg %p66
        $region14: #{cnn_forward.1} parent=11 // pred_check_branch
          %214 = sbr.rel (%p212) target = $region16
        $region15: #{cnn_forward.1} parent=11 // pred_region
          %216 = vsyncadd [#allocation5], 0
          %s217 = sshll.u32 %s1, 4
          %s218 = int_to_ptr.hbm [resolvable:$true] %s217
          %s219 = sshll.u32 [#allocation4], 4
          %s220 = int_to_ptr.vmem [resolvable:$true] %s219
          %225 = dma.hbm_to_vmem [thread:$0]  %s218, 55296, %s220, [#allocation5], 192, 192, 12
        $region16: #{cnn_forward.1} parent=11 // pred_fallthru
          _
        // Predicated region
        $region17: #{cnn_forward.1} parent=11 // pred_check
          %p226 = pneg %p87
        $region18: #{cnn_forward.1} parent=11 // pred_check_branch
          %228 = sbr.rel (%p226) target = $region20
        $region19: #{cnn_forward.1} parent=11 // pred_region
          %230 = vsyncadd [#allocation5], 0
          %s231 = sshll.u32 %s2, 4
          %s232 = int_to_ptr.hbm [resolvable:$true] %s231
          %s233 = sshll.u32 [#allocation6], 4
          %s234 = int_to_ptr.vmem [resolvable:$true] %s233
          %239 = dma.hbm_to_vmem [thread:$0]  %s232, 18432, %s234, [#allocation5], 128, 128, 8
        $region20: #{cnn_forward.1} parent=11 // pred_fallthru
          _
        // Predicated region
        $region21: #{cnn_forward.1} parent=11 // pred_check
          %p240 = pneg %p108
        $region22: #{cnn_forward.1} parent=11 // pred_check_branch
          %242 = sbr.rel (%p240) target = $region24
        $region23: #{cnn_forward.1} parent=11 // pred_region
          %244 = vsyncadd [#allocation8], 0
          %s245 = sshll.u32 %s3, 4
          %s246 = int_to_ptr.hbm [resolvable:$true] %s245
          %s247 = sshll.u32 [#allocation7], 4
          %s248 = int_to_ptr.vmem [resolvable:$true] %s247
          %253 = dma.hbm_to_vmem [thread:$0]  %s246, 6144, %s248, [#allocation8], 64, 64, 4
        $region24: #{cnn_forward.1} parent=11 // pred_fallthru
          _
        // Predicated region
        $region25: #{cnn_forward.1} parent=11 // pred_check
          %p254 = pneg %p129
        $region26: #{cnn_forward.1} parent=11 // pred_check_branch
          %256 = sbr.rel (%p254) target = $region28
        $region27: #{cnn_forward.1} parent=11 // pred_region
          %258 = vsyncadd [#allocation8], 0
          %s260 = sshll.u32 %s4, 4
          %s261 = int_to_ptr.hbm [resolvable:$true] %s260
          %s262 = sshll.u32 [#allocation9], 4
          %s263 = int_to_ptr.vmem [resolvable:$true] %s262
          %265 = dma.hbm_to_vmem [thread:$0]  %s261, 48, %s263, [#allocation8]
        $region28: #{cnn_forward.1} parent=11 // pred_fallthru
          _
        // Predicated region
        $region29: #{cnn_forward.1} parent=11 // pred_check
          %p266 = pneg %p150
        $region30: #{cnn_forward.1} parent=11 // pred_check_branch
          %268 = sbr.rel (%p266) target = $region32
        $region31: #{cnn_forward.1} parent=11 // pred_region
          %270 = vsyncadd [#allocation11], 0
          %s272 = sshll.u32 %s5, 4
          %s273 = int_to_ptr.hbm [resolvable:$true] %s272
          %s274 = sshll.u32 [#allocation10], 4
          %s275 = int_to_ptr.vmem [resolvable:$true] %s274
          %277 = dma.hbm_to_vmem [thread:$0]  %s273, 32, %s275, [#allocation11]
        $region32: #{cnn_forward.1} parent=11 // pred_fallthru
          _
        // Predicated region
        $region33: #{cnn_forward.1} parent=11 // pred_check
          %p278 = pneg %p171
        $region34: #{cnn_forward.1} parent=11 // pred_check_branch
          %280 = sbr.rel (%p278) target = $region36
        $region35: #{cnn_forward.1} parent=11 // pred_region
          %282 = vsyncadd [#allocation11], 0
          %s284 = sshll.u32 %s6, 4
          %s285 = int_to_ptr.hbm [resolvable:$true] %s284
          %s286 = sshll.u32 [#allocation12], 4
          %s287 = int_to_ptr.vmem [resolvable:$true] %s286
          %289 = dma.hbm_to_vmem [thread:$0]  %s285, 16, %s287, [#allocation11]
        $region36: #{cnn_forward.1} parent=11 // pred_fallthru
          _
      $region12: #{cnn_forward.1} parent=5 // pred_fallthru
        _
      %p290 = scmp.lt.s32.totalorder %s19, 2
      // Predicated region
      $region37: #{cnn_forward.1} parent=5 // pred_check
        %p291 = pneg %p290
      $region38: #{cnn_forward.1} parent=5 // pred_check_branch
        %293 = sbr.rel (%p291) target = $region40
      $region39: #{cnn_forward.1} parent=5 // pred_region
        // Predicated region
        $region41: #{cnn_forward.1} parent=39 // pred_check
          %p294 = pneg %p39
        $region42: #{cnn_forward.1} parent=39 // pred_check_branch
          %296 = sbr.rel (%p294) target = $region44
        $region43: #{cnn_forward.1} parent=39 // pred_region
          %s297 = sand.u32 %s29, 1
          %s298 = scalar_lea.sflag [#allocation3], %s297
          %s299 = sand.u32 %s29, 1
          %s300 = smul.addr %s299, 192
          %s301 = scalar_lea.vmem [#allocation2], %s300
          %s302 = smul.u32 2, %s19
          %304 = vsyncadd %s298, 0
          %s305 = smul.addr %s302, 12
          %s306 = smul.addr %s305, 8
          %s307 = scalar_lea.hbm %s0, %s306
          %s308 = sshll.u32 %s307, 4
          %s309 = int_to_ptr.hbm [resolvable:$true] %s308
          %s310 = sshll.u32 %s301, 4
          %s311 = int_to_ptr.vmem [resolvable:$true] %s310
          %316 = dma.hbm_to_vmem [thread:$0]  %s309, 3072, %s311, %s298, 768, 768, 48
        $region44: #{cnn_forward.1} parent=39 // pred_fallthru
          _
      $region40: #{cnn_forward.1} parent=5 // pred_fallthru
        _
      %p317 = scmp.le.s32.totalorder 1, %s19
      %p318 = scmp.lt.s32.totalorder %s19, 3
      %p319 = pnand %p317, %p318
      %p320 = pneg %p319
      // Predicated region
      $region45: #{cnn_forward.1} parent=5 // pred_check
        _
      $region46: #{cnn_forward.1} parent=5 // pred_check_branch
        %322 = sbr.rel (%p319) target = $region48
      $region47: #{cnn_forward.1} parent=5 // pred_region
        %s323 = ssub.s32 %s19, 1
        %s324 = sand.u32 %s32, 1
        %s325 = scalar_lea.sflag [#allocation3], %s324
        %s326 = sand.u32 %s32, 1
        %s327 = smul.addr %s326, 192
        %s328 = scalar_lea.vmem [#allocation2], %s327
        // Predicated region
        $region49: #{cnn_forward.1} parent=47 // pred_check
          %p329 = pneg %p45
        $region50: #{cnn_forward.1} parent=47 // pred_check_branch
          %331 = sbr.rel (%p329) target = $region52
        $region51: #{cnn_forward.1} parent=47 // pred_region
          %333 = dma.done %s325, 3072
        $region52: #{cnn_forward.1} parent=47 // pred_fallthru
          _
        // Predicated region
        $region53: #{cnn_forward.1} parent=47 // pred_check
          %p334 = pneg %p66
        $region54: #{cnn_forward.1} parent=47 // pred_check_branch
          %336 = sbr.rel (%p334) target = $region56
        $region55: #{cnn_forward.1} parent=47 // pred_region
          %338 = dma.done [#allocation5], 55296
        $region56: #{cnn_forward.1} parent=47 // pred_fallthru
          _
        // Predicated region
        $region57: #{cnn_forward.1} parent=47 // pred_check
          %p339 = pneg %p87
        $region58: #{cnn_forward.1} parent=47 // pred_check_branch
          %341 = sbr.rel (%p339) target = $region60
        $region59: #{cnn_forward.1} parent=47 // pred_region
          %343 = dma.done [#allocation5], 18432
        $region60: #{cnn_forward.1} parent=47 // pred_fallthru
          _
        // Predicated region
        $region61: #{cnn_forward.1} parent=47 // pred_check
          %p344 = pneg %p108
        $region62: #{cnn_forward.1} parent=47 // pred_check_branch
          %346 = sbr.rel (%p344) target = $region64
        $region63: #{cnn_forward.1} parent=47 // pred_region
          %348 = dma.done [#allocation8], 6144
        $region64: #{cnn_forward.1} parent=47 // pred_fallthru
          _
        // Predicated region
        $region65: #{cnn_forward.1} parent=47 // pred_check
          %p349 = pneg %p129
        $region66: #{cnn_forward.1} parent=47 // pred_check_branch
          %351 = sbr.rel (%p349) target = $region68
        $region67: #{cnn_forward.1} parent=47 // pred_region
          %353 = dma.done [#allocation8], 48
        $region68: #{cnn_forward.1} parent=47 // pred_fallthru
          _
        // Predicated region
        $region69: #{cnn_forward.1} parent=47 // pred_check
          %p354 = pneg %p150
        $region70: #{cnn_forward.1} parent=47 // pred_check_branch
          %356 = sbr.rel (%p354) target = $region72
        $region71: #{cnn_forward.1} parent=47 // pred_region
          %358 = dma.done [#allocation11], 32
        $region72: #{cnn_forward.1} parent=47 // pred_fallthru
          _
        // Predicated region
        $region73: #{cnn_forward.1} parent=47 // pred_check
          %p359 = pneg %p171
        $region74: #{cnn_forward.1} parent=47 // pred_check_branch
          %361 = sbr.rel (%p359) target = $region76
        $region75: #{cnn_forward.1} parent=47 // pred_region
          %363 = dma.done [#allocation11], 16
        $region76: #{cnn_forward.1} parent=47 // pred_fallthru
          _
        %s364 = sand.u32 %s32, 1
        %s365 = scalar_lea.sflag [#allocation3], %s364
        %s366 = sand.u32 %s32, 1
        %s367 = smul.addr %s366, 192
        %s368 = scalar_lea.vmem [#allocation2], %s367
        %p369 = pneg %p45
        %p370 = pneg %p42
        %p371 = pneg %p66
        %p372 = pneg %p63
        %p373 = pneg %p87
        %p374 = pneg %p84
        %p375 = pneg %p108
        %p376 = pneg %p105
        %p377 = pneg %p129
        %p378 = pneg %p126
        %p379 = pneg %p150
        %p380 = pneg %p147
        %p381 = pneg %p171
        %p382 = pneg %p168
        %p383 = pneg %p197
        %p384 = pneg %p194
        %s385 = smul.u32 2, %s24
        %p386 = scmp.lt.s32.totalorder %s385, 3
        %s387 = scalar_select %p386, %s385, 3
        %s388 = smul.addr %s387, 2
        %s389 = smul.addr %s388, 8
        %s390 = scalar_lea.vmem %s7, %s389
        %s391 = smul.u32 2, %s24
        %s392 = smul.u32 2, %s24
        %p393 = scmp.lt.s32.totalorder %s392, 3
        %s394 = scalar_select %p393, %s392, 3
        %s395 = smul.addr %s394, 2
        %s396 = smul.addr %s395, 8
        %s397 = scalar_lea.vmem %s7, %s396
        %s398 = smul.u32 2, %s24
        %v399 = vld [vmem:[%s328] sm:$0xff]
        %v400 = vld [vmem:[%s328 + $0x8] sm:$0xff]
        %v401 = vld [vmem:[%s328 + $0x10] sm:$0xff]
        %v402 = vld [vmem:[%s328 + $0x18] sm:$0xff]
        %v403 = vld [vmem:[%s328 + $0x20] sm:$0xff]
        %v404 = vld [vmem:[%s328 + $0x28] sm:$0xff]
        %v405 = vld [vmem:[%s328 + $0x30] sm:$0xff]
        %v406 = vld [vmem:[%s328 + $0x38] sm:$0xff]
        %v407 = vld [vmem:[%s328 + $0x40] sm:$0xff]
        %v408 = vld [vmem:[%s328 + $0x48] sm:$0xff]
        %v409 = vld [vmem:[%s328 + $0x50] sm:$0xff]
        %v410 = vld [vmem:[%s328 + $0x58] sm:$0xff]
        %v411 = vld [vmem:[%s328 + $0x60] sm:$0xff]
        %v412 = vld [vmem:[%s328 + $0x68] sm:$0xff]
        %v413 = vld [vmem:[%s328 + $0x70] sm:$0xff]
        %v414 = vld [vmem:[%s328 + $0x78] sm:$0xff]
        %v415 = vld [vmem:[%s328 + $0x80] sm:$0xff]
        %v416 = vld [vmem:[%s328 + $0x88] sm:$0xff]
        %v417 = vld [vmem:[%s328 + $0x90] sm:$0xff]
        %v418 = vld [vmem:[%s328 + $0x98] sm:$0xff]
        %v419 = vld [vmem:[%s328 + $0xa0] sm:$0xff]
        %v420 = vld [vmem:[%s328 + $0xa8] sm:$0xff]
        %v421 = vld [vmem:[%s328 + $0xb0] sm:$0xff]
        %v422 = vld [vmem:[%s328 + $0xb8] sm:$0xff]
        %v423 = vpack.c.bf16 %v400, %v399
        %v424 = vpack.c.bf16 %v402, %v401
        %v425 = vpack.c.bf16 %v404, %v403
        %v426 = vpack.c.bf16 %v406, %v405
        %v427 = vpack.c.bf16 %v408, %v407
        %v428 = vpack.c.bf16 %v410, %v409
        %v429 = vpack.c.bf16 %v412, %v411
        %v430 = vpack.c.bf16 %v414, %v413
        %v431 = vpack.c.bf16 %v416, %v415
        %v432 = vpack.c.bf16 %v418, %v417
        %v433 = vpack.c.bf16 %v420, %v419
        %v434 = vpack.c.bf16 %v422, %v421
        %v435 = vld [vmem:[#allocation4] sm:$0xff]
        %v436 = vld [vmem:[#allocation4 + $0x8] sm:$0xf]
        %v437 = vld [vmem:[#allocation4 + $0xc] sm:$0xff]
        %v438 = vld [vmem:[#allocation4 + $0x14] sm:$0xf]
        %v439 = vld [vmem:[#allocation4 + $0x18] sm:$0xff]
        %v440 = vld [vmem:[#allocation4 + $0x20] sm:$0xf]
        %v441 = vld [vmem:[#allocation4 + $0x24] sm:$0xff]
        %v442 = vld [vmem:[#allocation4 + $0x2c] sm:$0xf]
        %v443 = vld [vmem:[#allocation4 + $0x30] sm:$0xff]
        %v444 = vld [vmem:[#allocation4 + $0x38] sm:$0xf]
        %v445 = vld [vmem:[#allocation4 + $0x3c] sm:$0xff]
        %v446 = vld [vmem:[#allocation4 + $0x44] sm:$0xf]
        %v447 = vld [vmem:[#allocation4 + $0x48] sm:$0xff]
        %v448 = vld [vmem:[#allocation4 + $0x50] sm:$0xf]
        %v449 = vld [vmem:[#allocation4 + $0x54] sm:$0xff]
        %v450 = vld [vmem:[#allocation4 + $0x5c] sm:$0xf]
        %v451 = vld [vmem:[#allocation4 + $0x60] sm:$0xff]
        %v452 = vld [vmem:[#allocation4 + $0x68] sm:$0xf]
        %v453 = vld [vmem:[#allocation4 + $0x6c] sm:$0xff]
        %v454 = vld [vmem:[#allocation4 + $0x74] sm:$0xf]
        %v455 = vld [vmem:[#allocation4 + $0x78] sm:$0xff]
        %v456 = vld [vmem:[#allocation4 + $0x80] sm:$0xf]
        %v457 = vld [vmem:[#allocation4 + $0x84] sm:$0xff]
        %v458 = vld [vmem:[#allocation4 + $0x8c] sm:$0xf]
        %v459 = vld [vmem:[#allocation4 + $0x90] sm:$0xff]
        %v460 = vld [vmem:[#allocation4 + $0x98] sm:$0xf]
        %v461 = vld [vmem:[#allocation4 + $0x9c] sm:$0xff]
        %v462 = vld [vmem:[#allocation4 + $0xa4] sm:$0xf]
        %v463 = vld [vmem:[#allocation4 + $0xa8] sm:$0xff]
        %v464 = vld [vmem:[#allocation4 + $0xb0] sm:$0xf]
        %v465 = vld [vmem:[#allocation4 + $0xb4] sm:$0xff]
        %v466 = vld [vmem:[#allocation4 + $0xbc] sm:$0xf]
        %v467 = vld [vmem:[#allocation4 + $0xc0] sm:$0xff]
        %v468 = vld [vmem:[#allocation4 + $0xc8] sm:$0xf]
        %v469 = vld [vmem:[#allocation4 + $0xcc] sm:$0xff]
        %v470 = vld [vmem:[#allocation4 + $0xd4] sm:$0xf]
        %v471 = vld [vmem:[#allocation4 + $0xd8] sm:$0xff]
        %v472 = vld [vmem:[#allocation4 + $0xe0] sm:$0xf]
        %v473 = vld [vmem:[#allocation4 + $0xe4] sm:$0xff]
        %v474 = vld [vmem:[#allocation4 + $0xec] sm:$0xf]
        %v475 = vld [vmem:[#allocation4 + $0xf0] sm:$0xff]
        %v476 = vld [vmem:[#allocation4 + $0xf8] sm:$0xf]
        %v477 = vld [vmem:[#allocation4 + $0xfc] sm:$0xff]
        %v478 = vld [vmem:[#allocation4 + $0x104] sm:$0xf]
        %v479 = vld [vmem:[#allocation4 + $0x108] sm:$0xff]
        %v480 = vld [vmem:[#allocation4 + $0x110] sm:$0xf]
        %v481 = vld [vmem:[#allocation4 + $0x114] sm:$0xff]
        %v482 = vld [vmem:[#allocation4 + $0x11c] sm:$0xf]
        %v483 = vld [vmem:[#allocation4 + $0x120] sm:$0xff]
        %v484 = vld [vmem:[#allocation4 + $0x128] sm:$0xf]
        %v485 = vld [vmem:[#allocation4 + $0x12c] sm:$0xff]
        %v486 = vld [vmem:[#allocation4 + $0x134] sm:$0xf]
        %v487 = vld [vmem:[#allocation4 + $0x138] sm:$0xff]
        %v488 = vld [vmem:[#allocation4 + $0x140] sm:$0xf]
        %v489 = vld [vmem:[#allocation4 + $0x144] sm:$0xff]
        %v490 = vld [vmem:[#allocation4 + $0x14c] sm:$0xf]
        %v491 = vld [vmem:[#allocation4 + $0x150] sm:$0xff]
        %v492 = vld [vmem:[#allocation4 + $0x158] sm:$0xf]
        %v493 = vld [vmem:[#allocation4 + $0x15c] sm:$0xff]
        %v494 = vld [vmem:[#allocation4 + $0x164] sm:$0xf]
        %v495 = vld [vmem:[#allocation4 + $0x168] sm:$0xff]
        %v496 = vld [vmem:[#allocation4 + $0x170] sm:$0xf]
        %v497 = vld [vmem:[#allocation4 + $0x174] sm:$0xff]
        %v498 = vld [vmem:[#allocation4 + $0x17c] sm:$0xf]
        %v499 = vld [vmem:[#allocation4 + $0x180] sm:$0xff]
        %v500 = vld [vmem:[#allocation4 + $0x188] sm:$0xf]
        %v501 = vld [vmem:[#allocation4 + $0x18c] sm:$0xff]
        %v502 = vld [vmem:[#allocation4 + $0x194] sm:$0xf]
        %v503 = vld [vmem:[#allocation4 + $0x198] sm:$0xff]
        %v504 = vld [vmem:[#allocation4 + $0x1a0] sm:$0xf]
        %v505 = vld [vmem:[#allocation4 + $0x1a4] sm:$0xff]
        %v506 = vld [vmem:[#allocation4 + $0x1ac] sm:$0xf]
        %v507 = vld [vmem:[#allocation4 + $0x1b0] sm:$0xff]
        %v508 = vld [vmem:[#allocation4 + $0x1b8] sm:$0xf]
        %v509 = vld [vmem:[#allocation4 + $0x1bc] sm:$0xff]
        %v510 = vld [vmem:[#allocation4 + $0x1c4] sm:$0xf]
        %v511 = vld [vmem:[#allocation4 + $0x1c8] sm:$0xff]
        %v512 = vld [vmem:[#allocation4 + $0x1d0] sm:$0xf]
        %v513 = vld [vmem:[#allocation4 + $0x1d4] sm:$0xff]
        %v514 = vld [vmem:[#allocation4 + $0x1dc] sm:$0xf]
        %v515 = vld [vmem:[#allocation4 + $0x1e0] sm:$0xff]
        %v516 = vld [vmem:[#allocation4 + $0x1e8] sm:$0xf]
        %v517 = vld [vmem:[#allocation4 + $0x1ec] sm:$0xff]
        %v518 = vld [vmem:[#allocation4 + $0x1f4] sm:$0xf]
        %v519 = vld [vmem:[#allocation4 + $0x1f8] sm:$0xff]
        %v520 = vld [vmem:[#allocation4 + $0x200] sm:$0xf]
        %v521 = vld [vmem:[#allocation4 + $0x204] sm:$0xff]
        %v522 = vld [vmem:[#allocation4 + $0x20c] sm:$0xf]
        %v523 = vld [vmem:[#allocation4 + $0x210] sm:$0xff]
        %v524 = vld [vmem:[#allocation4 + $0x218] sm:$0xf]
        %v525 = vld [vmem:[#allocation4 + $0x21c] sm:$0xff]
        %v526 = vld [vmem:[#allocation4 + $0x224] sm:$0xf]
        %v527 = vld [vmem:[#allocation4 + $0x228] sm:$0xff]
        %v528 = vld [vmem:[#allocation4 + $0x230] sm:$0xf]
        %v529 = vld [vmem:[#allocation4 + $0x234] sm:$0xff]
        %v530 = vld [vmem:[#allocation4 + $0x23c] sm:$0xf]
        %v531 = vld [vmem:[#allocation4 + $0x240] sm:$0xff]
        %v532 = vld [vmem:[#allocation4 + $0x248] sm:$0xf]
        %v533 = vld [vmem:[#allocation4 + $0x24c] sm:$0xff]
        %v534 = vld [vmem:[#allocation4 + $0x254] sm:$0xf]
        %v535 = vld [vmem:[#allocation4 + $0x258] sm:$0xff]
        %v536 = vld [vmem:[#allocation4 + $0x260] sm:$0xf]
        %v537 = vld [vmem:[#allocation4 + $0x264] sm:$0xff]
        %v538 = vld [vmem:[#allocation4 + $0x26c] sm:$0xf]
        %v539 = vld [vmem:[#allocation4 + $0x270] sm:$0xff]
        %v540 = vld [vmem:[#allocation4 + $0x278] sm:$0xf]
        %v541 = vld [vmem:[#allocation4 + $0x27c] sm:$0xff]
        %v542 = vld [vmem:[#allocation4 + $0x284] sm:$0xf]
        %v543 = vld [vmem:[#allocation4 + $0x288] sm:$0xff]
        %v544 = vld [vmem:[#allocation4 + $0x290] sm:$0xf]
        %v545 = vld [vmem:[#allocation4 + $0x294] sm:$0xff]
        %v546 = vld [vmem:[#allocation4 + $0x29c] sm:$0xf]
        %v547 = vld [vmem:[#allocation4 + $0x2a0] sm:$0xff]
        %v548 = vld [vmem:[#allocation4 + $0x2a8] sm:$0xf]
        %v549 = vld [vmem:[#allocation4 + $0x2ac] sm:$0xff]
        %v550 = vld [vmem:[#allocation4 + $0x2b4] sm:$0xf]
        %v551 = vld [vmem:[#allocation4 + $0x2b8] sm:$0xff]
        %v552 = vld [vmem:[#allocation4 + $0x2c0] sm:$0xf]
        %v553 = vld [vmem:[#allocation4 + $0x2c4] sm:$0xff]
        %v554 = vld [vmem:[#allocation4 + $0x2cc] sm:$0xf]
        %v555 = vld [vmem:[#allocation4 + $0x2d0] sm:$0xff]
        %v556 = vld [vmem:[#allocation4 + $0x2d8] sm:$0xf]
        %v557 = vld [vmem:[#allocation4 + $0x2dc] sm:$0xff]
        %v558 = vld [vmem:[#allocation4 + $0x2e4] sm:$0xf]
        %v559 = vld [vmem:[#allocation4 + $0x2e8] sm:$0xff]
        %v560 = vld [vmem:[#allocation4 + $0x2f0] sm:$0xf]
        %v561 = vld [vmem:[#allocation4 + $0x2f4] sm:$0xff]
        %v562 = vld [vmem:[#allocation4 + $0x2fc] sm:$0xf]
        %v563 = vld [vmem:[#allocation4 + $0x300] sm:$0xff]
        %v564 = vld [vmem:[#allocation4 + $0x308] sm:$0xf]
        %v565 = vld [vmem:[#allocation4 + $0x30c] sm:$0xff]
        %v566 = vld [vmem:[#allocation4 + $0x314] sm:$0xf]
        %v567 = vld [vmem:[#allocation4 + $0x318] sm:$0xff]
        %v568 = vld [vmem:[#allocation4 + $0x320] sm:$0xf]
        %v569 = vld [vmem:[#allocation4 + $0x324] sm:$0xff]
        %v570 = vld [vmem:[#allocation4 + $0x32c] sm:$0xf]
        %v571 = vld [vmem:[#allocation4 + $0x330] sm:$0xff]
        %v572 = vld [vmem:[#allocation4 + $0x338] sm:$0xf]
        %v573 = vld [vmem:[#allocation4 + $0x33c] sm:$0xff]
        %v574 = vld [vmem:[#allocation4 + $0x344] sm:$0xf]
        %v575 = vld [vmem:[#allocation4 + $0x348] sm:$0xff]
        %v576 = vld [vmem:[#allocation4 + $0x350] sm:$0xf]
        %v577 = vld [vmem:[#allocation4 + $0x354] sm:$0xff]
        %v578 = vld [vmem:[#allocation4 + $0x35c] sm:$0xf]
        %v579 = vld [vmem:[#allocation4 + $0x360] sm:$0xff]
        %v580 = vld [vmem:[#allocation4 + $0x368] sm:$0xf]
        %v581 = vld [vmem:[#allocation4 + $0x36c] sm:$0xff]
        %v582 = vld [vmem:[#allocation4 + $0x374] sm:$0xf]
        %v583 = vld [vmem:[#allocation4 + $0x378] sm:$0xff]
        %v584 = vld [vmem:[#allocation4 + $0x380] sm:$0xf]
        %v585 = vld [vmem:[#allocation4 + $0x384] sm:$0xff]
        %v586 = vld [vmem:[#allocation4 + $0x38c] sm:$0xf]
        %v587 = vld [vmem:[#allocation4 + $0x390] sm:$0xff]
        %v588 = vld [vmem:[#allocation4 + $0x398] sm:$0xf]
        %v589 = vld [vmem:[#allocation4 + $0x39c] sm:$0xff]
        %v590 = vld [vmem:[#allocation4 + $0x3a4] sm:$0xf]
        %v591 = vld [vmem:[#allocation4 + $0x3a8] sm:$0xff]
        %v592 = vld [vmem:[#allocation4 + $0x3b0] sm:$0xf]
        %v593 = vld [vmem:[#allocation4 + $0x3b4] sm:$0xff]
        %v594 = vld [vmem:[#allocation4 + $0x3bc] sm:$0xf]
        %v595 = vld [vmem:[#allocation4 + $0x3c0] sm:$0xff]
        %v596 = vld [vmem:[#allocation4 + $0x3c8] sm:$0xf]
        %v597 = vld [vmem:[#allocation4 + $0x3cc] sm:$0xff]
        %v598 = vld [vmem:[#allocation4 + $0x3d4] sm:$0xf]
        %v599 = vld [vmem:[#allocation4 + $0x3d8] sm:$0xff]
        %v600 = vld [vmem:[#allocation4 + $0x3e0] sm:$0xf]
        %v601 = vld [vmem:[#allocation4 + $0x3e4] sm:$0xff]
        %v602 = vld [vmem:[#allocation4 + $0x3ec] sm:$0xf]
        %v603 = vld [vmem:[#allocation4 + $0x3f0] sm:$0xff]
        %v604 = vld [vmem:[#allocation4 + $0x3f8] sm:$0xf]
        %v605 = vld [vmem:[#allocation4 + $0x3fc] sm:$0xff]
        %v606 = vld [vmem:[#allocation4 + $0x404] sm:$0xf]
        %v607 = vld [vmem:[#allocation4 + $0x408] sm:$0xff]
        %v608 = vld [vmem:[#allocation4 + $0x410] sm:$0xf]
        %v609 = vld [vmem:[#allocation4 + $0x414] sm:$0xff]
        %v610 = vld [vmem:[#allocation4 + $0x41c] sm:$0xf]
        %v611 = vld [vmem:[#allocation4 + $0x420] sm:$0xff]
        %v612 = vld [vmem:[#allocation4 + $0x428] sm:$0xf]
        %v613 = vld [vmem:[#allocation4 + $0x42c] sm:$0xff]
        %v614 = vld [vmem:[#allocation4 + $0x434] sm:$0xf]
        %v615 = vld [vmem:[#allocation4 + $0x438] sm:$0xff]
        %v616 = vld [vmem:[#allocation4 + $0x440] sm:$0xf]
        %v617 = vld [vmem:[#allocation4 + $0x444] sm:$0xff]
        %v618 = vld [vmem:[#allocation4 + $0x44c] sm:$0xf]
        %v619 = vld [vmem:[#allocation4 + $0x450] sm:$0xff]
        %v620 = vld [vmem:[#allocation4 + $0x458] sm:$0xf]
        %v621 = vld [vmem:[#allocation4 + $0x45c] sm:$0xff]
        %v622 = vld [vmem:[#allocation4 + $0x464] sm:$0xf]
        %v623 = vld [vmem:[#allocation4 + $0x468] sm:$0xff]
        %v624 = vld [vmem:[#allocation4 + $0x470] sm:$0xf]
        %v625 = vld [vmem:[#allocation4 + $0x474] sm:$0xff]
        %v626 = vld [vmem:[#allocation4 + $0x47c] sm:$0xf]
        %v639 = vunpack.c.l.b16 %v423
        %v640 = vunpack.c.h.b16 %v423
        %v641 = vunpack.c.l.b16 %v424
        %v642 = vunpack.c.h.b16 %v424
        %v643 = vunpack.c.l.b16 %v425
        %v644 = vunpack.c.h.b16 %v425
        %v645 = vunpack.c.l.b16 %v426
        %v646 = vunpack.c.h.b16 %v426
        %v647 = vunpack.c.l.b16 %v427
        %v648 = vunpack.c.h.b16 %v427
        %v649 = vunpack.c.l.b16 %v428
        %v650 = vunpack.c.h.b16 %v428
        %v651 = vunpack.c.l.b16 %v429
        %v652 = vunpack.c.h.b16 %v429
        %v653 = vunpack.c.l.b16 %v430
        %v654 = vunpack.c.h.b16 %v430
        %v655 = vunpack.c.l.b16 %v431
        %v656 = vunpack.c.h.b16 %v431
        %v657 = vunpack.c.l.b16 %v432
        %v658 = vunpack.c.h.b16 %v432
        %v659 = vunpack.c.l.b16 %v433
        %v660 = vunpack.c.h.b16 %v433
        %v661 = vunpack.c.l.b16 %v434
        %v662 = vunpack.c.h.b16 %v434
        %v663 = vpack.c.b16 %v645, %v639
        %v664 = vpack.c.b16 %v646, %v640
        %v665 = vpack.c.b16 %v647, %v641
        %v666 = vpack.c.b16 %v648, %v642
        %v667 = vpack.c.b16 %v649, %v643
        %v668 = vpack.c.b16 %v650, %v644
        %v669 = vpack.c.b16 %v657, %v651
        %v670 = vpack.c.b16 %v658, %v652
        %v671 = vpack.c.b16 %v659, %v653
        %v672 = vpack.c.b16 %v660, %v654
        %v673 = vpack.c.b16 %v661, %v655
        %v674 = vpack.c.b16 %v662, %v656
        %v879 = vunpack.c.l.b16 %v435
        %v880 = vunpack.c.h.b16 %v435
        %v881 = vunpack.c.l.b16 %v436
        %v882 = vunpack.c.l.b16 %v437
        %v883 = vunpack.c.h.b16 %v437
        %v884 = vunpack.c.l.b16 %v438
        %v885 = vunpack.c.l.b16 %v439
        %v886 = vunpack.c.h.b16 %v439
        %v887 = vunpack.c.l.b16 %v440
        %v888 = vunpack.c.l.b16 %v441
        %v889 = vunpack.c.h.b16 %v441
        %v890 = vunpack.c.l.b16 %v442
        %v891 = vunpack.c.l.b16 %v443
        %v892 = vunpack.c.h.b16 %v443
        %v893 = vunpack.c.l.b16 %v444
        %v894 = vunpack.c.l.b16 %v445
        %v895 = vunpack.c.h.b16 %v445
        %v896 = vunpack.c.l.b16 %v446
        %v897 = vunpack.c.l.b16 %v447
        %v898 = vunpack.c.h.b16 %v447
        %v899 = vunpack.c.l.b16 %v448
        %v900 = vunpack.c.l.b16 %v449
        %v901 = vunpack.c.h.b16 %v449
        %v902 = vunpack.c.l.b16 %v450
        %v903 = vunpack.c.l.b16 %v451
        %v904 = vunpack.c.h.b16 %v451
        %v905 = vunpack.c.l.b16 %v452
        %v906 = vunpack.c.l.b16 %v453
        %v907 = vunpack.c.h.b16 %v453
        %v908 = vunpack.c.l.b16 %v454
        %v909 = vunpack.c.l.b16 %v455
        %v910 = vunpack.c.h.b16 %v455
        %v911 = vunpack.c.l.b16 %v456
        %v912 = vunpack.c.l.b16 %v457
        %v913 = vunpack.c.h.b16 %v457
        %v914 = vunpack.c.l.b16 %v458
        %v915 = vunpack.c.l.b16 %v459
        %v916 = vunpack.c.h.b16 %v459
        %v917 = vunpack.c.l.b16 %v460
        %v918 = vunpack.c.l.b16 %v461
        %v919 = vunpack.c.h.b16 %v461
        %v920 = vunpack.c.l.b16 %v462
        %v921 = vunpack.c.l.b16 %v463
        %v922 = vunpack.c.h.b16 %v463
        %v923 = vunpack.c.l.b16 %v464
        %v924 = vunpack.c.l.b16 %v465
        %v925 = vunpack.c.h.b16 %v465
        %v926 = vunpack.c.l.b16 %v466
        %v927 = vunpack.c.l.b16 %v467
        %v928 = vunpack.c.h.b16 %v467
        %v929 = vunpack.c.l.b16 %v468
        %v930 = vunpack.c.l.b16 %v469
        %v931 = vunpack.c.h.b16 %v469
        %v932 = vunpack.c.l.b16 %v470
        %v933 = vunpack.c.l.b16 %v471
        %v934 = vunpack.c.h.b16 %v471
        %v935 = vunpack.c.l.b16 %v472
        %v936 = vunpack.c.l.b16 %v473
        %v937 = vunpack.c.h.b16 %v473
        %v938 = vunpack.c.l.b16 %v474
        %v939 = vunpack.c.l.b16 %v475
        %v940 = vunpack.c.h.b16 %v475
        %v941 = vunpack.c.l.b16 %v476
        %v942 = vunpack.c.l.b16 %v477
        %v943 = vunpack.c.h.b16 %v477
        %v944 = vunpack.c.l.b16 %v478
        %v945 = vunpack.c.l.b16 %v479
        %v946 = vunpack.c.h.b16 %v479
        %v947 = vunpack.c.l.b16 %v480
        %v948 = vunpack.c.l.b16 %v481
        %v949 = vunpack.c.h.b16 %v481
        %v950 = vunpack.c.l.b16 %v482
        %v951 = vunpack.c.l.b16 %v483
        %v952 = vunpack.c.h.b16 %v483
        %v953 = vunpack.c.l.b16 %v484
        %v954 = vunpack.c.l.b16 %v485
        %v955 = vunpack.c.h.b16 %v485
        %v956 = vunpack.c.l.b16 %v486
        %v957 = vunpack.c.l.b16 %v487
        %v958 = vunpack.c.h.b16 %v487
        %v959 = vunpack.c.l.b16 %v488
        %v960 = vunpack.c.l.b16 %v489
        %v961 = vunpack.c.h.b16 %v489
        %v962 = vunpack.c.l.b16 %v490
        %v963 = vunpack.c.l.b16 %v491
        %v964 = vunpack.c.h.b16 %v491
        %v965 = vunpack.c.l.b16 %v492
        %v966 = vunpack.c.l.b16 %v493
        %v967 = vunpack.c.h.b16 %v493
        %v968 = vunpack.c.l.b16 %v494
        %v969 = vunpack.c.l.b16 %v495
        %v970 = vunpack.c.h.b16 %v495
        %v971 = vunpack.c.l.b16 %v496
        %v972 = vunpack.c.l.b16 %v497
        %v973 = vunpack.c.h.b16 %v497
        %v974 = vunpack.c.l.b16 %v498
        %v975 = vunpack.c.l.b16 %v499
        %v976 = vunpack.c.h.b16 %v499
        %v977 = vunpack.c.l.b16 %v500
        %v978 = vunpack.c.l.b16 %v501
        %v979 = vunpack.c.h.b16 %v501
        %v980 = vunpack.c.l.b16 %v502
        %v981 = vunpack.c.l.b16 %v503
        %v982 = vunpack.c.h.b16 %v503
        %v983 = vunpack.c.l.b16 %v504
        %v984 = vunpack.c.l.b16 %v505
        %v985 = vunpack.c.h.b16 %v505
        %v986 = vunpack.c.l.b16 %v506
        %v987 = vunpack.c.l.b16 %v507
        %v988 = vunpack.c.h.b16 %v507
        %v989 = vunpack.c.l.b16 %v508
        %v990 = vunpack.c.l.b16 %v509
        %v991 = vunpack.c.h.b16 %v509
        %v992 = vunpack.c.l.b16 %v510
        %v993 = vunpack.c.l.b16 %v511
        %v994 = vunpack.c.h.b16 %v511
        %v995 = vunpack.c.l.b16 %v512
        %v996 = vunpack.c.l.b16 %v513
        %v997 = vunpack.c.h.b16 %v513
        %v998 = vunpack.c.l.b16 %v514
        %v999 = vunpack.c.l.b16 %v515
        %v1000 = vunpack.c.h.b16 %v515
        %v1001 = vunpack.c.l.b16 %v516
        %v1002 = vunpack.c.l.b16 %v517
        %v1003 = vunpack.c.h.b16 %v517
        %v1004 = vunpack.c.l.b16 %v518
        %v1005 = vunpack.c.l.b16 %v519
        %v1006 = vunpack.c.h.b16 %v519
        %v1007 = vunpack.c.l.b16 %v520
        %v1008 = vunpack.c.l.b16 %v521
        %v1009 = vunpack.c.h.b16 %v521
        %v1010 = vunpack.c.l.b16 %v522
        %v1011 = vunpack.c.l.b16 %v523
        %v1012 = vunpack.c.h.b16 %v523
        %v1013 = vunpack.c.l.b16 %v524
        %v1014 = vunpack.c.l.b16 %v525
        %v1015 = vunpack.c.h.b16 %v525
        %v1016 = vunpack.c.l.b16 %v526
        %v1017 = vunpack.c.l.b16 %v527
        %v1018 = vunpack.c.h.b16 %v527
        %v1019 = vunpack.c.l.b16 %v528
        %v1020 = vunpack.c.l.b16 %v529
        %v1021 = vunpack.c.h.b16 %v529
        %v1022 = vunpack.c.l.b16 %v530
        %v1023 = vunpack.c.l.b16 %v531
        %v1024 = vunpack.c.h.b16 %v531
        %v1025 = vunpack.c.l.b16 %v532
        %v1026 = vunpack.c.l.b16 %v533
        %v1027 = vunpack.c.h.b16 %v533
        %v1028 = vunpack.c.l.b16 %v534
        %v1029 = vunpack.c.l.b16 %v535
        %v1030 = vunpack.c.h.b16 %v535
        %v1031 = vunpack.c.l.b16 %v536
        %v1032 = vunpack.c.l.b16 %v537
        %v1033 = vunpack.c.h.b16 %v537
        %v1034 = vunpack.c.l.b16 %v538
        %v1035 = vunpack.c.l.b16 %v539
        %v1036 = vunpack.c.h.b16 %v539
        %v1037 = vunpack.c.l.b16 %v540
        %v1038 = vunpack.c.l.b16 %v541
        %v1039 = vunpack.c.h.b16 %v541
        %v1040 = vunpack.c.l.b16 %v542
        %v1041 = vunpack.c.l.b16 %v543
        %v1042 = vunpack.c.h.b16 %v543
        %v1043 = vunpack.c.l.b16 %v544
        %v1044 = vunpack.c.l.b16 %v545
        %v1045 = vunpack.c.h.b16 %v545
        %v1046 = vunpack.c.l.b16 %v546
        %v1047 = vunpack.c.l.b16 %v547
        %v1048 = vunpack.c.h.b16 %v547
        %v1049 = vunpack.c.l.b16 %v548
        %v1050 = vunpack.c.l.b16 %v549
        %v1051 = vunpack.c.h.b16 %v549
        %v1052 = vunpack.c.l.b16 %v550
        %v1053 = vunpack.c.l.b16 %v551
        %v1054 = vunpack.c.h.b16 %v551
        %v1055 = vunpack.c.l.b16 %v552
        %v1056 = vunpack.c.l.b16 %v553
        %v1057 = vunpack.c.h.b16 %v553
        %v1058 = vunpack.c.l.b16 %v554
        %v1059 = vunpack.c.l.b16 %v555
        %v1060 = vunpack.c.h.b16 %v555
        %v1061 = vunpack.c.l.b16 %v556
        %v1062 = vunpack.c.l.b16 %v557
        %v1063 = vunpack.c.h.b16 %v557
        %v1064 = vunpack.c.l.b16 %v558
        %v1065 = vunpack.c.l.b16 %v559
        %v1066 = vunpack.c.h.b16 %v559
        %v1067 = vunpack.c.l.b16 %v560
        %v1068 = vunpack.c.l.b16 %v561
        %v1069 = vunpack.c.h.b16 %v561
        %v1070 = vunpack.c.l.b16 %v562
        %v1071 = vunpack.c.l.b16 %v563
        %v1072 = vunpack.c.h.b16 %v563
        %v1073 = vunpack.c.l.b16 %v564
        %v1074 = vunpack.c.l.b16 %v565
        %v1075 = vunpack.c.h.b16 %v565
        %v1076 = vunpack.c.l.b16 %v566
        %v1077 = vunpack.c.l.b16 %v567
        %v1078 = vunpack.c.h.b16 %v567
        %v1079 = vunpack.c.l.b16 %v568
        %v1080 = vunpack.c.l.b16 %v569
        %v1081 = vunpack.c.h.b16 %v569
        %v1082 = vunpack.c.l.b16 %v570
        %v1083 = vunpack.c.l.b16 %v571
        %v1084 = vunpack.c.h.b16 %v571
        %v1085 = vunpack.c.l.b16 %v572
        %v1086 = vunpack.c.l.b16 %v573
        %v1087 = vunpack.c.h.b16 %v573
        %v1088 = vunpack.c.l.b16 %v574
        %v1089 = vunpack.c.l.b16 %v575
        %v1090 = vunpack.c.h.b16 %v575
        %v1091 = vunpack.c.l.b16 %v576
        %v1092 = vunpack.c.l.b16 %v577
        %v1093 = vunpack.c.h.b16 %v577
        %v1094 = vunpack.c.l.b16 %v578
        %v1095 = vunpack.c.l.b16 %v579
        %v1096 = vunpack.c.h.b16 %v579
        %v1097 = vunpack.c.l.b16 %v580
        %v1098 = vunpack.c.l.b16 %v581
        %v1099 = vunpack.c.h.b16 %v581
        %v1100 = vunpack.c.l.b16 %v582
        %v1101 = vunpack.c.l.b16 %v583
        %v1102 = vunpack.c.h.b16 %v583
        %v1103 = vunpack.c.l.b16 %v584
        %v1104 = vunpack.c.l.b16 %v585
        %v1105 = vunpack.c.h.b16 %v585
        %v1106 = vunpack.c.l.b16 %v586
        %v1107 = vunpack.c.l.b16 %v587
        %v1108 = vunpack.c.h.b16 %v587
        %v1109 = vunpack.c.l.b16 %v588
        %v1110 = vunpack.c.l.b16 %v589
        %v1111 = vunpack.c.h.b16 %v589
        %v1112 = vunpack.c.l.b16 %v590
        %v1113 = vunpack.c.l.b16 %v591
        %v1114 = vunpack.c.h.b16 %v591
        %v1115 = vunpack.c.l.b16 %v592
        %v1116 = vunpack.c.l.b16 %v593
        %v1117 = vunpack.c.h.b16 %v593
        %v1118 = vunpack.c.l.b16 %v594
        %v1119 = vunpack.c.l.b16 %v595
        %v1120 = vunpack.c.h.b16 %v595
        %v1121 = vunpack.c.l.b16 %v596
        %v1122 = vunpack.c.l.b16 %v597
        %v1123 = vunpack.c.h.b16 %v597
        %v1124 = vunpack.c.l.b16 %v598
        %v1125 = vunpack.c.l.b16 %v599
        %v1126 = vunpack.c.h.b16 %v599
        %v1127 = vunpack.c.l.b16 %v600
        %v1128 = vunpack.c.l.b16 %v601
        %v1129 = vunpack.c.h.b16 %v601
        %v1130 = vunpack.c.l.b16 %v602
        %v1131 = vunpack.c.l.b16 %v603
        %v1132 = vunpack.c.h.b16 %v603
        %v1133 = vunpack.c.l.b16 %v604
        %v1134 = vunpack.c.l.b16 %v605
        %v1135 = vunpack.c.h.b16 %v605
        %v1136 = vunpack.c.l.b16 %v606
        %v1137 = vunpack.c.l.b16 %v607
        %v1138 = vunpack.c.h.b16 %v607
        %v1139 = vunpack.c.l.b16 %v608
        %v1140 = vunpack.c.l.b16 %v609
        %v1141 = vunpack.c.h.b16 %v609
        %v1142 = vunpack.c.l.b16 %v610
        %v1143 = vunpack.c.l.b16 %v611
        %v1144 = vunpack.c.h.b16 %v611
        %v1145 = vunpack.c.l.b16 %v612
        %v1146 = vunpack.c.l.b16 %v613
        %v1147 = vunpack.c.h.b16 %v613
        %v1148 = vunpack.c.l.b16 %v614
        %v1149 = vunpack.c.l.b16 %v615
        %v1150 = vunpack.c.h.b16 %v615
        %v1151 = vunpack.c.l.b16 %v616
        %v1152 = vunpack.c.l.b16 %v617
        %v1153 = vunpack.c.h.b16 %v617
        %v1154 = vunpack.c.l.b16 %v618
        %v1155 = vunpack.c.l.b16 %v619
        %v1156 = vunpack.c.h.b16 %v619
        %v1157 = vunpack.c.l.b16 %v620
        %v1158 = vunpack.c.l.b16 %v621
        %v1159 = vunpack.c.h.b16 %v621
        %v1160 = vunpack.c.l.b16 %v622
        %v1161 = vunpack.c.l.b16 %v623
        %v1162 = vunpack.c.h.b16 %v623
        %v1163 = vunpack.c.l.b16 %v624
        %v1164 = vunpack.c.l.b16 %v625
        %v1165 = vunpack.c.h.b16 %v625
        %v1166 = vunpack.c.l.b16 %v626
        %v1167 = vpack.c.b16 %v882, %v879
        %v1168 = vpack.c.b16 %v883, %v880
        %v1169 = vpack.c.b16 %v884, %v881
        %v1170 = vpack.c.b16 %v888, %v885
        %v1171 = vpack.c.b16 %v889, %v886
        %v1172 = vpack.c.b16 %v890, %v887
        %v1173 = vpack.c.b16 %v894, %v891
        %v1174 = vpack.c.b16 %v895, %v892
        %v1175 = vpack.c.b16 %v896, %v893
        %v1176 = vpack.c.b16 %v900, %v897
        %v1177 = vpack.c.b16 %v901, %v898
        %v1178 = vpack.c.b16 %v902, %v899
        %v1179 = vpack.c.b16 %v906, %v903
        %v1180 = vpack.c.b16 %v907, %v904
        %v1181 = vpack.c.b16 %v908, %v905
        %v1182 = vpack.c.b16 %v912, %v909
        %v1183 = vpack.c.b16 %v913, %v910
        %v1184 = vpack.c.b16 %v914, %v911
        %v1185 = vpack.c.b16 %v918, %v915
        %v1186 = vpack.c.b16 %v919, %v916
        %v1187 = vpack.c.b16 %v920, %v917
        %v1188 = vpack.c.b16 %v924, %v921
        %v1189 = vpack.c.b16 %v925, %v922
        %v1190 = vpack.c.b16 %v926, %v923
        %v1191 = vpack.c.b16 %v930, %v927
        %v1192 = vpack.c.b16 %v931, %v928
        %v1193 = vpack.c.b16 %v932, %v929
        %v1194 = vpack.c.b16 %v936, %v933
        %v1195 = vpack.c.b16 %v937, %v934
        %v1196 = vpack.c.b16 %v938, %v935
        %v1197 = vpack.c.b16 %v942, %v939
        %v1198 = vpack.c.b16 %v943, %v940
        %v1199 = vpack.c.b16 %v944, %v941
        %v1200 = vpack.c.b16 %v948, %v945
        %v1201 = vpack.c.b16 %v949, %v946
        %v1202 = vpack.c.b16 %v950, %v947
        %v1203 = vpack.c.b16 %v954, %v951
        %v1204 = vpack.c.b16 %v955, %v952
        %v1205 = vpack.c.b16 %v956, %v953
        %v1206 = vpack.c.b16 %v960, %v957
        %v1207 = vpack.c.b16 %v961, %v958
        %v1208 = vpack.c.b16 %v962, %v959
        %v1209 = vpack.c.b16 %v966, %v963
        %v1210 = vpack.c.b16 %v967, %v964
        %v1211 = vpack.c.b16 %v968, %v965
        %v1212 = vpack.c.b16 %v972, %v969
        %v1213 = vpack.c.b16 %v973, %v970
        %v1214 = vpack.c.b16 %v974, %v971
        %v1215 = vpack.c.b16 %v978, %v975
        %v1216 = vpack.c.b16 %v979, %v976
        %v1217 = vpack.c.b16 %v980, %v977
        %v1218 = vpack.c.b16 %v984, %v981
        %v1219 = vpack.c.b16 %v985, %v982
        %v1220 = vpack.c.b16 %v986, %v983
        %v1221 = vpack.c.b16 %v990, %v987
        %v1222 = vpack.c.b16 %v991, %v988
        %v1223 = vpack.c.b16 %v992, %v989
        %v1224 = vpack.c.b16 %v996, %v993
        %v1225 = vpack.c.b16 %v997, %v994
        %v1226 = vpack.c.b16 %v998, %v995
        %v1227 = vpack.c.b16 %v1002, %v999
        %v1228 = vpack.c.b16 %v1003, %v1000
        %v1229 = vpack.c.b16 %v1004, %v1001
        %v1230 = vpack.c.b16 %v1008, %v1005
        %v1231 = vpack.c.b16 %v1009, %v1006
        %v1232 = vpack.c.b16 %v1010, %v1007
        %v1233 = vpack.c.b16 %v1014, %v1011
        %v1234 = vpack.c.b16 %v1015, %v1012
        %v1235 = vpack.c.b16 %v1016, %v1013
        %v1236 = vpack.c.b16 %v1020, %v1017
        %v1237 = vpack.c.b16 %v1021, %v1018
        %v1238 = vpack.c.b16 %v1022, %v1019
        %v1239 = vpack.c.b16 %v1026, %v1023
        %v1240 = vpack.c.b16 %v1027, %v1024
        %v1241 = vpack.c.b16 %v1028, %v1025
        %v1242 = vpack.c.b16 %v1032, %v1029
        %v1243 = vpack.c.b16 %v1033, %v1030
        %v1244 = vpack.c.b16 %v1034, %v1031
        %v1245 = vpack.c.b16 %v1038, %v1035
        %v1246 = vpack.c.b16 %v1039, %v1036
        %v1247 = vpack.c.b16 %v1040, %v1037
        %v1248 = vpack.c.b16 %v1044, %v1041
        %v1249 = vpack.c.b16 %v1045, %v1042
        %v1250 = vpack.c.b16 %v1046, %v1043
        %v1251 = vpack.c.b16 %v1050, %v1047
        %v1252 = vpack.c.b16 %v1051, %v1048
        %v1253 = vpack.c.b16 %v1052, %v1049
        %v1254 = vpack.c.b16 %v1056, %v1053
        %v1255 = vpack.c.b16 %v1057, %v1054
        %v1256 = vpack.c.b16 %v1058, %v1055
        %v1257 = vpack.c.b16 %v1062, %v1059
        %v1258 = vpack.c.b16 %v1063, %v1060
        %v1259 = vpack.c.b16 %v1064, %v1061
        %v1260 = vpack.c.b16 %v1068, %v1065
        %v1261 = vpack.c.b16 %v1069, %v1066
        %v1262 = vpack.c.b16 %v1070, %v1067
        %v1263 = vpack.c.b16 %v1074, %v1071
        %v1264 = vpack.c.b16 %v1075, %v1072
        %v1265 = vpack.c.b16 %v1076, %v1073
        %v1266 = vpack.c.b16 %v1080, %v1077
        %v1267 = vpack.c.b16 %v1081, %v1078
        %v1268 = vpack.c.b16 %v1082, %v1079
        %v1269 = vpack.c.b16 %v1086, %v1083
        %v1270 = vpack.c.b16 %v1087, %v1084
        %v1271 = vpack.c.b16 %v1088, %v1085
        %v1272 = vpack.c.b16 %v1092, %v1089
        %v1273 = vpack.c.b16 %v1093, %v1090
        %v1274 = vpack.c.b16 %v1094, %v1091
        %v1275 = vpack.c.b16 %v1098, %v1095
        %v1276 = vpack.c.b16 %v1099, %v1096
        %v1277 = vpack.c.b16 %v1100, %v1097
        %v1278 = vpack.c.b16 %v1104, %v1101
        %v1279 = vpack.c.b16 %v1105, %v1102
        %v1280 = vpack.c.b16 %v1106, %v1103
        %v1281 = vpack.c.b16 %v1110, %v1107
        %v1282 = vpack.c.b16 %v1111, %v1108
        %v1283 = vpack.c.b16 %v1112, %v1109
        %v1284 = vpack.c.b16 %v1116, %v1113
        %v1285 = vpack.c.b16 %v1117, %v1114
        %v1286 = vpack.c.b16 %v1118, %v1115
        %v1287 = vpack.c.b16 %v1122, %v1119
        %v1288 = vpack.c.b16 %v1123, %v1120
        %v1289 = vpack.c.b16 %v1124, %v1121
        %v1290 = vpack.c.b16 %v1128, %v1125
        %v1291 = vpack.c.b16 %v1129, %v1126
        %v1292 = vpack.c.b16 %v1130, %v1127
        %v1293 = vpack.c.b16 %v1134, %v1131
        %v1294 = vpack.c.b16 %v1135, %v1132
        %v1295 = vpack.c.b16 %v1136, %v1133
        %v1296 = vpack.c.b16 %v1140, %v1137
        %v1297 = vpack.c.b16 %v1141, %v1138
        %v1298 = vpack.c.b16 %v1142, %v1139
        %v1299 = vpack.c.b16 %v1146, %v1143
        %v1300 = vpack.c.b16 %v1147, %v1144
        %v1301 = vpack.c.b16 %v1148, %v1145
        %v1302 = vpack.c.b16 %v1152, %v1149
        %v1303 = vpack.c.b16 %v1153, %v1150
        %v1304 = vpack.c.b16 %v1154, %v1151
        %v1305 = vpack.c.b16 %v1158, %v1155
        %v1306 = vpack.c.b16 %v1159, %v1156
        %v1307 = vpack.c.b16 %v1160, %v1157
        %v1308 = vpack.c.b16 %v1164, %v1161
        %v1309 = vpack.c.b16 %v1165, %v1162
        %v1310 = vpack.c.b16 %v1166, %v1163
        %1455 = vmatpush.bf16.msra.mxu0 %v1188
        %1456 = vmatpush.bf16.msra.mxu0 %v1185
        %1457 = vmatpush.bf16.msra.mxu0 %v1182
        %1458 = vmatpush.bf16.msra.mxu0 %v1179
        %1459 = vmatpush.bf16.msra.mxu0 %v1176
        %1460 = vmatpush.bf16.msra.mxu0 %v1173
        %1461 = vmatpush.bf16.msra.mxu0 %v1170
        %1462 = vmatpush.bf16.msra.mxu0 %v1167
        %1463 = vmatmul.bf16.gmra.mxu0 %v663
        %v1464 = vpop.f32.mrf.mxu0
        %v1465 = vadd.f32 0.0, %v1464
        %v1466 = vpop.f32.mrf.mxu0
        %v1467 = vadd.f32 0.0, %v1466
        %1468 = vmatmul.bf16.gmra.mxu0 %v669
        %v1469 = vpop.f32.mrf.mxu0
        %v1470 = vadd.f32 0.0, %v1469
        %v1471 = vpop.f32.mrf.mxu0
        %v1472 = vadd.f32 0.0, %v1471
        %1473 = vdwg.mxu0
        %1474 = vmatpush.bf16.msra.mxu0 %v1212
        %1475 = vmatpush.bf16.msra.mxu0 %v1209
        %1476 = vmatpush.bf16.msra.mxu0 %v1206
        %1477 = vmatpush.bf16.msra.mxu0 %v1203
        %1478 = vmatpush.bf16.msra.mxu0 %v1200
        %1479 = vmatpush.bf16.msra.mxu0 %v1197
        %1480 = vmatpush.bf16.msra.mxu0 %v1194
        %1481 = vmatpush.bf16.msra.mxu0 %v1191
        %1482 = vmatmul.bf16.gmra.mxu0 %v664
        %v1483 = vpop.f32.mrf.mxu0
        %v1484 = vadd.f32 %v1465, %v1483
        %v1485 = vpop.f32.mrf.mxu0
        %v1486 = vadd.f32 %v1467, %v1485
        %1487 = vmatmul.bf16.gmra.mxu0 %v670
        %v1488 = vpop.f32.mrf.mxu0
        %v1489 = vadd.f32 %v1470, %v1488
        %v1490 = vpop.f32.mrf.mxu0
        %v1491 = vadd.f32 %v1472, %v1490
        %1492 = vdwg.mxu0
        %1493 = vmatpush.bf16.msra.mxu0 %v1236
        %1494 = vmatpush.bf16.msra.mxu0 %v1233
        %1495 = vmatpush.bf16.msra.mxu0 %v1230
        %1496 = vmatpush.bf16.msra.mxu0 %v1227
        %1497 = vmatpush.bf16.msra.mxu0 %v1224
        %1498 = vmatpush.bf16.msra.mxu0 %v1221
        %1499 = vmatpush.bf16.msra.mxu0 %v1218
        %1500 = vmatpush.bf16.msra.mxu0 %v1215
        %1501 = vmatmul.bf16.gmra.mxu0 %v665
        %v1502 = vpop.f32.mrf.mxu0
        %v1503 = vadd.f32 %v1484, %v1502
        %v1504 = vpop.f32.mrf.mxu0
        %v1505 = vadd.f32 %v1486, %v1504
        %1506 = vmatmul.bf16.gmra.mxu0 %v671
        %v1507 = vpop.f32.mrf.mxu0
        %v1508 = vadd.f32 %v1489, %v1507
        %v1509 = vpop.f32.mrf.mxu0
        %v1510 = vadd.f32 %v1491, %v1509
        %1511 = vdwg.mxu0
        %1512 = vmatpush.bf16.msra.mxu0 %v1260
        %1513 = vmatpush.bf16.msra.mxu0 %v1257
        %1514 = vmatpush.bf16.msra.mxu0 %v1254
        %1515 = vmatpush.bf16.msra.mxu0 %v1251
        %1516 = vmatpush.bf16.msra.mxu0 %v1248
        %1517 = vmatpush.bf16.msra.mxu0 %v1245
        %1518 = vmatpush.bf16.msra.mxu0 %v1242
        %1519 = vmatpush.bf16.msra.mxu0 %v1239
        %1520 = vmatmul.bf16.gmra.mxu0 %v666
        %v1521 = vpop.f32.mrf.mxu0
        %v1522 = vadd.f32 %v1503, %v1521
        %v1523 = vpop.f32.mrf.mxu0
        %v1524 = vadd.f32 %v1505, %v1523
        %1525 = vmatmul.bf16.gmra.mxu0 %v672
        %v1526 = vpop.f32.mrf.mxu0
        %v1527 = vadd.f32 %v1508, %v1526
        %v1528 = vpop.f32.mrf.mxu0
        %v1529 = vadd.f32 %v1510, %v1528
        %1530 = vdwg.mxu0
        %1531 = vmatpush.bf16.msra.mxu0 %v1284
        %1532 = vmatpush.bf16.msra.mxu0 %v1281
        %1533 = vmatpush.bf16.msra.mxu0 %v1278
        %1534 = vmatpush.bf16.msra.mxu0 %v1275
        %1535 = vmatpush.bf16.msra.mxu0 %v1272
        %1536 = vmatpush.bf16.msra.mxu0 %v1269
        %1537 = vmatpush.bf16.msra.mxu0 %v1266
        %1538 = vmatpush.bf16.msra.mxu0 %v1263
        %1539 = vmatmul.bf16.gmra.mxu0 %v667
        %v1540 = vpop.f32.mrf.mxu0
        %v1541 = vadd.f32 %v1522, %v1540
        %v1542 = vpop.f32.mrf.mxu0
        %v1543 = vadd.f32 %v1524, %v1542
        %1544 = vmatmul.bf16.gmra.mxu0 %v673
        %v1545 = vpop.f32.mrf.mxu0
        %v1546 = vadd.f32 %v1527, %v1545
        %v1547 = vpop.f32.mrf.mxu0
        %v1548 = vadd.f32 %v1529, %v1547
        %1549 = vdwg.mxu0
        %1550 = vmatpush.bf16.msra.mxu0 %v1308
        %1551 = vmatpush.bf16.msra.mxu0 %v1305
        %1552 = vmatpush.bf16.msra.mxu0 %v1302
        %1553 = vmatpush.bf16.msra.mxu0 %v1299
        %1554 = vmatpush.bf16.msra.mxu0 %v1296
        %1555 = vmatpush.bf16.msra.mxu0 %v1293
        %1556 = vmatpush.bf16.msra.mxu0 %v1290
        %1557 = vmatpush.bf16.msra.mxu0 %v1287
        %1558 = vmatmul.bf16.gmra.mxu0 %v668
        %v1559 = vpop.f32.mrf.mxu0
        %v1560 = vadd.f32 %v1541, %v1559
        %v1561 = vpop.f32.mrf.mxu0
        %v1562 = vadd.f32 %v1543, %v1561
        %1563 = vmatmul.bf16.gmra.mxu0 %v674
        %v1564 = vpop.f32.mrf.mxu0
        %v1565 = vadd.f32 %v1546, %v1564
        %v1566 = vpop.f32.mrf.mxu0
        %v1567 = vadd.f32 %v1548, %v1566
        %1568 = vdwg.mxu0
        %1569 = vmatpush.bf16.msra.mxu0 %v1189
        %1570 = vmatpush.bf16.msra.mxu0 %v1186
        %1571 = vmatpush.bf16.msra.mxu0 %v1183
        %1572 = vmatpush.bf16.msra.mxu0 %v1180
        %1573 = vmatpush.bf16.msra.mxu0 %v1177
        %1574 = vmatpush.bf16.msra.mxu0 %v1174
        %1575 = vmatpush.bf16.msra.mxu0 %v1171
        %1576 = vmatpush.bf16.msra.mxu0 %v1168
        %1577 = vmatmul.bf16.gmra.mxu0 %v663
        %v1578 = vpop.f32.mrf.mxu0
        %v1579 = vadd.f32 0.0, %v1578
        %v1580 = vpop.f32.mrf.mxu0
        %v1581 = vadd.f32 0.0, %v1580
        %1582 = vmatmul.bf16.gmra.mxu0 %v669
        %v1583 = vpop.f32.mrf.mxu0
        %v1584 = vadd.f32 0.0, %v1583
        %v1585 = vpop.f32.mrf.mxu0
        %v1586 = vadd.f32 0.0, %v1585
        %1587 = vdwg.mxu0
        %1588 = vmatpush.bf16.msra.mxu0 %v1213
        %1589 = vmatpush.bf16.msra.mxu0 %v1210
        %1590 = vmatpush.bf16.msra.mxu0 %v1207
        %1591 = vmatpush.bf16.msra.mxu0 %v1204
        %1592 = vmatpush.bf16.msra.mxu0 %v1201
        %1593 = vmatpush.bf16.msra.mxu0 %v1198
        %1594 = vmatpush.bf16.msra.mxu0 %v1195
        %1595 = vmatpush.bf16.msra.mxu0 %v1192
        %1596 = vmatmul.bf16.gmra.mxu0 %v664
        %v1597 = vpop.f32.mrf.mxu0
        %v1598 = vadd.f32 %v1579, %v1597
        %v1599 = vpop.f32.mrf.mxu0
        %v1600 = vadd.f32 %v1581, %v1599
        %1601 = vmatmul.bf16.gmra.mxu0 %v670
        %v1602 = vpop.f32.mrf.mxu0
        %v1603 = vadd.f32 %v1584, %v1602
        %v1604 = vpop.f32.mrf.mxu0
        %v1605 = vadd.f32 %v1586, %v1604
        %1606 = vdwg.mxu0
        %1607 = vmatpush.bf16.msra.mxu0 %v1237
        %1608 = vmatpush.bf16.msra.mxu0 %v1234
        %1609 = vmatpush.bf16.msra.mxu0 %v1231
        %1610 = vmatpush.bf16.msra.mxu0 %v1228
        %1611 = vmatpush.bf16.msra.mxu0 %v1225
        %1612 = vmatpush.bf16.msra.mxu0 %v1222
        %1613 = vmatpush.bf16.msra.mxu0 %v1219
        %1614 = vmatpush.bf16.msra.mxu0 %v1216
        %1615 = vmatmul.bf16.gmra.mxu0 %v665
        %v1616 = vpop.f32.mrf.mxu0
        %v1617 = vadd.f32 %v1598, %v1616
        %v1618 = vpop.f32.mrf.mxu0
        %v1619 = vadd.f32 %v1600, %v1618
        %1620 = vmatmul.bf16.gmra.mxu0 %v671
        %v1621 = vpop.f32.mrf.mxu0
        %v1622 = vadd.f32 %v1603, %v1621
        %v1623 = vpop.f32.mrf.mxu0
        %v1624 = vadd.f32 %v1605, %v1623
        %1625 = vdwg.mxu0
        %1626 = vmatpush.bf16.msra.mxu0 %v1261
        %1627 = vmatpush.bf16.msra.mxu0 %v1258
        %1628 = vmatpush.bf16.msra.mxu0 %v1255
        %1629 = vmatpush.bf16.msra.mxu0 %v1252
        %1630 = vmatpush.bf16.msra.mxu0 %v1249
        %1631 = vmatpush.bf16.msra.mxu0 %v1246
        %1632 = vmatpush.bf16.msra.mxu0 %v1243
        %1633 = vmatpush.bf16.msra.mxu0 %v1240
        %1634 = vmatmul.bf16.gmra.mxu0 %v666
        %v1635 = vpop.f32.mrf.mxu0
        %v1636 = vadd.f32 %v1617, %v1635
        %v1637 = vpop.f32.mrf.mxu0
        %v1638 = vadd.f32 %v1619, %v1637
        %1639 = vmatmul.bf16.gmra.mxu0 %v672
        %v1640 = vpop.f32.mrf.mxu0
        %v1641 = vadd.f32 %v1622, %v1640
        %v1642 = vpop.f32.mrf.mxu0
        %v1643 = vadd.f32 %v1624, %v1642
        %1644 = vdwg.mxu0
        %1645 = vmatpush.bf16.msra.mxu0 %v1285
        %1646 = vmatpush.bf16.msra.mxu0 %v1282
        %1647 = vmatpush.bf16.msra.mxu0 %v1279
        %1648 = vmatpush.bf16.msra.mxu0 %v1276
        %1649 = vmatpush.bf16.msra.mxu0 %v1273
        %1650 = vmatpush.bf16.msra.mxu0 %v1270
        %1651 = vmatpush.bf16.msra.mxu0 %v1267
        %1652 = vmatpush.bf16.msra.mxu0 %v1264
        %1653 = vmatmul.bf16.gmra.mxu0 %v667
        %v1654 = vpop.f32.mrf.mxu0
        %v1655 = vadd.f32 %v1636, %v1654
        %v1656 = vpop.f32.mrf.mxu0
        %v1657 = vadd.f32 %v1638, %v1656
        %1658 = vmatmul.bf16.gmra.mxu0 %v673
        %v1659 = vpop.f32.mrf.mxu0
        %v1660 = vadd.f32 %v1641, %v1659
        %v1661 = vpop.f32.mrf.mxu0
        %v1662 = vadd.f32 %v1643, %v1661
        %1663 = vdwg.mxu0
        %1664 = vmatpush.bf16.msra.mxu0 %v1309
        %1665 = vmatpush.bf16.msra.mxu0 %v1306
        %1666 = vmatpush.bf16.msra.mxu0 %v1303
        %1667 = vmatpush.bf16.msra.mxu0 %v1300
        %1668 = vmatpush.bf16.msra.mxu0 %v1297
        %1669 = vmatpush.bf16.msra.mxu0 %v1294
        %1670 = vmatpush.bf16.msra.mxu0 %v1291
        %1671 = vmatpush.bf16.msra.mxu0 %v1288
        %1672 = vmatmul.bf16.gmra.mxu0 %v668
        %v1673 = vpop.f32.mrf.mxu0
        %v1674 = vadd.f32 %v1655, %v1673
        %v1675 = vpop.f32.mrf.mxu0
        %v1676 = vadd.f32 %v1657, %v1675
        %1677 = vmatmul.bf16.gmra.mxu0 %v674
        %v1678 = vpop.f32.mrf.mxu0
        %v1679 = vadd.f32 %v1660, %v1678
        %v1680 = vpop.f32.mrf.mxu0
        %v1681 = vadd.f32 %v1662, %v1680
        %1682 = vdwg.mxu0
        %1683 = vmatpush.bf16.msra.mxu0 %v1190
        %1684 = vmatpush.bf16.msra.mxu0 %v1187
        %1685 = vmatpush.bf16.msra.mxu0 %v1184
        %1686 = vmatpush.bf16.msra.mxu0 %v1181
        %1687 = vmatpush.bf16.msra.mxu0 %v1178
        %1688 = vmatpush.bf16.msra.mxu0 %v1175
        %1689 = vmatpush.bf16.msra.mxu0 %v1172
        %1690 = vmatpush.bf16.msra.mxu0 %v1169
        %1691 = vmatmul.bf16.gmra.mxu0 %v663
        %v1692 = vpop.f32.mrf.mxu0
        %v1693 = vadd.f32 0.0, %v1692
        %v1694 = vpop.f32.mrf.mxu0
        %v1695 = vadd.f32 0.0, %v1694
        %1696 = vmatmul.bf16.gmra.mxu0 %v669
        %v1697 = vpop.f32.mrf.mxu0
        %v1698 = vadd.f32 0.0, %v1697
        %v1699 = vpop.f32.mrf.mxu0
        %v1700 = vadd.f32 0.0, %v1699
        %1701 = vdwg.mxu0
        %1702 = vmatpush.bf16.msra.mxu0 %v1214
        %1703 = vmatpush.bf16.msra.mxu0 %v1211
        %1704 = vmatpush.bf16.msra.mxu0 %v1208
        %1705 = vmatpush.bf16.msra.mxu0 %v1205
        %1706 = vmatpush.bf16.msra.mxu0 %v1202
        %1707 = vmatpush.bf16.msra.mxu0 %v1199
        %1708 = vmatpush.bf16.msra.mxu0 %v1196
        %1709 = vmatpush.bf16.msra.mxu0 %v1193
        %1710 = vmatmul.bf16.gmra.mxu0 %v664
        %v1711 = vpop.f32.mrf.mxu0
        %v1712 = vadd.f32 %v1693, %v1711
        %v1713 = vpop.f32.mrf.mxu0
        %v1714 = vadd.f32 %v1695, %v1713
        %1715 = vmatmul.bf16.gmra.mxu0 %v670
        %v1716 = vpop.f32.mrf.mxu0
        %v1717 = vadd.f32 %v1698, %v1716
        %v1718 = vpop.f32.mrf.mxu0
        %v1719 = vadd.f32 %v1700, %v1718
        %1720 = vdwg.mxu0
        %1721 = vmatpush.bf16.msra.mxu0 %v1238
        %1722 = vmatpush.bf16.msra.mxu0 %v1235
        %1723 = vmatpush.bf16.msra.mxu0 %v1232
        %1724 = vmatpush.bf16.msra.mxu0 %v1229
        %1725 = vmatpush.bf16.msra.mxu0 %v1226
        %1726 = vmatpush.bf16.msra.mxu0 %v1223
        %1727 = vmatpush.bf16.msra.mxu0 %v1220
        %1728 = vmatpush.bf16.msra.mxu0 %v1217
        %1729 = vmatmul.bf16.gmra.mxu0 %v665
        %v1730 = vpop.f32.mrf.mxu0
        %v1731 = vadd.f32 %v1712, %v1730
        %v1732 = vpop.f32.mrf.mxu0
        %v1733 = vadd.f32 %v1714, %v1732
        %1734 = vmatmul.bf16.gmra.mxu0 %v671
        %v1735 = vpop.f32.mrf.mxu0
        %v1736 = vadd.f32 %v1717, %v1735
        %v1737 = vpop.f32.mrf.mxu0
        %v1738 = vadd.f32 %v1719, %v1737
        %1739 = vdwg.mxu0
        %1740 = vmatpush.bf16.msra.mxu0 %v1262
        %1741 = vmatpush.bf16.msra.mxu0 %v1259
        %1742 = vmatpush.bf16.msra.mxu0 %v1256
        %1743 = vmatpush.bf16.msra.mxu0 %v1253
        %1744 = vmatpush.bf16.msra.mxu0 %v1250
        %1745 = vmatpush.bf16.msra.mxu0 %v1247
        %1746 = vmatpush.bf16.msra.mxu0 %v1244
        %1747 = vmatpush.bf16.msra.mxu0 %v1241
        %1748 = vmatmul.bf16.gmra.mxu0 %v666
        %v1749 = vpop.f32.mrf.mxu0
        %v1750 = vadd.f32 %v1731, %v1749
        %v1751 = vpop.f32.mrf.mxu0
        %v1752 = vadd.f32 %v1733, %v1751
        %1753 = vmatmul.bf16.gmra.mxu0 %v672
        %v1754 = vpop.f32.mrf.mxu0
        %v1755 = vadd.f32 %v1736, %v1754
        %v1756 = vpop.f32.mrf.mxu0
        %v1757 = vadd.f32 %v1738, %v1756
        %1758 = vdwg.mxu0
        %1759 = vmatpush.bf16.msra.mxu0 %v1286
        %1760 = vmatpush.bf16.msra.mxu0 %v1283
        %1761 = vmatpush.bf16.msra.mxu0 %v1280
        %1762 = vmatpush.bf16.msra.mxu0 %v1277
        %1763 = vmatpush.bf16.msra.mxu0 %v1274
        %1764 = vmatpush.bf16.msra.mxu0 %v1271
        %1765 = vmatpush.bf16.msra.mxu0 %v1268
        %1766 = vmatpush.bf16.msra.mxu0 %v1265
        %1767 = vmatmul.bf16.gmra.mxu0 %v667
        %v1768 = vpop.f32.mrf.mxu0
        %v1769 = vadd.f32 %v1750, %v1768
        %v1770 = vpop.f32.mrf.mxu0
        %v1771 = vadd.f32 %v1752, %v1770
        %1772 = vmatmul.bf16.gmra.mxu0 %v673
        %v1773 = vpop.f32.mrf.mxu0
        %v1774 = vadd.f32 %v1755, %v1773
        %v1775 = vpop.f32.mrf.mxu0
        %v1776 = vadd.f32 %v1757, %v1775
        %1777 = vdwg.mxu0
        %1778 = vmatpush.bf16.msra.mxu0 %v1310
        %1779 = vmatpush.bf16.msra.mxu0 %v1307
        %1780 = vmatpush.bf16.msra.mxu0 %v1304
        %1781 = vmatpush.bf16.msra.mxu0 %v1301
        %1782 = vmatpush.bf16.msra.mxu0 %v1298
        %1783 = vmatpush.bf16.msra.mxu0 %v1295
        %1784 = vmatpush.bf16.msra.mxu0 %v1292
        %1785 = vmatpush.bf16.msra.mxu0 %v1289
        %1786 = vmatmul.bf16.gmra.mxu0 %v668
        %v1787 = vpop.f32.mrf.mxu0
        %v1788 = vadd.f32 %v1769, %v1787
        %v1789 = vpop.f32.mrf.mxu0
        %v1790 = vadd.f32 %v1771, %v1789
        %1791 = vmatmul.bf16.gmra.mxu0 %v674
        %v1792 = vpop.f32.mrf.mxu0
        %v1793 = vadd.f32 %v1774, %v1792
        %v1794 = vpop.f32.mrf.mxu0
        %v1795 = vadd.f32 %v1776, %v1794
        %1796 = vdwg.mxu0
        %s1797 = scalar_lea.vmem [#allocation4], 1152
        %v1798 = vld [vmem:[%s1797] sm:$0xff]
        %v1799 = vld [vmem:[%s1797 + $0x8] sm:$0xf]
        %v1800 = vld [vmem:[%s1797 + $0xc] sm:$0xff]
        %v1801 = vld [vmem:[%s1797 + $0x14] sm:$0xf]
        %v1802 = vld [vmem:[%s1797 + $0x18] sm:$0xff]
        %v1803 = vld [vmem:[%s1797 + $0x20] sm:$0xf]
        %v1804 = vld [vmem:[%s1797 + $0x24] sm:$0xff]
        %v1805 = vld [vmem:[%s1797 + $0x2c] sm:$0xf]
        %v1806 = vld [vmem:[%s1797 + $0x30] sm:$0xff]
        %v1807 = vld [vmem:[%s1797 + $0x38] sm:$0xf]
        %v1808 = vld [vmem:[%s1797 + $0x3c] sm:$0xff]
        %v1809 = vld [vmem:[%s1797 + $0x44] sm:$0xf]
        %v1810 = vld [vmem:[%s1797 + $0x48] sm:$0xff]
        %v1811 = vld [vmem:[%s1797 + $0x50] sm:$0xf]
        %v1812 = vld [vmem:[%s1797 + $0x54] sm:$0xff]
        %v1813 = vld [vmem:[%s1797 + $0x5c] sm:$0xf]
        %v1814 = vld [vmem:[%s1797 + $0x60] sm:$0xff]
        %v1815 = vld [vmem:[%s1797 + $0x68] sm:$0xf]
        %v1816 = vld [vmem:[%s1797 + $0x6c] sm:$0xff]
        %v1817 = vld [vmem:[%s1797 + $0x74] sm:$0xf]
        %v1818 = vld [vmem:[%s1797 + $0x78] sm:$0xff]
        %v1819 = vld [vmem:[%s1797 + $0x80] sm:$0xf]
        %v1820 = vld [vmem:[%s1797 + $0x84] sm:$0xff]
        %v1821 = vld [vmem:[%s1797 + $0x8c] sm:$0xf]
        %v1822 = vld [vmem:[%s1797 + $0x90] sm:$0xff]
        %v1823 = vld [vmem:[%s1797 + $0x98] sm:$0xf]
        %v1824 = vld [vmem:[%s1797 + $0x9c] sm:$0xff]
        %v1825 = vld [vmem:[%s1797 + $0xa4] sm:$0xf]
        %v1826 = vld [vmem:[%s1797 + $0xa8] sm:$0xff]
        %v1827 = vld [vmem:[%s1797 + $0xb0] sm:$0xf]
        %v1828 = vld [vmem:[%s1797 + $0xb4] sm:$0xff]
        %v1829 = vld [vmem:[%s1797 + $0xbc] sm:$0xf]
        %v1830 = vld [vmem:[%s1797 + $0xc0] sm:$0xff]
        %v1831 = vld [vmem:[%s1797 + $0xc8] sm:$0xf]
        %v1832 = vld [vmem:[%s1797 + $0xcc] sm:$0xff]
        %v1833 = vld [vmem:[%s1797 + $0xd4] sm:$0xf]
        %v1834 = vld [vmem:[%s1797 + $0xd8] sm:$0xff]
        %v1835 = vld [vmem:[%s1797 + $0xe0] sm:$0xf]
        %v1836 = vld [vmem:[%s1797 + $0xe4] sm:$0xff]
        %v1837 = vld [vmem:[%s1797 + $0xec] sm:$0xf]
        %v1838 = vld [vmem:[%s1797 + $0xf0] sm:$0xff]
        %v1839 = vld [vmem:[%s1797 + $0xf8] sm:$0xf]
        %v1840 = vld [vmem:[%s1797 + $0xfc] sm:$0xff]
        %v1841 = vld [vmem:[%s1797 + $0x104] sm:$0xf]
        %v1842 = vld [vmem:[%s1797 + $0x108] sm:$0xff]
        %v1843 = vld [vmem:[%s1797 + $0x110] sm:$0xf]
        %v1844 = vld [vmem:[%s1797 + $0x114] sm:$0xff]
        %v1845 = vld [vmem:[%s1797 + $0x11c] sm:$0xf]
        %v1846 = vld [vmem:[%s1797 + $0x120] sm:$0xff]
        %v1847 = vld [vmem:[%s1797 + $0x128] sm:$0xf]
        %v1848 = vld [vmem:[%s1797 + $0x12c] sm:$0xff]
        %v1849 = vld [vmem:[%s1797 + $0x134] sm:$0xf]
        %v1850 = vld [vmem:[%s1797 + $0x138] sm:$0xff]
        %v1851 = vld [vmem:[%s1797 + $0x140] sm:$0xf]
        %v1852 = vld [vmem:[%s1797 + $0x144] sm:$0xff]
        %v1853 = vld [vmem:[%s1797 + $0x14c] sm:$0xf]
        %v1854 = vld [vmem:[%s1797 + $0x150] sm:$0xff]
        %v1855 = vld [vmem:[%s1797 + $0x158] sm:$0xf]
        %v1856 = vld [vmem:[%s1797 + $0x15c] sm:$0xff]
        %v1857 = vld [vmem:[%s1797 + $0x164] sm:$0xf]
        %v1858 = vld [vmem:[%s1797 + $0x168] sm:$0xff]
        %v1859 = vld [vmem:[%s1797 + $0x170] sm:$0xf]
        %v1860 = vld [vmem:[%s1797 + $0x174] sm:$0xff]
        %v1861 = vld [vmem:[%s1797 + $0x17c] sm:$0xf]
        %v1862 = vld [vmem:[%s1797 + $0x180] sm:$0xff]
        %v1863 = vld [vmem:[%s1797 + $0x188] sm:$0xf]
        %v1864 = vld [vmem:[%s1797 + $0x18c] sm:$0xff]
        %v1865 = vld [vmem:[%s1797 + $0x194] sm:$0xf]
        %v1866 = vld [vmem:[%s1797 + $0x198] sm:$0xff]
        %v1867 = vld [vmem:[%s1797 + $0x1a0] sm:$0xf]
        %v1868 = vld [vmem:[%s1797 + $0x1a4] sm:$0xff]
        %v1869 = vld [vmem:[%s1797 + $0x1ac] sm:$0xf]
        %v1870 = vld [vmem:[%s1797 + $0x1b0] sm:$0xff]
        %v1871 = vld [vmem:[%s1797 + $0x1b8] sm:$0xf]
        %v1872 = vld [vmem:[%s1797 + $0x1bc] sm:$0xff]
        %v1873 = vld [vmem:[%s1797 + $0x1c4] sm:$0xf]
        %v1874 = vld [vmem:[%s1797 + $0x1c8] sm:$0xff]
        %v1875 = vld [vmem:[%s1797 + $0x1d0] sm:$0xf]
        %v1876 = vld [vmem:[%s1797 + $0x1d4] sm:$0xff]
        %v1877 = vld [vmem:[%s1797 + $0x1dc] sm:$0xf]
        %v1878 = vld [vmem:[%s1797 + $0x1e0] sm:$0xff]
        %v1879 = vld [vmem:[%s1797 + $0x1e8] sm:$0xf]
        %v1880 = vld [vmem:[%s1797 + $0x1ec] sm:$0xff]
        %v1881 = vld [vmem:[%s1797 + $0x1f4] sm:$0xf]
        %v1882 = vld [vmem:[%s1797 + $0x1f8] sm:$0xff]
        %v1883 = vld [vmem:[%s1797 + $0x200] sm:$0xf]
        %v1884 = vld [vmem:[%s1797 + $0x204] sm:$0xff]
        %v1885 = vld [vmem:[%s1797 + $0x20c] sm:$0xf]
        %v1886 = vld [vmem:[%s1797 + $0x210] sm:$0xff]
        %v1887 = vld [vmem:[%s1797 + $0x218] sm:$0xf]
        %v1888 = vld [vmem:[%s1797 + $0x21c] sm:$0xff]
        %v1889 = vld [vmem:[%s1797 + $0x224] sm:$0xf]
        %v1890 = vld [vmem:[%s1797 + $0x228] sm:$0xff]
        %v1891 = vld [vmem:[%s1797 + $0x230] sm:$0xf]
        %v1892 = vld [vmem:[%s1797 + $0x234] sm:$0xff]
        %v1893 = vld [vmem:[%s1797 + $0x23c] sm:$0xf]
        %v1894 = vld [vmem:[%s1797 + $0x240] sm:$0xff]
        %v1895 = vld [vmem:[%s1797 + $0x248] sm:$0xf]
        %v1896 = vld [vmem:[%s1797 + $0x24c] sm:$0xff]
        %v1897 = vld [vmem:[%s1797 + $0x254] sm:$0xf]
        %v1898 = vld [vmem:[%s1797 + $0x258] sm:$0xff]
        %v1899 = vld [vmem:[%s1797 + $0x260] sm:$0xf]
        %v1900 = vld [vmem:[%s1797 + $0x264] sm:$0xff]
        %v1901 = vld [vmem:[%s1797 + $0x26c] sm:$0xf]
        %v1902 = vld [vmem:[%s1797 + $0x270] sm:$0xff]
        %v1903 = vld [vmem:[%s1797 + $0x278] sm:$0xf]
        %v1904 = vld [vmem:[%s1797 + $0x27c] sm:$0xff]
        %v1905 = vld [vmem:[%s1797 + $0x284] sm:$0xf]
        %v1906 = vld [vmem:[%s1797 + $0x288] sm:$0xff]
        %v1907 = vld [vmem:[%s1797 + $0x290] sm:$0xf]
        %v1908 = vld [vmem:[%s1797 + $0x294] sm:$0xff]
        %v1909 = vld [vmem:[%s1797 + $0x29c] sm:$0xf]
        %v1910 = vld [vmem:[%s1797 + $0x2a0] sm:$0xff]
        %v1911 = vld [vmem:[%s1797 + $0x2a8] sm:$0xf]
        %v1912 = vld [vmem:[%s1797 + $0x2ac] sm:$0xff]
        %v1913 = vld [vmem:[%s1797 + $0x2b4] sm:$0xf]
        %v1914 = vld [vmem:[%s1797 + $0x2b8] sm:$0xff]
        %v1915 = vld [vmem:[%s1797 + $0x2c0] sm:$0xf]
        %v1916 = vld [vmem:[%s1797 + $0x2c4] sm:$0xff]
        %v1917 = vld [vmem:[%s1797 + $0x2cc] sm:$0xf]
        %v1918 = vld [vmem:[%s1797 + $0x2d0] sm:$0xff]
        %v1919 = vld [vmem:[%s1797 + $0x2d8] sm:$0xf]
        %v1920 = vld [vmem:[%s1797 + $0x2dc] sm:$0xff]
        %v1921 = vld [vmem:[%s1797 + $0x2e4] sm:$0xf]
        %v1922 = vld [vmem:[%s1797 + $0x2e8] sm:$0xff]
        %v1923 = vld [vmem:[%s1797 + $0x2f0] sm:$0xf]
        %v1924 = vld [vmem:[%s1797 + $0x2f4] sm:$0xff]
        %v1925 = vld [vmem:[%s1797 + $0x2fc] sm:$0xf]
        %v1926 = vld [vmem:[%s1797 + $0x300] sm:$0xff]
        %v1927 = vld [vmem:[%s1797 + $0x308] sm:$0xf]
        %v1928 = vld [vmem:[%s1797 + $0x30c] sm:$0xff]
        %v1929 = vld [vmem:[%s1797 + $0x314] sm:$0xf]
        %v1930 = vld [vmem:[%s1797 + $0x318] sm:$0xff]
        %v1931 = vld [vmem:[%s1797 + $0x320] sm:$0xf]
        %v1932 = vld [vmem:[%s1797 + $0x324] sm:$0xff]
        %v1933 = vld [vmem:[%s1797 + $0x32c] sm:$0xf]
        %v1934 = vld [vmem:[%s1797 + $0x330] sm:$0xff]
        %v1935 = vld [vmem:[%s1797 + $0x338] sm:$0xf]
        %v1936 = vld [vmem:[%s1797 + $0x33c] sm:$0xff]
        %v1937 = vld [vmem:[%s1797 + $0x344] sm:$0xf]
        %v1938 = vld [vmem:[%s1797 + $0x348] sm:$0xff]
        %v1939 = vld [vmem:[%s1797 + $0x350] sm:$0xf]
        %v1940 = vld [vmem:[%s1797 + $0x354] sm:$0xff]
        %v1941 = vld [vmem:[%s1797 + $0x35c] sm:$0xf]
        %v1942 = vld [vmem:[%s1797 + $0x360] sm:$0xff]
        %v1943 = vld [vmem:[%s1797 + $0x368] sm:$0xf]
        %v1944 = vld [vmem:[%s1797 + $0x36c] sm:$0xff]
        %v1945 = vld [vmem:[%s1797 + $0x374] sm:$0xf]
        %v1946 = vld [vmem:[%s1797 + $0x378] sm:$0xff]
        %v1947 = vld [vmem:[%s1797 + $0x380] sm:$0xf]
        %v1948 = vld [vmem:[%s1797 + $0x384] sm:$0xff]
        %v1949 = vld [vmem:[%s1797 + $0x38c] sm:$0xf]
        %v1950 = vld [vmem:[%s1797 + $0x390] sm:$0xff]
        %v1951 = vld [vmem:[%s1797 + $0x398] sm:$0xf]
        %v1952 = vld [vmem:[%s1797 + $0x39c] sm:$0xff]
        %v1953 = vld [vmem:[%s1797 + $0x3a4] sm:$0xf]
        %v1954 = vld [vmem:[%s1797 + $0x3a8] sm:$0xff]
        %v1955 = vld [vmem:[%s1797 + $0x3b0] sm:$0xf]
        %v1956 = vld [vmem:[%s1797 + $0x3b4] sm:$0xff]
        %v1957 = vld [vmem:[%s1797 + $0x3bc] sm:$0xf]
        %v1958 = vld [vmem:[%s1797 + $0x3c0] sm:$0xff]
        %v1959 = vld [vmem:[%s1797 + $0x3c8] sm:$0xf]
        %v1960 = vld [vmem:[%s1797 + $0x3cc] sm:$0xff]
        %v1961 = vld [vmem:[%s1797 + $0x3d4] sm:$0xf]
        %v1962 = vld [vmem:[%s1797 + $0x3d8] sm:$0xff]
        %v1963 = vld [vmem:[%s1797 + $0x3e0] sm:$0xf]
        %v1964 = vld [vmem:[%s1797 + $0x3e4] sm:$0xff]
        %v1965 = vld [vmem:[%s1797 + $0x3ec] sm:$0xf]
        %v1966 = vld [vmem:[%s1797 + $0x3f0] sm:$0xff]
        %v1967 = vld [vmem:[%s1797 + $0x3f8] sm:$0xf]
        %v1968 = vld [vmem:[%s1797 + $0x3fc] sm:$0xff]
        %v1969 = vld [vmem:[%s1797 + $0x404] sm:$0xf]
        %v1970 = vld [vmem:[%s1797 + $0x408] sm:$0xff]
        %v1971 = vld [vmem:[%s1797 + $0x410] sm:$0xf]
        %v1972 = vld [vmem:[%s1797 + $0x414] sm:$0xff]
        %v1973 = vld [vmem:[%s1797 + $0x41c] sm:$0xf]
        %v1974 = vld [vmem:[%s1797 + $0x420] sm:$0xff]
        %v1975 = vld [vmem:[%s1797 + $0x428] sm:$0xf]
        %v1976 = vld [vmem:[%s1797 + $0x42c] sm:$0xff]
        %v1977 = vld [vmem:[%s1797 + $0x434] sm:$0xf]
        %v1978 = vld [vmem:[%s1797 + $0x438] sm:$0xff]
        %v1979 = vld [vmem:[%s1797 + $0x440] sm:$0xf]
        %v1980 = vld [vmem:[%s1797 + $0x444] sm:$0xff]
        %v1981 = vld [vmem:[%s1797 + $0x44c] sm:$0xf]
        %v1982 = vld [vmem:[%s1797 + $0x450] sm:$0xff]
        %v1983 = vld [vmem:[%s1797 + $0x458] sm:$0xf]
        %v1984 = vld [vmem:[%s1797 + $0x45c] sm:$0xff]
        %v1985 = vld [vmem:[%s1797 + $0x464] sm:$0xf]
        %v1986 = vld [vmem:[%s1797 + $0x468] sm:$0xff]
        %v1987 = vld [vmem:[%s1797 + $0x470] sm:$0xf]
        %v1988 = vld [vmem:[%s1797 + $0x474] sm:$0xff]
        %v1989 = vld [vmem:[%s1797 + $0x47c] sm:$0xf]
        %v1990 = vld [vmem:[#allocation9] sm:$0x7]
        %v1992 = vperm.slane %v1990, 0
        %v1993 = vperm.slane %v1990, 1
        %v1994 = vperm.slane %v1990, 2
        %v2190 = vunpack.c.l.b16 %v1798
        %v2191 = vunpack.c.h.b16 %v1798
        %v2192 = vunpack.c.l.b16 %v1799
        %v2193 = vunpack.c.l.b16 %v1800
        %v2194 = vunpack.c.h.b16 %v1800
        %v2195 = vunpack.c.l.b16 %v1801
        %v2196 = vunpack.c.l.b16 %v1802
        %v2197 = vunpack.c.h.b16 %v1802
        %v2198 = vunpack.c.l.b16 %v1803
        %v2199 = vunpack.c.l.b16 %v1804
        %v2200 = vunpack.c.h.b16 %v1804
        %v2201 = vunpack.c.l.b16 %v1805
        %v2202 = vunpack.c.l.b16 %v1806
        %v2203 = vunpack.c.h.b16 %v1806
        %v2204 = vunpack.c.l.b16 %v1807
        %v2205 = vunpack.c.l.b16 %v1808
        %v2206 = vunpack.c.h.b16 %v1808
        %v2207 = vunpack.c.l.b16 %v1809
        %v2208 = vunpack.c.l.b16 %v1810
        %v2209 = vunpack.c.h.b16 %v1810
        %v2210 = vunpack.c.l.b16 %v1811
        %v2211 = vunpack.c.l.b16 %v1812
        %v2212 = vunpack.c.h.b16 %v1812
        %v2213 = vunpack.c.l.b16 %v1813
        %v2214 = vunpack.c.l.b16 %v1814
        %v2215 = vunpack.c.h.b16 %v1814
        %v2216 = vunpack.c.l.b16 %v1815
        %v2217 = vunpack.c.l.b16 %v1816
        %v2218 = vunpack.c.h.b16 %v1816
        %v2219 = vunpack.c.l.b16 %v1817
        %v2220 = vunpack.c.l.b16 %v1818
        %v2221 = vunpack.c.h.b16 %v1818
        %v2222 = vunpack.c.l.b16 %v1819
        %v2223 = vunpack.c.l.b16 %v1820
        %v2224 = vunpack.c.h.b16 %v1820
        %v2225 = vunpack.c.l.b16 %v1821
        %v2226 = vunpack.c.l.b16 %v1822
        %v2227 = vunpack.c.h.b16 %v1822
        %v2228 = vunpack.c.l.b16 %v1823
        %v2229 = vunpack.c.l.b16 %v1824
        %v2230 = vunpack.c.h.b16 %v1824
        %v2231 = vunpack.c.l.b16 %v1825
        %v2232 = vunpack.c.l.b16 %v1826
        %v2233 = vunpack.c.h.b16 %v1826
        %v2234 = vunpack.c.l.b16 %v1827
        %v2235 = vunpack.c.l.b16 %v1828
        %v2236 = vunpack.c.h.b16 %v1828
        %v2237 = vunpack.c.l.b16 %v1829
        %v2238 = vunpack.c.l.b16 %v1830
        %v2239 = vunpack.c.h.b16 %v1830
        %v2240 = vunpack.c.l.b16 %v1831
        %v2241 = vunpack.c.l.b16 %v1832
        %v2242 = vunpack.c.h.b16 %v1832
        %v2243 = vunpack.c.l.b16 %v1833
        %v2244 = vunpack.c.l.b16 %v1834
        %v2245 = vunpack.c.h.b16 %v1834
        %v2246 = vunpack.c.l.b16 %v1835
        %v2247 = vunpack.c.l.b16 %v1836
        %v2248 = vunpack.c.h.b16 %v1836
        %v2249 = vunpack.c.l.b16 %v1837
        %v2250 = vunpack.c.l.b16 %v1838
        %v2251 = vunpack.c.h.b16 %v1838
        %v2252 = vunpack.c.l.b16 %v1839
        %v2253 = vunpack.c.l.b16 %v1840
        %v2254 = vunpack.c.h.b16 %v1840
        %v2255 = vunpack.c.l.b16 %v1841
        %v2256 = vunpack.c.l.b16 %v1842
        %v2257 = vunpack.c.h.b16 %v1842
        %v2258 = vunpack.c.l.b16 %v1843
        %v2259 = vunpack.c.l.b16 %v1844
        %v2260 = vunpack.c.h.b16 %v1844
        %v2261 = vunpack.c.l.b16 %v1845
        %v2262 = vunpack.c.l.b16 %v1846
        %v2263 = vunpack.c.h.b16 %v1846
        %v2264 = vunpack.c.l.b16 %v1847
        %v2265 = vunpack.c.l.b16 %v1848
        %v2266 = vunpack.c.h.b16 %v1848
        %v2267 = vunpack.c.l.b16 %v1849
        %v2268 = vunpack.c.l.b16 %v1850
        %v2269 = vunpack.c.h.b16 %v1850
        %v2270 = vunpack.c.l.b16 %v1851
        %v2271 = vunpack.c.l.b16 %v1852
        %v2272 = vunpack.c.h.b16 %v1852
        %v2273 = vunpack.c.l.b16 %v1853
        %v2274 = vunpack.c.l.b16 %v1854
        %v2275 = vunpack.c.h.b16 %v1854
        %v2276 = vunpack.c.l.b16 %v1855
        %v2277 = vunpack.c.l.b16 %v1856
        %v2278 = vunpack.c.h.b16 %v1856
        %v2279 = vunpack.c.l.b16 %v1857
        %v2280 = vunpack.c.l.b16 %v1858
        %v2281 = vunpack.c.h.b16 %v1858
        %v2282 = vunpack.c.l.b16 %v1859
        %v2283 = vunpack.c.l.b16 %v1860
        %v2284 = vunpack.c.h.b16 %v1860
        %v2285 = vunpack.c.l.b16 %v1861
        %v2286 = vunpack.c.l.b16 %v1862
        %v2287 = vunpack.c.h.b16 %v1862
        %v2288 = vunpack.c.l.b16 %v1863
        %v2289 = vunpack.c.l.b16 %v1864
        %v2290 = vunpack.c.h.b16 %v1864
        %v2291 = vunpack.c.l.b16 %v1865
        %v2292 = vunpack.c.l.b16 %v1866
        %v2293 = vunpack.c.h.b16 %v1866
        %v2294 = vunpack.c.l.b16 %v1867
        %v2295 = vunpack.c.l.b16 %v1868
        %v2296 = vunpack.c.h.b16 %v1868
        %v2297 = vunpack.c.l.b16 %v1869
        %v2298 = vunpack.c.l.b16 %v1870
        %v2299 = vunpack.c.h.b16 %v1870
        %v2300 = vunpack.c.l.b16 %v1871
        %v2301 = vunpack.c.l.b16 %v1872
        %v2302 = vunpack.c.h.b16 %v1872
        %v2303 = vunpack.c.l.b16 %v1873
        %v2304 = vunpack.c.l.b16 %v1874
        %v2305 = vunpack.c.h.b16 %v1874
        %v2306 = vunpack.c.l.b16 %v1875
        %v2307 = vunpack.c.l.b16 %v1876
        %v2308 = vunpack.c.h.b16 %v1876
        %v2309 = vunpack.c.l.b16 %v1877
        %v2310 = vunpack.c.l.b16 %v1878
        %v2311 = vunpack.c.h.b16 %v1878
        %v2312 = vunpack.c.l.b16 %v1879
        %v2313 = vunpack.c.l.b16 %v1880
        %v2314 = vunpack.c.h.b16 %v1880
        %v2315 = vunpack.c.l.b16 %v1881
        %v2316 = vunpack.c.l.b16 %v1882
        %v2317 = vunpack.c.h.b16 %v1882
        %v2318 = vunpack.c.l.b16 %v1883
        %v2319 = vunpack.c.l.b16 %v1884
        %v2320 = vunpack.c.h.b16 %v1884
        %v2321 = vunpack.c.l.b16 %v1885
        %v2322 = vunpack.c.l.b16 %v1886
        %v2323 = vunpack.c.h.b16 %v1886
        %v2324 = vunpack.c.l.b16 %v1887
        %v2325 = vunpack.c.l.b16 %v1888
        %v2326 = vunpack.c.h.b16 %v1888
        %v2327 = vunpack.c.l.b16 %v1889
        %v2328 = vunpack.c.l.b16 %v1890
        %v2329 = vunpack.c.h.b16 %v1890
        %v2330 = vunpack.c.l.b16 %v1891
        %v2331 = vunpack.c.l.b16 %v1892
        %v2332 = vunpack.c.h.b16 %v1892
        %v2333 = vunpack.c.l.b16 %v1893
        %v2334 = vunpack.c.l.b16 %v1894
        %v2335 = vunpack.c.h.b16 %v1894
        %v2336 = vunpack.c.l.b16 %v1895
        %v2337 = vunpack.c.l.b16 %v1896
        %v2338 = vunpack.c.h.b16 %v1896
        %v2339 = vunpack.c.l.b16 %v1897
        %v2340 = vunpack.c.l.b16 %v1898
        %v2341 = vunpack.c.h.b16 %v1898
        %v2342 = vunpack.c.l.b16 %v1899
        %v2343 = vunpack.c.l.b16 %v1900
        %v2344 = vunpack.c.h.b16 %v1900
        %v2345 = vunpack.c.l.b16 %v1901
        %v2346 = vunpack.c.l.b16 %v1902
        %v2347 = vunpack.c.h.b16 %v1902
        %v2348 = vunpack.c.l.b16 %v1903
        %v2349 = vunpack.c.l.b16 %v1904
        %v2350 = vunpack.c.h.b16 %v1904
        %v2351 = vunpack.c.l.b16 %v1905
        %v2352 = vunpack.c.l.b16 %v1906
        %v2353 = vunpack.c.h.b16 %v1906
        %v2354 = vunpack.c.l.b16 %v1907
        %v2355 = vunpack.c.l.b16 %v1908
        %v2356 = vunpack.c.h.b16 %v1908
        %v2357 = vunpack.c.l.b16 %v1909
        %v2358 = vunpack.c.l.b16 %v1910
        %v2359 = vunpack.c.h.b16 %v1910
        %v2360 = vunpack.c.l.b16 %v1911
        %v2361 = vunpack.c.l.b16 %v1912
        %v2362 = vunpack.c.h.b16 %v1912
        %v2363 = vunpack.c.l.b16 %v1913
        %v2364 = vunpack.c.l.b16 %v1914
        %v2365 = vunpack.c.h.b16 %v1914
        %v2366 = vunpack.c.l.b16 %v1915
        %v2367 = vunpack.c.l.b16 %v1916
        %v2368 = vunpack.c.h.b16 %v1916
        %v2369 = vunpack.c.l.b16 %v1917
        %v2370 = vunpack.c.l.b16 %v1918
        %v2371 = vunpack.c.h.b16 %v1918
        %v2372 = vunpack.c.l.b16 %v1919
        %v2373 = vunpack.c.l.b16 %v1920
        %v2374 = vunpack.c.h.b16 %v1920
        %v2375 = vunpack.c.l.b16 %v1921
        %v2376 = vunpack.c.l.b16 %v1922
        %v2377 = vunpack.c.h.b16 %v1922
        %v2378 = vunpack.c.l.b16 %v1923
        %v2379 = vunpack.c.l.b16 %v1924
        %v2380 = vunpack.c.h.b16 %v1924
        %v2381 = vunpack.c.l.b16 %v1925
        %v2382 = vunpack.c.l.b16 %v1926
        %v2383 = vunpack.c.h.b16 %v1926
        %v2384 = vunpack.c.l.b16 %v1927
        %v2385 = vunpack.c.l.b16 %v1928
        %v2386 = vunpack.c.h.b16 %v1928
        %v2387 = vunpack.c.l.b16 %v1929
        %v2388 = vunpack.c.l.b16 %v1930
        %v2389 = vunpack.c.h.b16 %v1930
        %v2390 = vunpack.c.l.b16 %v1931
        %v2391 = vunpack.c.l.b16 %v1932
        %v2392 = vunpack.c.h.b16 %v1932
        %v2393 = vunpack.c.l.b16 %v1933
        %v2394 = vunpack.c.l.b16 %v1934
        %v2395 = vunpack.c.h.b16 %v1934
        %v2396 = vunpack.c.l.b16 %v1935
        %v2397 = vunpack.c.l.b16 %v1936
        %v2398 = vunpack.c.h.b16 %v1936
        %v2399 = vunpack.c.l.b16 %v1937
        %v2400 = vunpack.c.l.b16 %v1938
        %v2401 = vunpack.c.h.b16 %v1938
        %v2402 = vunpack.c.l.b16 %v1939
        %v2403 = vunpack.c.l.b16 %v1940
        %v2404 = vunpack.c.h.b16 %v1940
        %v2405 = vunpack.c.l.b16 %v1941
        %v2406 = vunpack.c.l.b16 %v1942
        %v2407 = vunpack.c.h.b16 %v1942
        %v2408 = vunpack.c.l.b16 %v1943
        %v2409 = vunpack.c.l.b16 %v1944
        %v2410 = vunpack.c.h.b16 %v1944
        %v2411 = vunpack.c.l.b16 %v1945
        %v2412 = vunpack.c.l.b16 %v1946
        %v2413 = vunpack.c.h.b16 %v1946
        %v2414 = vunpack.c.l.b16 %v1947
        %v2415 = vunpack.c.l.b16 %v1948
        %v2416 = vunpack.c.h.b16 %v1948
        %v2417 = vunpack.c.l.b16 %v1949
        %v2418 = vunpack.c.l.b16 %v1950
        %v2419 = vunpack.c.h.b16 %v1950
        %v2420 = vunpack.c.l.b16 %v1951
        %v2421 = vunpack.c.l.b16 %v1952
        %v2422 = vunpack.c.h.b16 %v1952
        %v2423 = vunpack.c.l.b16 %v1953
        %v2424 = vunpack.c.l.b16 %v1954
        %v2425 = vunpack.c.h.b16 %v1954
        %v2426 = vunpack.c.l.b16 %v1955
        %v2427 = vunpack.c.l.b16 %v1956
        %v2428 = vunpack.c.h.b16 %v1956
        %v2429 = vunpack.c.l.b16 %v1957
        %v2430 = vunpack.c.l.b16 %v1958
        %v2431 = vunpack.c.h.b16 %v1958
        %v2432 = vunpack.c.l.b16 %v1959
        %v2433 = vunpack.c.l.b16 %v1960
        %v2434 = vunpack.c.h.b16 %v1960
        %v2435 = vunpack.c.l.b16 %v1961
        %v2436 = vunpack.c.l.b16 %v1962
        %v2437 = vunpack.c.h.b16 %v1962
        %v2438 = vunpack.c.l.b16 %v1963
        %v2439 = vunpack.c.l.b16 %v1964
        %v2440 = vunpack.c.h.b16 %v1964
        %v2441 = vunpack.c.l.b16 %v1965
        %v2442 = vunpack.c.l.b16 %v1966
        %v2443 = vunpack.c.h.b16 %v1966
        %v2444 = vunpack.c.l.b16 %v1967
        %v2445 = vunpack.c.l.b16 %v1968
        %v2446 = vunpack.c.h.b16 %v1968
        %v2447 = vunpack.c.l.b16 %v1969
        %v2448 = vunpack.c.l.b16 %v1970
        %v2449 = vunpack.c.h.b16 %v1970
        %v2450 = vunpack.c.l.b16 %v1971
        %v2451 = vunpack.c.l.b16 %v1972
        %v2452 = vunpack.c.h.b16 %v1972
        %v2453 = vunpack.c.l.b16 %v1973
        %v2454 = vunpack.c.l.b16 %v1974
        %v2455 = vunpack.c.h.b16 %v1974
        %v2456 = vunpack.c.l.b16 %v1975
        %v2457 = vunpack.c.l.b16 %v1976
        %v2458 = vunpack.c.h.b16 %v1976
        %v2459 = vunpack.c.l.b16 %v1977
        %v2460 = vunpack.c.l.b16 %v1978
        %v2461 = vunpack.c.h.b16 %v1978
        %v2462 = vunpack.c.l.b16 %v1979
        %v2463 = vunpack.c.l.b16 %v1980
        %v2464 = vunpack.c.h.b16 %v1980
        %v2465 = vunpack.c.l.b16 %v1981
        %v2466 = vunpack.c.l.b16 %v1982
        %v2467 = vunpack.c.h.b16 %v1982
        %v2468 = vunpack.c.l.b16 %v1983
        %v2469 = vunpack.c.l.b16 %v1984
        %v2470 = vunpack.c.h.b16 %v1984
        %v2471 = vunpack.c.l.b16 %v1985
        %v2472 = vunpack.c.l.b16 %v1986
        %v2473 = vunpack.c.h.b16 %v1986
        %v2474 = vunpack.c.l.b16 %v1987
        %v2475 = vunpack.c.l.b16 %v1988
        %v2476 = vunpack.c.h.b16 %v1988
        %v2477 = vunpack.c.l.b16 %v1989
        %v2478 = vpack.c.b16 %v2193, %v2190
        %v2479 = vpack.c.b16 %v2194, %v2191
        %v2480 = vpack.c.b16 %v2195, %v2192
        %v2481 = vpack.c.b16 %v2199, %v2196
        %v2482 = vpack.c.b16 %v2200, %v2197
        %v2483 = vpack.c.b16 %v2201, %v2198
        %v2484 = vpack.c.b16 %v2205, %v2202
        %v2485 = vpack.c.b16 %v2206, %v2203
        %v2486 = vpack.c.b16 %v2207, %v2204
        %v2487 = vpack.c.b16 %v2211, %v2208
        %v2488 = vpack.c.b16 %v2212, %v2209
        %v2489 = vpack.c.b16 %v2213, %v2210
        %v2490 = vpack.c.b16 %v2217, %v2214
        %v2491 = vpack.c.b16 %v2218, %v2215
        %v2492 = vpack.c.b16 %v2219, %v2216
        %v2493 = vpack.c.b16 %v2223, %v2220
        %v2494 = vpack.c.b16 %v2224, %v2221
        %v2495 = vpack.c.b16 %v2225, %v2222
        %v2496 = vpack.c.b16 %v2229, %v2226
        %v2497 = vpack.c.b16 %v2230, %v2227
        %v2498 = vpack.c.b16 %v2231, %v2228
        %v2499 = vpack.c.b16 %v2235, %v2232
        %v2500 = vpack.c.b16 %v2236, %v2233
        %v2501 = vpack.c.b16 %v2237, %v2234
        %v2502 = vpack.c.b16 %v2241, %v2238
        %v2503 = vpack.c.b16 %v2242, %v2239
        %v2504 = vpack.c.b16 %v2243, %v2240
        %v2505 = vpack.c.b16 %v2247, %v2244
        %v2506 = vpack.c.b16 %v2248, %v2245
        %v2507 = vpack.c.b16 %v2249, %v2246
        %v2508 = vpack.c.b16 %v2253, %v2250
        %v2509 = vpack.c.b16 %v2254, %v2251
        %v2510 = vpack.c.b16 %v2255, %v2252
        %v2511 = vpack.c.b16 %v2259, %v2256
        %v2512 = vpack.c.b16 %v2260, %v2257
        %v2513 = vpack.c.b16 %v2261, %v2258
        %v2514 = vpack.c.b16 %v2265, %v2262
        %v2515 = vpack.c.b16 %v2266, %v2263
        %v2516 = vpack.c.b16 %v2267, %v2264
        %v2517 = vpack.c.b16 %v2271, %v2268
        %v2518 = vpack.c.b16 %v2272, %v2269
        %v2519 = vpack.c.b16 %v2273, %v2270
        %v2520 = vpack.c.b16 %v2277, %v2274
        %v2521 = vpack.c.b16 %v2278, %v2275
        %v2522 = vpack.c.b16 %v2279, %v2276
        %v2523 = vpack.c.b16 %v2283, %v2280
        %v2524 = vpack.c.b16 %v2284, %v2281
        %v2525 = vpack.c.b16 %v2285, %v2282
        %v2526 = vpack.c.b16 %v2289, %v2286
        %v2527 = vpack.c.b16 %v2290, %v2287
        %v2528 = vpack.c.b16 %v2291, %v2288
        %v2529 = vpack.c.b16 %v2295, %v2292
        %v2530 = vpack.c.b16 %v2296, %v2293
        %v2531 = vpack.c.b16 %v2297, %v2294
        %v2532 = vpack.c.b16 %v2301, %v2298
        %v2533 = vpack.c.b16 %v2302, %v2299
        %v2534 = vpack.c.b16 %v2303, %v2300
        %v2535 = vpack.c.b16 %v2307, %v2304
        %v2536 = vpack.c.b16 %v2308, %v2305
        %v2537 = vpack.c.b16 %v2309, %v2306
        %v2538 = vpack.c.b16 %v2313, %v2310
        %v2539 = vpack.c.b16 %v2314, %v2311
        %v2540 = vpack.c.b16 %v2315, %v2312
        %v2541 = vpack.c.b16 %v2319, %v2316
        %v2542 = vpack.c.b16 %v2320, %v2317
        %v2543 = vpack.c.b16 %v2321, %v2318
        %v2544 = vpack.c.b16 %v2325, %v2322
        %v2545 = vpack.c.b16 %v2326, %v2323
        %v2546 = vpack.c.b16 %v2327, %v2324
        %v2547 = vpack.c.b16 %v2331, %v2328
        %v2548 = vpack.c.b16 %v2332, %v2329
        %v2549 = vpack.c.b16 %v2333, %v2330
        %v2550 = vpack.c.b16 %v2337, %v2334
        %v2551 = vpack.c.b16 %v2338, %v2335
        %v2552 = vpack.c.b16 %v2339, %v2336
        %v2553 = vpack.c.b16 %v2343, %v2340
        %v2554 = vpack.c.b16 %v2344, %v2341
        %v2555 = vpack.c.b16 %v2345, %v2342
        %v2556 = vpack.c.b16 %v2349, %v2346
        %v2557 = vpack.c.b16 %v2350, %v2347
        %v2558 = vpack.c.b16 %v2351, %v2348
        %v2559 = vpack.c.b16 %v2355, %v2352
        %v2560 = vpack.c.b16 %v2356, %v2353
        %v2561 = vpack.c.b16 %v2357, %v2354
        %v2562 = vpack.c.b16 %v2361, %v2358
        %v2563 = vpack.c.b16 %v2362, %v2359
        %v2564 = vpack.c.b16 %v2363, %v2360
        %v2565 = vpack.c.b16 %v2367, %v2364
        %v2566 = vpack.c.b16 %v2368, %v2365
        %v2567 = vpack.c.b16 %v2369, %v2366
        %v2568 = vpack.c.b16 %v2373, %v2370
        %v2569 = vpack.c.b16 %v2374, %v2371
        %v2570 = vpack.c.b16 %v2375, %v2372
        %v2571 = vpack.c.b16 %v2379, %v2376
        %v2572 = vpack.c.b16 %v2380, %v2377
        %v2573 = vpack.c.b16 %v2381, %v2378
        %v2574 = vpack.c.b16 %v2385, %v2382
        %v2575 = vpack.c.b16 %v2386, %v2383
        %v2576 = vpack.c.b16 %v2387, %v2384
        %v2577 = vpack.c.b16 %v2391, %v2388
        %v2578 = vpack.c.b16 %v2392, %v2389
        %v2579 = vpack.c.b16 %v2393, %v2390
        %v2580 = vpack.c.b16 %v2397, %v2394
        %v2581 = vpack.c.b16 %v2398, %v2395
        %v2582 = vpack.c.b16 %v2399, %v2396
        %v2583 = vpack.c.b16 %v2403, %v2400
        %v2584 = vpack.c.b16 %v2404, %v2401
        %v2585 = vpack.c.b16 %v2405, %v2402
        %v2586 = vpack.c.b16 %v2409, %v2406
        %v2587 = vpack.c.b16 %v2410, %v2407
        %v2588 = vpack.c.b16 %v2411, %v2408
        %v2589 = vpack.c.b16 %v2415, %v2412
        %v2590 = vpack.c.b16 %v2416, %v2413
        %v2591 = vpack.c.b16 %v2417, %v2414
        %v2592 = vpack.c.b16 %v2421, %v2418
        %v2593 = vpack.c.b16 %v2422, %v2419
        %v2594 = vpack.c.b16 %v2423, %v2420
        %v2595 = vpack.c.b16 %v2427, %v2424
        %v2596 = vpack.c.b16 %v2428, %v2425
        %v2597 = vpack.c.b16 %v2429, %v2426
        %v2598 = vpack.c.b16 %v2433, %v2430
        %v2599 = vpack.c.b16 %v2434, %v2431
        %v2600 = vpack.c.b16 %v2435, %v2432
        %v2601 = vpack.c.b16 %v2439, %v2436
        %v2602 = vpack.c.b16 %v2440, %v2437
        %v2603 = vpack.c.b16 %v2441, %v2438
        %v2604 = vpack.c.b16 %v2445, %v2442
        %v2605 = vpack.c.b16 %v2446, %v2443
        %v2606 = vpack.c.b16 %v2447, %v2444
        %v2607 = vpack.c.b16 %v2451, %v2448
        %v2608 = vpack.c.b16 %v2452, %v2449
        %v2609 = vpack.c.b16 %v2453, %v2450
        %v2610 = vpack.c.b16 %v2457, %v2454
        %v2611 = vpack.c.b16 %v2458, %v2455
        %v2612 = vpack.c.b16 %v2459, %v2456
        %v2613 = vpack.c.b16 %v2463, %v2460
        %v2614 = vpack.c.b16 %v2464, %v2461
        %v2615 = vpack.c.b16 %v2465, %v2462
        %v2616 = vpack.c.b16 %v2469, %v2466
        %v2617 = vpack.c.b16 %v2470, %v2467
        %v2618 = vpack.c.b16 %v2471, %v2468
        %v2619 = vpack.c.b16 %v2475, %v2472
        %v2620 = vpack.c.b16 %v2476, %v2473
        %v2621 = vpack.c.b16 %v2477, %v2474
        %2766 = vmatpush.bf16.msra.mxu0 %v2499
        %2767 = vmatpush.bf16.msra.mxu0 %v2496
        %2768 = vmatpush.bf16.msra.mxu0 %v2493
        %2769 = vmatpush.bf16.msra.mxu0 %v2490
        %2770 = vmatpush.bf16.msra.mxu0 %v2487
        %2771 = vmatpush.bf16.msra.mxu0 %v2484
        %2772 = vmatpush.bf16.msra.mxu0 %v2481
        %2773 = vmatpush.bf16.msra.mxu0 %v2478
        %2774 = vmatmul.bf16.gmra.mxu0 %v663
        %v2775 = vpop.f32.mrf.mxu0
        %v2776 = vadd.f32 %v1992, %v2775
        %v2777 = vpop.f32.mrf.mxu0
        %v2778 = vadd.f32 %v1992, %v2777
        %2779 = vmatmul.bf16.gmra.mxu0 %v669
        %v2780 = vpop.f32.mrf.mxu0
        %v2781 = vadd.f32 %v1992, %v2780
        %v2782 = vpop.f32.mrf.mxu0
        %v2783 = vadd.f32 %v1992, %v2782
        %2784 = vdwg.mxu0
        %2785 = vmatpush.bf16.msra.mxu0 %v2523
        %2786 = vmatpush.bf16.msra.mxu0 %v2520
        %2787 = vmatpush.bf16.msra.mxu0 %v2517
        %2788 = vmatpush.bf16.msra.mxu0 %v2514
        %2789 = vmatpush.bf16.msra.mxu0 %v2511
        %2790 = vmatpush.bf16.msra.mxu0 %v2508
        %2791 = vmatpush.bf16.msra.mxu0 %v2505
        %2792 = vmatpush.bf16.msra.mxu0 %v2502
        %2793 = vmatmul.bf16.gmra.mxu0 %v664
        %v2794 = vpop.f32.mrf.mxu0
        %v2795 = vadd.f32 %v2776, %v2794
        %v2796 = vpop.f32.mrf.mxu0
        %v2797 = vadd.f32 %v2778, %v2796
        %2798 = vmatmul.bf16.gmra.mxu0 %v670
        %v2799 = vpop.f32.mrf.mxu0
        %v2800 = vadd.f32 %v2781, %v2799
        %v2801 = vpop.f32.mrf.mxu0
        %v2802 = vadd.f32 %v2783, %v2801
        %2803 = vdwg.mxu0
        %2804 = vmatpush.bf16.msra.mxu0 %v2547
        %2805 = vmatpush.bf16.msra.mxu0 %v2544
        %2806 = vmatpush.bf16.msra.mxu0 %v2541
        %2807 = vmatpush.bf16.msra.mxu0 %v2538
        %2808 = vmatpush.bf16.msra.mxu0 %v2535
        %2809 = vmatpush.bf16.msra.mxu0 %v2532
        %2810 = vmatpush.bf16.msra.mxu0 %v2529
        %2811 = vmatpush.bf16.msra.mxu0 %v2526
        %2812 = vmatmul.bf16.gmra.mxu0 %v665
        %v2813 = vpop.f32.mrf.mxu0
        %v2814 = vadd.f32 %v2795, %v2813
        %v2815 = vpop.f32.mrf.mxu0
        %v2816 = vadd.f32 %v2797, %v2815
        %2817 = vmatmul.bf16.gmra.mxu0 %v671
        %v2818 = vpop.f32.mrf.mxu0
        %v2819 = vadd.f32 %v2800, %v2818
        %v2820 = vpop.f32.mrf.mxu0
        %v2821 = vadd.f32 %v2802, %v2820
        %2822 = vdwg.mxu0
        %2823 = vmatpush.bf16.msra.mxu0 %v2571
        %2824 = vmatpush.bf16.msra.mxu0 %v2568
        %2825 = vmatpush.bf16.msra.mxu0 %v2565
        %2826 = vmatpush.bf16.msra.mxu0 %v2562
        %2827 = vmatpush.bf16.msra.mxu0 %v2559
        %2828 = vmatpush.bf16.msra.mxu0 %v2556
        %2829 = vmatpush.bf16.msra.mxu0 %v2553
        %2830 = vmatpush.bf16.msra.mxu0 %v2550
        %2831 = vmatmul.bf16.gmra.mxu0 %v666
        %v2832 = vpop.f32.mrf.mxu0
        %v2833 = vadd.f32 %v2814, %v2832
        %v2834 = vpop.f32.mrf.mxu0
        %v2835 = vadd.f32 %v2816, %v2834
        %2836 = vmatmul.bf16.gmra.mxu0 %v672
        %v2837 = vpop.f32.mrf.mxu0
        %v2838 = vadd.f32 %v2819, %v2837
        %v2839 = vpop.f32.mrf.mxu0
        %v2840 = vadd.f32 %v2821, %v2839
        %2841 = vdwg.mxu0
        %2842 = vmatpush.bf16.msra.mxu0 %v2595
        %2843 = vmatpush.bf16.msra.mxu0 %v2592
        %2844 = vmatpush.bf16.msra.mxu0 %v2589
        %2845 = vmatpush.bf16.msra.mxu0 %v2586
        %2846 = vmatpush.bf16.msra.mxu0 %v2583
        %2847 = vmatpush.bf16.msra.mxu0 %v2580
        %2848 = vmatpush.bf16.msra.mxu0 %v2577
        %2849 = vmatpush.bf16.msra.mxu0 %v2574
        %2850 = vmatmul.bf16.gmra.mxu0 %v667
        %v2851 = vpop.f32.mrf.mxu0
        %v2852 = vadd.f32 %v2833, %v2851
        %v2853 = vpop.f32.mrf.mxu0
        %v2854 = vadd.f32 %v2835, %v2853
        %2855 = vmatmul.bf16.gmra.mxu0 %v673
        %v2856 = vpop.f32.mrf.mxu0
        %v2857 = vadd.f32 %v2838, %v2856
        %v2858 = vpop.f32.mrf.mxu0
        %v2859 = vadd.f32 %v2840, %v2858
        %2860 = vdwg.mxu0
        %2861 = vmatpush.bf16.msra.mxu0 %v2619
        %2862 = vmatpush.bf16.msra.mxu0 %v2616
        %2863 = vmatpush.bf16.msra.mxu0 %v2613
        %2864 = vmatpush.bf16.msra.mxu0 %v2610
        %2865 = vmatpush.bf16.msra.mxu0 %v2607
        %2866 = vmatpush.bf16.msra.mxu0 %v2604
        %2867 = vmatpush.bf16.msra.mxu0 %v2601
        %2868 = vmatpush.bf16.msra.mxu0 %v2598
        %2869 = vmatmul.bf16.gmra.mxu0 %v668
        %v2870 = vpop.f32.mrf.mxu0
        %v2871 = vadd.f32 %v2852, %v2870
        %v2872 = vpop.f32.mrf.mxu0
        %v2873 = vadd.f32 %v2854, %v2872
        %2874 = vmatmul.bf16.gmra.mxu0 %v674
        %v2875 = vpop.f32.mrf.mxu0
        %v2876 = vadd.f32 %v2857, %v2875
        %v2877 = vpop.f32.mrf.mxu0
        %v2878 = vadd.f32 %v2859, %v2877
        %2879 = vdwg.mxu0
        %2880 = vmatpush.bf16.msra.mxu0 %v2500
        %2881 = vmatpush.bf16.msra.mxu0 %v2497
        %2882 = vmatpush.bf16.msra.mxu0 %v2494
        %2883 = vmatpush.bf16.msra.mxu0 %v2491
        %2884 = vmatpush.bf16.msra.mxu0 %v2488
        %2885 = vmatpush.bf16.msra.mxu0 %v2485
        %2886 = vmatpush.bf16.msra.mxu0 %v2482
        %2887 = vmatpush.bf16.msra.mxu0 %v2479
        %2888 = vmatmul.bf16.gmra.mxu0 %v663
        %v2889 = vpop.f32.mrf.mxu0
        %v2890 = vadd.f32 %v1993, %v2889
        %v2891 = vpop.f32.mrf.mxu0
        %v2892 = vadd.f32 %v1993, %v2891
        %2893 = vmatmul.bf16.gmra.mxu0 %v669
        %v2894 = vpop.f32.mrf.mxu0
        %v2895 = vadd.f32 %v1993, %v2894
        %v2896 = vpop.f32.mrf.mxu0
        %v2897 = vadd.f32 %v1993, %v2896
        %2898 = vdwg.mxu0
        %2899 = vmatpush.bf16.msra.mxu0 %v2524
        %2900 = vmatpush.bf16.msra.mxu0 %v2521
        %2901 = vmatpush.bf16.msra.mxu0 %v2518
        %2902 = vmatpush.bf16.msra.mxu0 %v2515
        %2903 = vmatpush.bf16.msra.mxu0 %v2512
        %2904 = vmatpush.bf16.msra.mxu0 %v2509
        %2905 = vmatpush.bf16.msra.mxu0 %v2506
        %2906 = vmatpush.bf16.msra.mxu0 %v2503
        %2907 = vmatmul.bf16.gmra.mxu0 %v664
        %v2908 = vpop.f32.mrf.mxu0
        %v2909 = vadd.f32 %v2890, %v2908
        %v2910 = vpop.f32.mrf.mxu0
        %v2911 = vadd.f32 %v2892, %v2910
        %2912 = vmatmul.bf16.gmra.mxu0 %v670
        %v2913 = vpop.f32.mrf.mxu0
        %v2914 = vadd.f32 %v2895, %v2913
        %v2915 = vpop.f32.mrf.mxu0
        %v2916 = vadd.f32 %v2897, %v2915
        %2917 = vdwg.mxu0
        %2918 = vmatpush.bf16.msra.mxu0 %v2548
        %2919 = vmatpush.bf16.msra.mxu0 %v2545
        %2920 = vmatpush.bf16.msra.mxu0 %v2542
        %2921 = vmatpush.bf16.msra.mxu0 %v2539
        %2922 = vmatpush.bf16.msra.mxu0 %v2536
        %2923 = vmatpush.bf16.msra.mxu0 %v2533
        %2924 = vmatpush.bf16.msra.mxu0 %v2530
        %2925 = vmatpush.bf16.msra.mxu0 %v2527
        %2926 = vmatmul.bf16.gmra.mxu0 %v665
        %v2927 = vpop.f32.mrf.mxu0
        %v2928 = vadd.f32 %v2909, %v2927
        %v2929 = vpop.f32.mrf.mxu0
        %v2930 = vadd.f32 %v2911, %v2929
        %2931 = vmatmul.bf16.gmra.mxu0 %v671
        %v2932 = vpop.f32.mrf.mxu0
        %v2933 = vadd.f32 %v2914, %v2932
        %v2934 = vpop.f32.mrf.mxu0
        %v2935 = vadd.f32 %v2916, %v2934
        %2936 = vdwg.mxu0
        %2937 = vmatpush.bf16.msra.mxu0 %v2572
        %2938 = vmatpush.bf16.msra.mxu0 %v2569
        %2939 = vmatpush.bf16.msra.mxu0 %v2566
        %2940 = vmatpush.bf16.msra.mxu0 %v2563
        %2941 = vmatpush.bf16.msra.mxu0 %v2560
        %2942 = vmatpush.bf16.msra.mxu0 %v2557
        %2943 = vmatpush.bf16.msra.mxu0 %v2554
        %2944 = vmatpush.bf16.msra.mxu0 %v2551
        %2945 = vmatmul.bf16.gmra.mxu0 %v666
        %v2946 = vpop.f32.mrf.mxu0
        %v2947 = vadd.f32 %v2928, %v2946
        %v2948 = vpop.f32.mrf.mxu0
        %v2949 = vadd.f32 %v2930, %v2948
        %2950 = vmatmul.bf16.gmra.mxu0 %v672
        %v2951 = vpop.f32.mrf.mxu0
        %v2952 = vadd.f32 %v2933, %v2951
        %v2953 = vpop.f32.mrf.mxu0
        %v2954 = vadd.f32 %v2935, %v2953
        %2955 = vdwg.mxu0
        %2956 = vmatpush.bf16.msra.mxu0 %v2596
        %2957 = vmatpush.bf16.msra.mxu0 %v2593
        %2958 = vmatpush.bf16.msra.mxu0 %v2590
        %2959 = vmatpush.bf16.msra.mxu0 %v2587
        %2960 = vmatpush.bf16.msra.mxu0 %v2584
        %2961 = vmatpush.bf16.msra.mxu0 %v2581
        %2962 = vmatpush.bf16.msra.mxu0 %v2578
        %2963 = vmatpush.bf16.msra.mxu0 %v2575
        %2964 = vmatmul.bf16.gmra.mxu0 %v667
        %v2965 = vpop.f32.mrf.mxu0
        %v2966 = vadd.f32 %v2947, %v2965
        %v2967 = vpop.f32.mrf.mxu0
        %v2968 = vadd.f32 %v2949, %v2967
        %2969 = vmatmul.bf16.gmra.mxu0 %v673
        %v2970 = vpop.f32.mrf.mxu0
        %v2971 = vadd.f32 %v2952, %v2970
        %v2972 = vpop.f32.mrf.mxu0
        %v2973 = vadd.f32 %v2954, %v2972
        %2974 = vdwg.mxu0
        %2975 = vmatpush.bf16.msra.mxu0 %v2620
        %2976 = vmatpush.bf16.msra.mxu0 %v2617
        %2977 = vmatpush.bf16.msra.mxu0 %v2614
        %2978 = vmatpush.bf16.msra.mxu0 %v2611
        %2979 = vmatpush.bf16.msra.mxu0 %v2608
        %2980 = vmatpush.bf16.msra.mxu0 %v2605
        %2981 = vmatpush.bf16.msra.mxu0 %v2602
        %2982 = vmatpush.bf16.msra.mxu0 %v2599
        %2983 = vmatmul.bf16.gmra.mxu0 %v668
        %v2984 = vpop.f32.mrf.mxu0
        %v2985 = vadd.f32 %v2966, %v2984
        %v2986 = vpop.f32.mrf.mxu0
        %v2987 = vadd.f32 %v2968, %v2986
        %2988 = vmatmul.bf16.gmra.mxu0 %v674
        %v2989 = vpop.f32.mrf.mxu0
        %v2990 = vadd.f32 %v2971, %v2989
        %v2991 = vpop.f32.mrf.mxu0
        %v2992 = vadd.f32 %v2973, %v2991
        %2993 = vdwg.mxu0
        %2994 = vmatpush.bf16.msra.mxu0 %v2501
        %2995 = vmatpush.bf16.msra.mxu0 %v2498
        %2996 = vmatpush.bf16.msra.mxu0 %v2495
        %2997 = vmatpush.bf16.msra.mxu0 %v2492
        %2998 = vmatpush.bf16.msra.mxu0 %v2489
        %2999 = vmatpush.bf16.msra.mxu0 %v2486
        %3000 = vmatpush.bf16.msra.mxu0 %v2483
        %3001 = vmatpush.bf16.msra.mxu0 %v2480
        %3002 = vmatmul.bf16.gmra.mxu0 %v663
        %v3003 = vpop.f32.mrf.mxu0
        %v3004 = vadd.f32 %v1994, %v3003
        %v3005 = vpop.f32.mrf.mxu0
        %v3006 = vadd.f32 %v1994, %v3005
        %3007 = vmatmul.bf16.gmra.mxu0 %v669
        %v3008 = vpop.f32.mrf.mxu0
        %v3009 = vadd.f32 %v1994, %v3008
        %v3010 = vpop.f32.mrf.mxu0
        %v3011 = vadd.f32 %v1994, %v3010
        %3012 = vdwg.mxu0
        %3013 = vmatpush.bf16.msra.mxu0 %v2525
        %3014 = vmatpush.bf16.msra.mxu0 %v2522
        %3015 = vmatpush.bf16.msra.mxu0 %v2519
        %3016 = vmatpush.bf16.msra.mxu0 %v2516
        %3017 = vmatpush.bf16.msra.mxu0 %v2513
        %3018 = vmatpush.bf16.msra.mxu0 %v2510
        %3019 = vmatpush.bf16.msra.mxu0 %v2507
        %3020 = vmatpush.bf16.msra.mxu0 %v2504
        %3021 = vmatmul.bf16.gmra.mxu0 %v664
        %v3022 = vpop.f32.mrf.mxu0
        %v3023 = vadd.f32 %v3004, %v3022
        %v3024 = vpop.f32.mrf.mxu0
        %v3025 = vadd.f32 %v3006, %v3024
        %3026 = vmatmul.bf16.gmra.mxu0 %v670
        %v3027 = vpop.f32.mrf.mxu0
        %v3028 = vadd.f32 %v3009, %v3027
        %v3029 = vpop.f32.mrf.mxu0
        %v3030 = vadd.f32 %v3011, %v3029
        %3031 = vdwg.mxu0
        %3032 = vmatpush.bf16.msra.mxu0 %v2549
        %3033 = vmatpush.bf16.msra.mxu0 %v2546
        %3034 = vmatpush.bf16.msra.mxu0 %v2543
        %3035 = vmatpush.bf16.msra.mxu0 %v2540
        %3036 = vmatpush.bf16.msra.mxu0 %v2537
        %3037 = vmatpush.bf16.msra.mxu0 %v2534
        %3038 = vmatpush.bf16.msra.mxu0 %v2531
        %3039 = vmatpush.bf16.msra.mxu0 %v2528
        %3040 = vmatmul.bf16.gmra.mxu0 %v665
        %v3041 = vpop.f32.mrf.mxu0
        %v3042 = vadd.f32 %v3023, %v3041
        %v3043 = vpop.f32.mrf.mxu0
        %v3044 = vadd.f32 %v3025, %v3043
        %3045 = vmatmul.bf16.gmra.mxu0 %v671
        %v3046 = vpop.f32.mrf.mxu0
        %v3047 = vadd.f32 %v3028, %v3046
        %v3048 = vpop.f32.mrf.mxu0
        %v3049 = vadd.f32 %v3030, %v3048
        %3050 = vdwg.mxu0
        %3051 = vmatpush.bf16.msra.mxu0 %v2573
        %3052 = vmatpush.bf16.msra.mxu0 %v2570
        %3053 = vmatpush.bf16.msra.mxu0 %v2567
        %3054 = vmatpush.bf16.msra.mxu0 %v2564
        %3055 = vmatpush.bf16.msra.mxu0 %v2561
        %3056 = vmatpush.bf16.msra.mxu0 %v2558
        %3057 = vmatpush.bf16.msra.mxu0 %v2555
        %3058 = vmatpush.bf16.msra.mxu0 %v2552
        %3059 = vmatmul.bf16.gmra.mxu0 %v666
        %v3060 = vpop.f32.mrf.mxu0
        %v3061 = vadd.f32 %v3042, %v3060
        %v3062 = vpop.f32.mrf.mxu0
        %v3063 = vadd.f32 %v3044, %v3062
        %3064 = vmatmul.bf16.gmra.mxu0 %v672
        %v3065 = vpop.f32.mrf.mxu0
        %v3066 = vadd.f32 %v3047, %v3065
        %v3067 = vpop.f32.mrf.mxu0
        %v3068 = vadd.f32 %v3049, %v3067
        %3069 = vdwg.mxu0
        %3070 = vmatpush.bf16.msra.mxu0 %v2597
        %3071 = vmatpush.bf16.msra.mxu0 %v2594
        %3072 = vmatpush.bf16.msra.mxu0 %v2591
        %3073 = vmatpush.bf16.msra.mxu0 %v2588
        %3074 = vmatpush.bf16.msra.mxu0 %v2585
        %3075 = vmatpush.bf16.msra.mxu0 %v2582
        %3076 = vmatpush.bf16.msra.mxu0 %v2579
        %3077 = vmatpush.bf16.msra.mxu0 %v2576
        %3078 = vmatmul.bf16.gmra.mxu0 %v667
        %v3079 = vpop.f32.mrf.mxu0
        %v3080 = vadd.f32 %v3061, %v3079
        %v3081 = vpop.f32.mrf.mxu0
        %v3082 = vadd.f32 %v3063, %v3081
        %3083 = vmatmul.bf16.gmra.mxu0 %v673
        %v3084 = vpop.f32.mrf.mxu0
        %v3085 = vadd.f32 %v3066, %v3084
        %v3086 = vpop.f32.mrf.mxu0
        %v3087 = vadd.f32 %v3068, %v3086
        %3088 = vdwg.mxu0
        %3089 = vmatpush.bf16.msra.mxu0 %v2621
        %3090 = vmatpush.bf16.msra.mxu0 %v2618
        %3091 = vmatpush.bf16.msra.mxu0 %v2615
        %3092 = vmatpush.bf16.msra.mxu0 %v2612
        %3093 = vmatpush.bf16.msra.mxu0 %v2609
        %3094 = vmatpush.bf16.msra.mxu0 %v2606
        %3095 = vmatpush.bf16.msra.mxu0 %v2603
        %3096 = vmatpush.bf16.msra.mxu0 %v2600
        %3097 = vmatmul.bf16.gmra.mxu0 %v668
        %v3098 = vpop.f32.mrf.mxu0
        %v3099 = vadd.f32 %v3080, %v3098
        %v3100 = vpop.f32.mrf.mxu0
        %v3101 = vadd.f32 %v3082, %v3100
        %3102 = vmatmul.bf16.gmra.mxu0 %v674
        %v3103 = vpop.f32.mrf.mxu0
        %v3104 = vadd.f32 %v3085, %v3103
        %v3105 = vpop.f32.mrf.mxu0
        %v3106 = vadd.f32 %v3087, %v3105
        %3107 = vdwg.mxu0
        %s3108 = scalar_lea.vmem [#allocation4], 2304
        %v3109 = vld [vmem:[%s3108] sm:$0xff]
        %v3110 = vld [vmem:[%s3108 + $0x8] sm:$0xf]
        %v3111 = vld [vmem:[%s3108 + $0xc] sm:$0xff]
        %v3112 = vld [vmem:[%s3108 + $0x14] sm:$0xf]
        %v3113 = vld [vmem:[%s3108 + $0x18] sm:$0xff]
        %v3114 = vld [vmem:[%s3108 + $0x20] sm:$0xf]
        %v3115 = vld [vmem:[%s3108 + $0x24] sm:$0xff]
        %v3116 = vld [vmem:[%s3108 + $0x2c] sm:$0xf]
        %v3117 = vld [vmem:[%s3108 + $0x30] sm:$0xff]
        %v3118 = vld [vmem:[%s3108 + $0x38] sm:$0xf]
        %v3119 = vld [vmem:[%s3108 + $0x3c] sm:$0xff]
        %v3120 = vld [vmem:[%s3108 + $0x44] sm:$0xf]
        %v3121 = vld [vmem:[%s3108 + $0x48] sm:$0xff]
        %v3122 = vld [vmem:[%s3108 + $0x50] sm:$0xf]
        %v3123 = vld [vmem:[%s3108 + $0x54] sm:$0xff]
        %v3124 = vld [vmem:[%s3108 + $0x5c] sm:$0xf]
        %v3125 = vld [vmem:[%s3108 + $0x60] sm:$0xff]
        %v3126 = vld [vmem:[%s3108 + $0x68] sm:$0xf]
        %v3127 = vld [vmem:[%s3108 + $0x6c] sm:$0xff]
        %v3128 = vld [vmem:[%s3108 + $0x74] sm:$0xf]
        %v3129 = vld [vmem:[%s3108 + $0x78] sm:$0xff]
        %v3130 = vld [vmem:[%s3108 + $0x80] sm:$0xf]
        %v3131 = vld [vmem:[%s3108 + $0x84] sm:$0xff]
        %v3132 = vld [vmem:[%s3108 + $0x8c] sm:$0xf]
        %v3133 = vld [vmem:[%s3108 + $0x90] sm:$0xff]
        %v3134 = vld [vmem:[%s3108 + $0x98] sm:$0xf]
        %v3135 = vld [vmem:[%s3108 + $0x9c] sm:$0xff]
        %v3136 = vld [vmem:[%s3108 + $0xa4] sm:$0xf]
        %v3137 = vld [vmem:[%s3108 + $0xa8] sm:$0xff]
        %v3138 = vld [vmem:[%s3108 + $0xb0] sm:$0xf]
        %v3139 = vld [vmem:[%s3108 + $0xb4] sm:$0xff]
        %v3140 = vld [vmem:[%s3108 + $0xbc] sm:$0xf]
        %v3141 = vld [vmem:[%s3108 + $0xc0] sm:$0xff]
        %v3142 = vld [vmem:[%s3108 + $0xc8] sm:$0xf]
        %v3143 = vld [vmem:[%s3108 + $0xcc] sm:$0xff]
        %v3144 = vld [vmem:[%s3108 + $0xd4] sm:$0xf]
        %v3145 = vld [vmem:[%s3108 + $0xd8] sm:$0xff]
        %v3146 = vld [vmem:[%s3108 + $0xe0] sm:$0xf]
        %v3147 = vld [vmem:[%s3108 + $0xe4] sm:$0xff]
        %v3148 = vld [vmem:[%s3108 + $0xec] sm:$0xf]
        %v3149 = vld [vmem:[%s3108 + $0xf0] sm:$0xff]
        %v3150 = vld [vmem:[%s3108 + $0xf8] sm:$0xf]
        %v3151 = vld [vmem:[%s3108 + $0xfc] sm:$0xff]
        %v3152 = vld [vmem:[%s3108 + $0x104] sm:$0xf]
        %v3153 = vld [vmem:[%s3108 + $0x108] sm:$0xff]
        %v3154 = vld [vmem:[%s3108 + $0x110] sm:$0xf]
        %v3155 = vld [vmem:[%s3108 + $0x114] sm:$0xff]
        %v3156 = vld [vmem:[%s3108 + $0x11c] sm:$0xf]
        %v3157 = vld [vmem:[%s3108 + $0x120] sm:$0xff]
        %v3158 = vld [vmem:[%s3108 + $0x128] sm:$0xf]
        %v3159 = vld [vmem:[%s3108 + $0x12c] sm:$0xff]
        %v3160 = vld [vmem:[%s3108 + $0x134] sm:$0xf]
        %v3161 = vld [vmem:[%s3108 + $0x138] sm:$0xff]
        %v3162 = vld [vmem:[%s3108 + $0x140] sm:$0xf]
        %v3163 = vld [vmem:[%s3108 + $0x144] sm:$0xff]
        %v3164 = vld [vmem:[%s3108 + $0x14c] sm:$0xf]
        %v3165 = vld [vmem:[%s3108 + $0x150] sm:$0xff]
        %v3166 = vld [vmem:[%s3108 + $0x158] sm:$0xf]
        %v3167 = vld [vmem:[%s3108 + $0x15c] sm:$0xff]
        %v3168 = vld [vmem:[%s3108 + $0x164] sm:$0xf]
        %v3169 = vld [vmem:[%s3108 + $0x168] sm:$0xff]
        %v3170 = vld [vmem:[%s3108 + $0x170] sm:$0xf]
        %v3171 = vld [vmem:[%s3108 + $0x174] sm:$0xff]
        %v3172 = vld [vmem:[%s3108 + $0x17c] sm:$0xf]
        %v3173 = vld [vmem:[%s3108 + $0x180] sm:$0xff]
        %v3174 = vld [vmem:[%s3108 + $0x188] sm:$0xf]
        %v3175 = vld [vmem:[%s3108 + $0x18c] sm:$0xff]
        %v3176 = vld [vmem:[%s3108 + $0x194] sm:$0xf]
        %v3177 = vld [vmem:[%s3108 + $0x198] sm:$0xff]
        %v3178 = vld [vmem:[%s3108 + $0x1a0] sm:$0xf]
        %v3179 = vld [vmem:[%s3108 + $0x1a4] sm:$0xff]
        %v3180 = vld [vmem:[%s3108 + $0x1ac] sm:$0xf]
        %v3181 = vld [vmem:[%s3108 + $0x1b0] sm:$0xff]
        %v3182 = vld [vmem:[%s3108 + $0x1b8] sm:$0xf]
        %v3183 = vld [vmem:[%s3108 + $0x1bc] sm:$0xff]
        %v3184 = vld [vmem:[%s3108 + $0x1c4] sm:$0xf]
        %v3185 = vld [vmem:[%s3108 + $0x1c8] sm:$0xff]
        %v3186 = vld [vmem:[%s3108 + $0x1d0] sm:$0xf]
        %v3187 = vld [vmem:[%s3108 + $0x1d4] sm:$0xff]
        %v3188 = vld [vmem:[%s3108 + $0x1dc] sm:$0xf]
        %v3189 = vld [vmem:[%s3108 + $0x1e0] sm:$0xff]
        %v3190 = vld [vmem:[%s3108 + $0x1e8] sm:$0xf]
        %v3191 = vld [vmem:[%s3108 + $0x1ec] sm:$0xff]
        %v3192 = vld [vmem:[%s3108 + $0x1f4] sm:$0xf]
        %v3193 = vld [vmem:[%s3108 + $0x1f8] sm:$0xff]
        %v3194 = vld [vmem:[%s3108 + $0x200] sm:$0xf]
        %v3195 = vld [vmem:[%s3108 + $0x204] sm:$0xff]
        %v3196 = vld [vmem:[%s3108 + $0x20c] sm:$0xf]
        %v3197 = vld [vmem:[%s3108 + $0x210] sm:$0xff]
        %v3198 = vld [vmem:[%s3108 + $0x218] sm:$0xf]
        %v3199 = vld [vmem:[%s3108 + $0x21c] sm:$0xff]
        %v3200 = vld [vmem:[%s3108 + $0x224] sm:$0xf]
        %v3201 = vld [vmem:[%s3108 + $0x228] sm:$0xff]
        %v3202 = vld [vmem:[%s3108 + $0x230] sm:$0xf]
        %v3203 = vld [vmem:[%s3108 + $0x234] sm:$0xff]
        %v3204 = vld [vmem:[%s3108 + $0x23c] sm:$0xf]
        %v3205 = vld [vmem:[%s3108 + $0x240] sm:$0xff]
        %v3206 = vld [vmem:[%s3108 + $0x248] sm:$0xf]
        %v3207 = vld [vmem:[%s3108 + $0x24c] sm:$0xff]
        %v3208 = vld [vmem:[%s3108 + $0x254] sm:$0xf]
        %v3209 = vld [vmem:[%s3108 + $0x258] sm:$0xff]
        %v3210 = vld [vmem:[%s3108 + $0x260] sm:$0xf]
        %v3211 = vld [vmem:[%s3108 + $0x264] sm:$0xff]
        %v3212 = vld [vmem:[%s3108 + $0x26c] sm:$0xf]
        %v3213 = vld [vmem:[%s3108 + $0x270] sm:$0xff]
        %v3214 = vld [vmem:[%s3108 + $0x278] sm:$0xf]
        %v3215 = vld [vmem:[%s3108 + $0x27c] sm:$0xff]
        %v3216 = vld [vmem:[%s3108 + $0x284] sm:$0xf]
        %v3217 = vld [vmem:[%s3108 + $0x288] sm:$0xff]
        %v3218 = vld [vmem:[%s3108 + $0x290] sm:$0xf]
        %v3219 = vld [vmem:[%s3108 + $0x294] sm:$0xff]
        %v3220 = vld [vmem:[%s3108 + $0x29c] sm:$0xf]
        %v3221 = vld [vmem:[%s3108 + $0x2a0] sm:$0xff]
        %v3222 = vld [vmem:[%s3108 + $0x2a8] sm:$0xf]
        %v3223 = vld [vmem:[%s3108 + $0x2ac] sm:$0xff]
        %v3224 = vld [vmem:[%s3108 + $0x2b4] sm:$0xf]
        %v3225 = vld [vmem:[%s3108 + $0x2b8] sm:$0xff]
        %v3226 = vld [vmem:[%s3108 + $0x2c0] sm:$0xf]
        %v3227 = vld [vmem:[%s3108 + $0x2c4] sm:$0xff]
        %v3228 = vld [vmem:[%s3108 + $0x2cc] sm:$0xf]
        %v3229 = vld [vmem:[%s3108 + $0x2d0] sm:$0xff]
        %v3230 = vld [vmem:[%s3108 + $0x2d8] sm:$0xf]
        %v3231 = vld [vmem:[%s3108 + $0x2dc] sm:$0xff]
        %v3232 = vld [vmem:[%s3108 + $0x2e4] sm:$0xf]
        %v3233 = vld [vmem:[%s3108 + $0x2e8] sm:$0xff]
        %v3234 = vld [vmem:[%s3108 + $0x2f0] sm:$0xf]
        %v3235 = vld [vmem:[%s3108 + $0x2f4] sm:$0xff]
        %v3236 = vld [vmem:[%s3108 + $0x2fc] sm:$0xf]
        %v3237 = vld [vmem:[%s3108 + $0x300] sm:$0xff]
        %v3238 = vld [vmem:[%s3108 + $0x308] sm:$0xf]
        %v3239 = vld [vmem:[%s3108 + $0x30c] sm:$0xff]
        %v3240 = vld [vmem:[%s3108 + $0x314] sm:$0xf]
        %v3241 = vld [vmem:[%s3108 + $0x318] sm:$0xff]
        %v3242 = vld [vmem:[%s3108 + $0x320] sm:$0xf]
        %v3243 = vld [vmem:[%s3108 + $0x324] sm:$0xff]
        %v3244 = vld [vmem:[%s3108 + $0x32c] sm:$0xf]
        %v3245 = vld [vmem:[%s3108 + $0x330] sm:$0xff]
        %v3246 = vld [vmem:[%s3108 + $0x338] sm:$0xf]
        %v3247 = vld [vmem:[%s3108 + $0x33c] sm:$0xff]
        %v3248 = vld [vmem:[%s3108 + $0x344] sm:$0xf]
        %v3249 = vld [vmem:[%s3108 + $0x348] sm:$0xff]
        %v3250 = vld [vmem:[%s3108 + $0x350] sm:$0xf]
        %v3251 = vld [vmem:[%s3108 + $0x354] sm:$0xff]
        %v3252 = vld [vmem:[%s3108 + $0x35c] sm:$0xf]
        %v3253 = vld [vmem:[%s3108 + $0x360] sm:$0xff]
        %v3254 = vld [vmem:[%s3108 + $0x368] sm:$0xf]
        %v3255 = vld [vmem:[%s3108 + $0x36c] sm:$0xff]
        %v3256 = vld [vmem:[%s3108 + $0x374] sm:$0xf]
        %v3257 = vld [vmem:[%s3108 + $0x378] sm:$0xff]
        %v3258 = vld [vmem:[%s3108 + $0x380] sm:$0xf]
        %v3259 = vld [vmem:[%s3108 + $0x384] sm:$0xff]
        %v3260 = vld [vmem:[%s3108 + $0x38c] sm:$0xf]
        %v3261 = vld [vmem:[%s3108 + $0x390] sm:$0xff]
        %v3262 = vld [vmem:[%s3108 + $0x398] sm:$0xf]
        %v3263 = vld [vmem:[%s3108 + $0x39c] sm:$0xff]
        %v3264 = vld [vmem:[%s3108 + $0x3a4] sm:$0xf]
        %v3265 = vld [vmem:[%s3108 + $0x3a8] sm:$0xff]
        %v3266 = vld [vmem:[%s3108 + $0x3b0] sm:$0xf]
        %v3267 = vld [vmem:[%s3108 + $0x3b4] sm:$0xff]
        %v3268 = vld [vmem:[%s3108 + $0x3bc] sm:$0xf]
        %v3269 = vld [vmem:[%s3108 + $0x3c0] sm:$0xff]
        %v3270 = vld [vmem:[%s3108 + $0x3c8] sm:$0xf]
        %v3271 = vld [vmem:[%s3108 + $0x3cc] sm:$0xff]
        %v3272 = vld [vmem:[%s3108 + $0x3d4] sm:$0xf]
        %v3273 = vld [vmem:[%s3108 + $0x3d8] sm:$0xff]
        %v3274 = vld [vmem:[%s3108 + $0x3e0] sm:$0xf]
        %v3275 = vld [vmem:[%s3108 + $0x3e4] sm:$0xff]
        %v3276 = vld [vmem:[%s3108 + $0x3ec] sm:$0xf]
        %v3277 = vld [vmem:[%s3108 + $0x3f0] sm:$0xff]
        %v3278 = vld [vmem:[%s3108 + $0x3f8] sm:$0xf]
        %v3279 = vld [vmem:[%s3108 + $0x3fc] sm:$0xff]
        %v3280 = vld [vmem:[%s3108 + $0x404] sm:$0xf]
        %v3281 = vld [vmem:[%s3108 + $0x408] sm:$0xff]
        %v3282 = vld [vmem:[%s3108 + $0x410] sm:$0xf]
        %v3283 = vld [vmem:[%s3108 + $0x414] sm:$0xff]
        %v3284 = vld [vmem:[%s3108 + $0x41c] sm:$0xf]
        %v3285 = vld [vmem:[%s3108 + $0x420] sm:$0xff]
        %v3286 = vld [vmem:[%s3108 + $0x428] sm:$0xf]
        %v3287 = vld [vmem:[%s3108 + $0x42c] sm:$0xff]
        %v3288 = vld [vmem:[%s3108 + $0x434] sm:$0xf]
        %v3289 = vld [vmem:[%s3108 + $0x438] sm:$0xff]
        %v3290 = vld [vmem:[%s3108 + $0x440] sm:$0xf]
        %v3291 = vld [vmem:[%s3108 + $0x444] sm:$0xff]
        %v3292 = vld [vmem:[%s3108 + $0x44c] sm:$0xf]
        %v3293 = vld [vmem:[%s3108 + $0x450] sm:$0xff]
        %v3294 = vld [vmem:[%s3108 + $0x458] sm:$0xf]
        %v3295 = vld [vmem:[%s3108 + $0x45c] sm:$0xff]
        %v3296 = vld [vmem:[%s3108 + $0x464] sm:$0xf]
        %v3297 = vld [vmem:[%s3108 + $0x468] sm:$0xff]
        %v3298 = vld [vmem:[%s3108 + $0x470] sm:$0xf]
        %v3299 = vld [vmem:[%s3108 + $0x474] sm:$0xff]
        %v3300 = vld [vmem:[%s3108 + $0x47c] sm:$0xf]
        %v3493 = vunpack.c.l.b16 %v3109
        %v3494 = vunpack.c.h.b16 %v3109
        %v3495 = vunpack.c.l.b16 %v3110
        %v3496 = vunpack.c.l.b16 %v3111
        %v3497 = vunpack.c.h.b16 %v3111
        %v3498 = vunpack.c.l.b16 %v3112
        %v3499 = vunpack.c.l.b16 %v3113
        %v3500 = vunpack.c.h.b16 %v3113
        %v3501 = vunpack.c.l.b16 %v3114
        %v3502 = vunpack.c.l.b16 %v3115
        %v3503 = vunpack.c.h.b16 %v3115
        %v3504 = vunpack.c.l.b16 %v3116
        %v3505 = vunpack.c.l.b16 %v3117
        %v3506 = vunpack.c.h.b16 %v3117
        %v3507 = vunpack.c.l.b16 %v3118
        %v3508 = vunpack.c.l.b16 %v3119
        %v3509 = vunpack.c.h.b16 %v3119
        %v3510 = vunpack.c.l.b16 %v3120
        %v3511 = vunpack.c.l.b16 %v3121
        %v3512 = vunpack.c.h.b16 %v3121
        %v3513 = vunpack.c.l.b16 %v3122
        %v3514 = vunpack.c.l.b16 %v3123
        %v3515 = vunpack.c.h.b16 %v3123
        %v3516 = vunpack.c.l.b16 %v3124
        %v3517 = vunpack.c.l.b16 %v3125
        %v3518 = vunpack.c.h.b16 %v3125
        %v3519 = vunpack.c.l.b16 %v3126
        %v3520 = vunpack.c.l.b16 %v3127
        %v3521 = vunpack.c.h.b16 %v3127
        %v3522 = vunpack.c.l.b16 %v3128
        %v3523 = vunpack.c.l.b16 %v3129
        %v3524 = vunpack.c.h.b16 %v3129
        %v3525 = vunpack.c.l.b16 %v3130
        %v3526 = vunpack.c.l.b16 %v3131
        %v3527 = vunpack.c.h.b16 %v3131
        %v3528 = vunpack.c.l.b16 %v3132
        %v3529 = vunpack.c.l.b16 %v3133
        %v3530 = vunpack.c.h.b16 %v3133
        %v3531 = vunpack.c.l.b16 %v3134
        %v3532 = vunpack.c.l.b16 %v3135
        %v3533 = vunpack.c.h.b16 %v3135
        %v3534 = vunpack.c.l.b16 %v3136
        %v3535 = vunpack.c.l.b16 %v3137
        %v3536 = vunpack.c.h.b16 %v3137
        %v3537 = vunpack.c.l.b16 %v3138
        %v3538 = vunpack.c.l.b16 %v3139
        %v3539 = vunpack.c.h.b16 %v3139
        %v3540 = vunpack.c.l.b16 %v3140
        %v3541 = vunpack.c.l.b16 %v3141
        %v3542 = vunpack.c.h.b16 %v3141
        %v3543 = vunpack.c.l.b16 %v3142
        %v3544 = vunpack.c.l.b16 %v3143
        %v3545 = vunpack.c.h.b16 %v3143
        %v3546 = vunpack.c.l.b16 %v3144
        %v3547 = vunpack.c.l.b16 %v3145
        %v3548 = vunpack.c.h.b16 %v3145
        %v3549 = vunpack.c.l.b16 %v3146
        %v3550 = vunpack.c.l.b16 %v3147
        %v3551 = vunpack.c.h.b16 %v3147
        %v3552 = vunpack.c.l.b16 %v3148
        %v3553 = vunpack.c.l.b16 %v3149
        %v3554 = vunpack.c.h.b16 %v3149
        %v3555 = vunpack.c.l.b16 %v3150
        %v3556 = vunpack.c.l.b16 %v3151
        %v3557 = vunpack.c.h.b16 %v3151
        %v3558 = vunpack.c.l.b16 %v3152
        %v3559 = vunpack.c.l.b16 %v3153
        %v3560 = vunpack.c.h.b16 %v3153
        %v3561 = vunpack.c.l.b16 %v3154
        %v3562 = vunpack.c.l.b16 %v3155
        %v3563 = vunpack.c.h.b16 %v3155
        %v3564 = vunpack.c.l.b16 %v3156
        %v3565 = vunpack.c.l.b16 %v3157
        %v3566 = vunpack.c.h.b16 %v3157
        %v3567 = vunpack.c.l.b16 %v3158
        %v3568 = vunpack.c.l.b16 %v3159
        %v3569 = vunpack.c.h.b16 %v3159
        %v3570 = vunpack.c.l.b16 %v3160
        %v3571 = vunpack.c.l.b16 %v3161
        %v3572 = vunpack.c.h.b16 %v3161
        %v3573 = vunpack.c.l.b16 %v3162
        %v3574 = vunpack.c.l.b16 %v3163
        %v3575 = vunpack.c.h.b16 %v3163
        %v3576 = vunpack.c.l.b16 %v3164
        %v3577 = vunpack.c.l.b16 %v3165
        %v3578 = vunpack.c.h.b16 %v3165
        %v3579 = vunpack.c.l.b16 %v3166
        %v3580 = vunpack.c.l.b16 %v3167
        %v3581 = vunpack.c.h.b16 %v3167
        %v3582 = vunpack.c.l.b16 %v3168
        %v3583 = vunpack.c.l.b16 %v3169
        %v3584 = vunpack.c.h.b16 %v3169
        %v3585 = vunpack.c.l.b16 %v3170
        %v3586 = vunpack.c.l.b16 %v3171
        %v3587 = vunpack.c.h.b16 %v3171
        %v3588 = vunpack.c.l.b16 %v3172
        %v3589 = vunpack.c.l.b16 %v3173
        %v3590 = vunpack.c.h.b16 %v3173
        %v3591 = vunpack.c.l.b16 %v3174
        %v3592 = vunpack.c.l.b16 %v3175
        %v3593 = vunpack.c.h.b16 %v3175
        %v3594 = vunpack.c.l.b16 %v3176
        %v3595 = vunpack.c.l.b16 %v3177
        %v3596 = vunpack.c.h.b16 %v3177
        %v3597 = vunpack.c.l.b16 %v3178
        %v3598 = vunpack.c.l.b16 %v3179
        %v3599 = vunpack.c.h.b16 %v3179
        %v3600 = vunpack.c.l.b16 %v3180
        %v3601 = vunpack.c.l.b16 %v3181
        %v3602 = vunpack.c.h.b16 %v3181
        %v3603 = vunpack.c.l.b16 %v3182
        %v3604 = vunpack.c.l.b16 %v3183
        %v3605 = vunpack.c.h.b16 %v3183
        %v3606 = vunpack.c.l.b16 %v3184
        %v3607 = vunpack.c.l.b16 %v3185
        %v3608 = vunpack.c.h.b16 %v3185
        %v3609 = vunpack.c.l.b16 %v3186
        %v3610 = vunpack.c.l.b16 %v3187
        %v3611 = vunpack.c.h.b16 %v3187
        %v3612 = vunpack.c.l.b16 %v3188
        %v3613 = vunpack.c.l.b16 %v3189
        %v3614 = vunpack.c.h.b16 %v3189
        %v3615 = vunpack.c.l.b16 %v3190
        %v3616 = vunpack.c.l.b16 %v3191
        %v3617 = vunpack.c.h.b16 %v3191
        %v3618 = vunpack.c.l.b16 %v3192
        %v3619 = vunpack.c.l.b16 %v3193
        %v3620 = vunpack.c.h.b16 %v3193
        %v3621 = vunpack.c.l.b16 %v3194
        %v3622 = vunpack.c.l.b16 %v3195
        %v3623 = vunpack.c.h.b16 %v3195
        %v3624 = vunpack.c.l.b16 %v3196
        %v3625 = vunpack.c.l.b16 %v3197
        %v3626 = vunpack.c.h.b16 %v3197
        %v3627 = vunpack.c.l.b16 %v3198
        %v3628 = vunpack.c.l.b16 %v3199
        %v3629 = vunpack.c.h.b16 %v3199
        %v3630 = vunpack.c.l.b16 %v3200
        %v3631 = vunpack.c.l.b16 %v3201
        %v3632 = vunpack.c.h.b16 %v3201
        %v3633 = vunpack.c.l.b16 %v3202
        %v3634 = vunpack.c.l.b16 %v3203
        %v3635 = vunpack.c.h.b16 %v3203
        %v3636 = vunpack.c.l.b16 %v3204
        %v3637 = vunpack.c.l.b16 %v3205
        %v3638 = vunpack.c.h.b16 %v3205
        %v3639 = vunpack.c.l.b16 %v3206
        %v3640 = vunpack.c.l.b16 %v3207
        %v3641 = vunpack.c.h.b16 %v3207
        %v3642 = vunpack.c.l.b16 %v3208
        %v3643 = vunpack.c.l.b16 %v3209
        %v3644 = vunpack.c.h.b16 %v3209
        %v3645 = vunpack.c.l.b16 %v3210
        %v3646 = vunpack.c.l.b16 %v3211
        %v3647 = vunpack.c.h.b16 %v3211
        %v3648 = vunpack.c.l.b16 %v3212
        %v3649 = vunpack.c.l.b16 %v3213
        %v3650 = vunpack.c.h.b16 %v3213
        %v3651 = vunpack.c.l.b16 %v3214
        %v3652 = vunpack.c.l.b16 %v3215
        %v3653 = vunpack.c.h.b16 %v3215
        %v3654 = vunpack.c.l.b16 %v3216
        %v3655 = vunpack.c.l.b16 %v3217
        %v3656 = vunpack.c.h.b16 %v3217
        %v3657 = vunpack.c.l.b16 %v3218
        %v3658 = vunpack.c.l.b16 %v3219
        %v3659 = vunpack.c.h.b16 %v3219
        %v3660 = vunpack.c.l.b16 %v3220
        %v3661 = vunpack.c.l.b16 %v3221
        %v3662 = vunpack.c.h.b16 %v3221
        %v3663 = vunpack.c.l.b16 %v3222
        %v3664 = vunpack.c.l.b16 %v3223
        %v3665 = vunpack.c.h.b16 %v3223
        %v3666 = vunpack.c.l.b16 %v3224
        %v3667 = vunpack.c.l.b16 %v3225
        %v3668 = vunpack.c.h.b16 %v3225
        %v3669 = vunpack.c.l.b16 %v3226
        %v3670 = vunpack.c.l.b16 %v3227
        %v3671 = vunpack.c.h.b16 %v3227
        %v3672 = vunpack.c.l.b16 %v3228
        %v3673 = vunpack.c.l.b16 %v3229
        %v3674 = vunpack.c.h.b16 %v3229
        %v3675 = vunpack.c.l.b16 %v3230
        %v3676 = vunpack.c.l.b16 %v3231
        %v3677 = vunpack.c.h.b16 %v3231
        %v3678 = vunpack.c.l.b16 %v3232
        %v3679 = vunpack.c.l.b16 %v3233
        %v3680 = vunpack.c.h.b16 %v3233
        %v3681 = vunpack.c.l.b16 %v3234
        %v3682 = vunpack.c.l.b16 %v3235
        %v3683 = vunpack.c.h.b16 %v3235
        %v3684 = vunpack.c.l.b16 %v3236
        %v3685 = vunpack.c.l.b16 %v3237
        %v3686 = vunpack.c.h.b16 %v3237
        %v3687 = vunpack.c.l.b16 %v3238
        %v3688 = vunpack.c.l.b16 %v3239
        %v3689 = vunpack.c.h.b16 %v3239
        %v3690 = vunpack.c.l.b16 %v3240
        %v3691 = vunpack.c.l.b16 %v3241
        %v3692 = vunpack.c.h.b16 %v3241
        %v3693 = vunpack.c.l.b16 %v3242
        %v3694 = vunpack.c.l.b16 %v3243
        %v3695 = vunpack.c.h.b16 %v3243
        %v3696 = vunpack.c.l.b16 %v3244
        %v3697 = vunpack.c.l.b16 %v3245
        %v3698 = vunpack.c.h.b16 %v3245
        %v3699 = vunpack.c.l.b16 %v3246
        %v3700 = vunpack.c.l.b16 %v3247
        %v3701 = vunpack.c.h.b16 %v3247
        %v3702 = vunpack.c.l.b16 %v3248
        %v3703 = vunpack.c.l.b16 %v3249
        %v3704 = vunpack.c.h.b16 %v3249
        %v3705 = vunpack.c.l.b16 %v3250
        %v3706 = vunpack.c.l.b16 %v3251
        %v3707 = vunpack.c.h.b16 %v3251
        %v3708 = vunpack.c.l.b16 %v3252
        %v3709 = vunpack.c.l.b16 %v3253
        %v3710 = vunpack.c.h.b16 %v3253
        %v3711 = vunpack.c.l.b16 %v3254
        %v3712 = vunpack.c.l.b16 %v3255
        %v3713 = vunpack.c.h.b16 %v3255
        %v3714 = vunpack.c.l.b16 %v3256
        %v3715 = vunpack.c.l.b16 %v3257
        %v3716 = vunpack.c.h.b16 %v3257
        %v3717 = vunpack.c.l.b16 %v3258
        %v3718 = vunpack.c.l.b16 %v3259
        %v3719 = vunpack.c.h.b16 %v3259
        %v3720 = vunpack.c.l.b16 %v3260
        %v3721 = vunpack.c.l.b16 %v3261
        %v3722 = vunpack.c.h.b16 %v3261
        %v3723 = vunpack.c.l.b16 %v3262
        %v3724 = vunpack.c.l.b16 %v3263
        %v3725 = vunpack.c.h.b16 %v3263
        %v3726 = vunpack.c.l.b16 %v3264
        %v3727 = vunpack.c.l.b16 %v3265
        %v3728 = vunpack.c.h.b16 %v3265
        %v3729 = vunpack.c.l.b16 %v3266
        %v3730 = vunpack.c.l.b16 %v3267
        %v3731 = vunpack.c.h.b16 %v3267
        %v3732 = vunpack.c.l.b16 %v3268
        %v3733 = vunpack.c.l.b16 %v3269
        %v3734 = vunpack.c.h.b16 %v3269
        %v3735 = vunpack.c.l.b16 %v3270
        %v3736 = vunpack.c.l.b16 %v3271
        %v3737 = vunpack.c.h.b16 %v3271
        %v3738 = vunpack.c.l.b16 %v3272
        %v3739 = vunpack.c.l.b16 %v3273
        %v3740 = vunpack.c.h.b16 %v3273
        %v3741 = vunpack.c.l.b16 %v3274
        %v3742 = vunpack.c.l.b16 %v3275
        %v3743 = vunpack.c.h.b16 %v3275
        %v3744 = vunpack.c.l.b16 %v3276
        %v3745 = vunpack.c.l.b16 %v3277
        %v3746 = vunpack.c.h.b16 %v3277
        %v3747 = vunpack.c.l.b16 %v3278
        %v3748 = vunpack.c.l.b16 %v3279
        %v3749 = vunpack.c.h.b16 %v3279
        %v3750 = vunpack.c.l.b16 %v3280
        %v3751 = vunpack.c.l.b16 %v3281
        %v3752 = vunpack.c.h.b16 %v3281
        %v3753 = vunpack.c.l.b16 %v3282
        %v3754 = vunpack.c.l.b16 %v3283
        %v3755 = vunpack.c.h.b16 %v3283
        %v3756 = vunpack.c.l.b16 %v3284
        %v3757 = vunpack.c.l.b16 %v3285
        %v3758 = vunpack.c.h.b16 %v3285
        %v3759 = vunpack.c.l.b16 %v3286
        %v3760 = vunpack.c.l.b16 %v3287
        %v3761 = vunpack.c.h.b16 %v3287
        %v3762 = vunpack.c.l.b16 %v3288
        %v3763 = vunpack.c.l.b16 %v3289
        %v3764 = vunpack.c.h.b16 %v3289
        %v3765 = vunpack.c.l.b16 %v3290
        %v3766 = vunpack.c.l.b16 %v3291
        %v3767 = vunpack.c.h.b16 %v3291
        %v3768 = vunpack.c.l.b16 %v3292
        %v3769 = vunpack.c.l.b16 %v3293
        %v3770 = vunpack.c.h.b16 %v3293
        %v3771 = vunpack.c.l.b16 %v3294
        %v3772 = vunpack.c.l.b16 %v3295
        %v3773 = vunpack.c.h.b16 %v3295
        %v3774 = vunpack.c.l.b16 %v3296
        %v3775 = vunpack.c.l.b16 %v3297
        %v3776 = vunpack.c.h.b16 %v3297
        %v3777 = vunpack.c.l.b16 %v3298
        %v3778 = vunpack.c.l.b16 %v3299
        %v3779 = vunpack.c.h.b16 %v3299
        %v3780 = vunpack.c.l.b16 %v3300
        %v3781 = vpack.c.b16 %v3496, %v3493
        %v3782 = vpack.c.b16 %v3497, %v3494
        %v3783 = vpack.c.b16 %v3498, %v3495
        %v3784 = vpack.c.b16 %v3502, %v3499
        %v3785 = vpack.c.b16 %v3503, %v3500
        %v3786 = vpack.c.b16 %v3504, %v3501
        %v3787 = vpack.c.b16 %v3508, %v3505
        %v3788 = vpack.c.b16 %v3509, %v3506
        %v3789 = vpack.c.b16 %v3510, %v3507
        %v3790 = vpack.c.b16 %v3514, %v3511
        %v3791 = vpack.c.b16 %v3515, %v3512
        %v3792 = vpack.c.b16 %v3516, %v3513
        %v3793 = vpack.c.b16 %v3520, %v3517
        %v3794 = vpack.c.b16 %v3521, %v3518
        %v3795 = vpack.c.b16 %v3522, %v3519
        %v3796 = vpack.c.b16 %v3526, %v3523
        %v3797 = vpack.c.b16 %v3527, %v3524
        %v3798 = vpack.c.b16 %v3528, %v3525
        %v3799 = vpack.c.b16 %v3532, %v3529
        %v3800 = vpack.c.b16 %v3533, %v3530
        %v3801 = vpack.c.b16 %v3534, %v3531
        %v3802 = vpack.c.b16 %v3538, %v3535
        %v3803 = vpack.c.b16 %v3539, %v3536
        %v3804 = vpack.c.b16 %v3540, %v3537
        %v3805 = vpack.c.b16 %v3544, %v3541
        %v3806 = vpack.c.b16 %v3545, %v3542
        %v3807 = vpack.c.b16 %v3546, %v3543
        %v3808 = vpack.c.b16 %v3550, %v3547
        %v3809 = vpack.c.b16 %v3551, %v3548
        %v3810 = vpack.c.b16 %v3552, %v3549
        %v3811 = vpack.c.b16 %v3556, %v3553
        %v3812 = vpack.c.b16 %v3557, %v3554
        %v3813 = vpack.c.b16 %v3558, %v3555
        %v3814 = vpack.c.b16 %v3562, %v3559
        %v3815 = vpack.c.b16 %v3563, %v3560
        %v3816 = vpack.c.b16 %v3564, %v3561
        %v3817 = vpack.c.b16 %v3568, %v3565
        %v3818 = vpack.c.b16 %v3569, %v3566
        %v3819 = vpack.c.b16 %v3570, %v3567
        %v3820 = vpack.c.b16 %v3574, %v3571
        %v3821 = vpack.c.b16 %v3575, %v3572
        %v3822 = vpack.c.b16 %v3576, %v3573
        %v3823 = vpack.c.b16 %v3580, %v3577
        %v3824 = vpack.c.b16 %v3581, %v3578
        %v3825 = vpack.c.b16 %v3582, %v3579
        %v3826 = vpack.c.b16 %v3586, %v3583
        %v3827 = vpack.c.b16 %v3587, %v3584
        %v3828 = vpack.c.b16 %v3588, %v3585
        %v3829 = vpack.c.b16 %v3592, %v3589
        %v3830 = vpack.c.b16 %v3593, %v3590
        %v3831 = vpack.c.b16 %v3594, %v3591
        %v3832 = vpack.c.b16 %v3598, %v3595
        %v3833 = vpack.c.b16 %v3599, %v3596
        %v3834 = vpack.c.b16 %v3600, %v3597
        %v3835 = vpack.c.b16 %v3604, %v3601
        %v3836 = vpack.c.b16 %v3605, %v3602
        %v3837 = vpack.c.b16 %v3606, %v3603
        %v3838 = vpack.c.b16 %v3610, %v3607
        %v3839 = vpack.c.b16 %v3611, %v3608
        %v3840 = vpack.c.b16 %v3612, %v3609
        %v3841 = vpack.c.b16 %v3616, %v3613
        %v3842 = vpack.c.b16 %v3617, %v3614
        %v3843 = vpack.c.b16 %v3618, %v3615
        %v3844 = vpack.c.b16 %v3622, %v3619
        %v3845 = vpack.c.b16 %v3623, %v3620
        %v3846 = vpack.c.b16 %v3624, %v3621
        %v3847 = vpack.c.b16 %v3628, %v3625
        %v3848 = vpack.c.b16 %v3629, %v3626
        %v3849 = vpack.c.b16 %v3630, %v3627
        %v3850 = vpack.c.b16 %v3634, %v3631
        %v3851 = vpack.c.b16 %v3635, %v3632
        %v3852 = vpack.c.b16 %v3636, %v3633
        %v3853 = vpack.c.b16 %v3640, %v3637
        %v3854 = vpack.c.b16 %v3641, %v3638
        %v3855 = vpack.c.b16 %v3642, %v3639
        %v3856 = vpack.c.b16 %v3646, %v3643
        %v3857 = vpack.c.b16 %v3647, %v3644
        %v3858 = vpack.c.b16 %v3648, %v3645
        %v3859 = vpack.c.b16 %v3652, %v3649
        %v3860 = vpack.c.b16 %v3653, %v3650
        %v3861 = vpack.c.b16 %v3654, %v3651
        %v3862 = vpack.c.b16 %v3658, %v3655
        %v3863 = vpack.c.b16 %v3659, %v3656
        %v3864 = vpack.c.b16 %v3660, %v3657
        %v3865 = vpack.c.b16 %v3664, %v3661
        %v3866 = vpack.c.b16 %v3665, %v3662
        %v3867 = vpack.c.b16 %v3666, %v3663
        %v3868 = vpack.c.b16 %v3670, %v3667
        %v3869 = vpack.c.b16 %v3671, %v3668
        %v3870 = vpack.c.b16 %v3672, %v3669
        %v3871 = vpack.c.b16 %v3676, %v3673
        %v3872 = vpack.c.b16 %v3677, %v3674
        %v3873 = vpack.c.b16 %v3678, %v3675
        %v3874 = vpack.c.b16 %v3682, %v3679
        %v3875 = vpack.c.b16 %v3683, %v3680
        %v3876 = vpack.c.b16 %v3684, %v3681
        %v3877 = vpack.c.b16 %v3688, %v3685
        %v3878 = vpack.c.b16 %v3689, %v3686
        %v3879 = vpack.c.b16 %v3690, %v3687
        %v3880 = vpack.c.b16 %v3694, %v3691
        %v3881 = vpack.c.b16 %v3695, %v3692
        %v3882 = vpack.c.b16 %v3696, %v3693
        %v3883 = vpack.c.b16 %v3700, %v3697
        %v3884 = vpack.c.b16 %v3701, %v3698
        %v3885 = vpack.c.b16 %v3702, %v3699
        %v3886 = vpack.c.b16 %v3706, %v3703
        %v3887 = vpack.c.b16 %v3707, %v3704
        %v3888 = vpack.c.b16 %v3708, %v3705
        %v3889 = vpack.c.b16 %v3712, %v3709
        %v3890 = vpack.c.b16 %v3713, %v3710
        %v3891 = vpack.c.b16 %v3714, %v3711
        %v3892 = vpack.c.b16 %v3718, %v3715
        %v3893 = vpack.c.b16 %v3719, %v3716
        %v3894 = vpack.c.b16 %v3720, %v3717
        %v3895 = vpack.c.b16 %v3724, %v3721
        %v3896 = vpack.c.b16 %v3725, %v3722
        %v3897 = vpack.c.b16 %v3726, %v3723
        %v3898 = vpack.c.b16 %v3730, %v3727
        %v3899 = vpack.c.b16 %v3731, %v3728
        %v3900 = vpack.c.b16 %v3732, %v3729
        %v3901 = vpack.c.b16 %v3736, %v3733
        %v3902 = vpack.c.b16 %v3737, %v3734
        %v3903 = vpack.c.b16 %v3738, %v3735
        %v3904 = vpack.c.b16 %v3742, %v3739
        %v3905 = vpack.c.b16 %v3743, %v3740
        %v3906 = vpack.c.b16 %v3744, %v3741
        %v3907 = vpack.c.b16 %v3748, %v3745
        %v3908 = vpack.c.b16 %v3749, %v3746
        %v3909 = vpack.c.b16 %v3750, %v3747
        %v3910 = vpack.c.b16 %v3754, %v3751
        %v3911 = vpack.c.b16 %v3755, %v3752
        %v3912 = vpack.c.b16 %v3756, %v3753
        %v3913 = vpack.c.b16 %v3760, %v3757
        %v3914 = vpack.c.b16 %v3761, %v3758
        %v3915 = vpack.c.b16 %v3762, %v3759
        %v3916 = vpack.c.b16 %v3766, %v3763
        %v3917 = vpack.c.b16 %v3767, %v3764
        %v3918 = vpack.c.b16 %v3768, %v3765
        %v3919 = vpack.c.b16 %v3772, %v3769
        %v3920 = vpack.c.b16 %v3773, %v3770
        %v3921 = vpack.c.b16 %v3774, %v3771
        %v3922 = vpack.c.b16 %v3778, %v3775
        %v3923 = vpack.c.b16 %v3779, %v3776
        %v3924 = vpack.c.b16 %v3780, %v3777
        %4069 = vmatpush.bf16.msra.mxu0 %v3802
        %4070 = vmatpush.bf16.msra.mxu0 %v3799
        %4071 = vmatpush.bf16.msra.mxu0 %v3796
        %4072 = vmatpush.bf16.msra.mxu0 %v3793
        %4073 = vmatpush.bf16.msra.mxu0 %v3790
        %4074 = vmatpush.bf16.msra.mxu0 %v3787
        %4075 = vmatpush.bf16.msra.mxu0 %v3784
        %4076 = vmatpush.bf16.msra.mxu0 %v3781
        %4077 = vmatmul.bf16.gmra.mxu0 %v663
        %v4078 = vpop.f32.mrf.mxu0
        %v4079 = vadd.f32 0.0, %v4078
        %v4080 = vpop.f32.mrf.mxu0
        %v4081 = vadd.f32 0.0, %v4080
        %4082 = vmatmul.bf16.gmra.mxu0 %v669
        %v4083 = vpop.f32.mrf.mxu0
        %v4084 = vadd.f32 0.0, %v4083
        %v4085 = vpop.f32.mrf.mxu0
        %v4086 = vadd.f32 0.0, %v4085
        %4087 = vdwg.mxu0
        %4088 = vmatpush.bf16.msra.mxu0 %v3826
        %4089 = vmatpush.bf16.msra.mxu0 %v3823
        %4090 = vmatpush.bf16.msra.mxu0 %v3820
        %4091 = vmatpush.bf16.msra.mxu0 %v3817
        %4092 = vmatpush.bf16.msra.mxu0 %v3814
        %4093 = vmatpush.bf16.msra.mxu0 %v3811
        %4094 = vmatpush.bf16.msra.mxu0 %v3808
        %4095 = vmatpush.bf16.msra.mxu0 %v3805
        %4096 = vmatmul.bf16.gmra.mxu0 %v664
        %v4097 = vpop.f32.mrf.mxu0
        %v4098 = vadd.f32 %v4079, %v4097
        %v4099 = vpop.f32.mrf.mxu0
        %v4100 = vadd.f32 %v4081, %v4099
        %4101 = vmatmul.bf16.gmra.mxu0 %v670
        %v4102 = vpop.f32.mrf.mxu0
        %v4103 = vadd.f32 %v4084, %v4102
        %v4104 = vpop.f32.mrf.mxu0
        %v4105 = vadd.f32 %v4086, %v4104
        %4106 = vdwg.mxu0
        %4107 = vmatpush.bf16.msra.mxu0 %v3850
        %4108 = vmatpush.bf16.msra.mxu0 %v3847
        %4109 = vmatpush.bf16.msra.mxu0 %v3844
        %4110 = vmatpush.bf16.msra.mxu0 %v3841
        %4111 = vmatpush.bf16.msra.mxu0 %v3838
        %4112 = vmatpush.bf16.msra.mxu0 %v3835
        %4113 = vmatpush.bf16.msra.mxu0 %v3832
        %4114 = vmatpush.bf16.msra.mxu0 %v3829
        %4115 = vmatmul.bf16.gmra.mxu0 %v665
        %v4116 = vpop.f32.mrf.mxu0
        %v4117 = vadd.f32 %v4098, %v4116
        %v4118 = vpop.f32.mrf.mxu0
        %v4119 = vadd.f32 %v4100, %v4118
        %4120 = vmatmul.bf16.gmra.mxu0 %v671
        %v4121 = vpop.f32.mrf.mxu0
        %v4122 = vadd.f32 %v4103, %v4121
        %v4123 = vpop.f32.mrf.mxu0
        %v4124 = vadd.f32 %v4105, %v4123
        %4125 = vdwg.mxu0
        %4126 = vmatpush.bf16.msra.mxu0 %v3874
        %4127 = vmatpush.bf16.msra.mxu0 %v3871
        %4128 = vmatpush.bf16.msra.mxu0 %v3868
        %4129 = vmatpush.bf16.msra.mxu0 %v3865
        %4130 = vmatpush.bf16.msra.mxu0 %v3862
        %4131 = vmatpush.bf16.msra.mxu0 %v3859
        %4132 = vmatpush.bf16.msra.mxu0 %v3856
        %4133 = vmatpush.bf16.msra.mxu0 %v3853
        %4134 = vmatmul.bf16.gmra.mxu0 %v666
        %v4135 = vpop.f32.mrf.mxu0
        %v4136 = vadd.f32 %v4117, %v4135
        %v4137 = vpop.f32.mrf.mxu0
        %v4138 = vadd.f32 %v4119, %v4137
        %4139 = vmatmul.bf16.gmra.mxu0 %v672
        %v4140 = vpop.f32.mrf.mxu0
        %v4141 = vadd.f32 %v4122, %v4140
        %v4142 = vpop.f32.mrf.mxu0
        %v4143 = vadd.f32 %v4124, %v4142
        %4144 = vdwg.mxu0
        %4145 = vmatpush.bf16.msra.mxu0 %v3898
        %4146 = vmatpush.bf16.msra.mxu0 %v3895
        %4147 = vmatpush.bf16.msra.mxu0 %v3892
        %4148 = vmatpush.bf16.msra.mxu0 %v3889
        %4149 = vmatpush.bf16.msra.mxu0 %v3886
        %4150 = vmatpush.bf16.msra.mxu0 %v3883
        %4151 = vmatpush.bf16.msra.mxu0 %v3880
        %4152 = vmatpush.bf16.msra.mxu0 %v3877
        %4153 = vmatmul.bf16.gmra.mxu0 %v667
        %v4154 = vpop.f32.mrf.mxu0
        %v4155 = vadd.f32 %v4136, %v4154
        %v4156 = vpop.f32.mrf.mxu0
        %v4157 = vadd.f32 %v4138, %v4156
        %4158 = vmatmul.bf16.gmra.mxu0 %v673
        %v4159 = vpop.f32.mrf.mxu0
        %v4160 = vadd.f32 %v4141, %v4159
        %v4161 = vpop.f32.mrf.mxu0
        %v4162 = vadd.f32 %v4143, %v4161
        %4163 = vdwg.mxu0
        %4164 = vmatpush.bf16.msra.mxu0 %v3922
        %4165 = vmatpush.bf16.msra.mxu0 %v3919
        %4166 = vmatpush.bf16.msra.mxu0 %v3916
        %4167 = vmatpush.bf16.msra.mxu0 %v3913
        %4168 = vmatpush.bf16.msra.mxu0 %v3910
        %4169 = vmatpush.bf16.msra.mxu0 %v3907
        %4170 = vmatpush.bf16.msra.mxu0 %v3904
        %4171 = vmatpush.bf16.msra.mxu0 %v3901
        %4172 = vmatmul.bf16.gmra.mxu0 %v668
        %v4173 = vpop.f32.mrf.mxu0
        %v4174 = vadd.f32 %v4155, %v4173
        %v4175 = vpop.f32.mrf.mxu0
        %v4176 = vadd.f32 %v4157, %v4175
        %4177 = vmatmul.bf16.gmra.mxu0 %v674
        %v4178 = vpop.f32.mrf.mxu0
        %v4179 = vadd.f32 %v4160, %v4178
        %v4180 = vpop.f32.mrf.mxu0
        %v4181 = vadd.f32 %v4162, %v4180
        %4182 = vdwg.mxu0
        %4183 = vmatpush.bf16.msra.mxu0 %v3803
        %4184 = vmatpush.bf16.msra.mxu0 %v3800
        %4185 = vmatpush.bf16.msra.mxu0 %v3797
        %4186 = vmatpush.bf16.msra.mxu0 %v3794
        %4187 = vmatpush.bf16.msra.mxu0 %v3791
        %4188 = vmatpush.bf16.msra.mxu0 %v3788
        %4189 = vmatpush.bf16.msra.mxu0 %v3785
        %4190 = vmatpush.bf16.msra.mxu0 %v3782
        %4191 = vmatmul.bf16.gmra.mxu0 %v663
        %v4192 = vpop.f32.mrf.mxu0
        %v4193 = vadd.f32 0.0, %v4192
        %v4194 = vpop.f32.mrf.mxu0
        %v4195 = vadd.f32 0.0, %v4194
        %4196 = vmatmul.bf16.gmra.mxu0 %v669
        %v4197 = vpop.f32.mrf.mxu0
        %v4198 = vadd.f32 0.0, %v4197
        %v4199 = vpop.f32.mrf.mxu0
        %v4200 = vadd.f32 0.0, %v4199
        %4201 = vdwg.mxu0
        %4202 = vmatpush.bf16.msra.mxu0 %v3827
        %4203 = vmatpush.bf16.msra.mxu0 %v3824
        %4204 = vmatpush.bf16.msra.mxu0 %v3821
        %4205 = vmatpush.bf16.msra.mxu0 %v3818
        %4206 = vmatpush.bf16.msra.mxu0 %v3815
        %4207 = vmatpush.bf16.msra.mxu0 %v3812
        %4208 = vmatpush.bf16.msra.mxu0 %v3809
        %4209 = vmatpush.bf16.msra.mxu0 %v3806
        %4210 = vmatmul.bf16.gmra.mxu0 %v664
        %v4211 = vpop.f32.mrf.mxu0
        %v4212 = vadd.f32 %v4193, %v4211
        %v4213 = vpop.f32.mrf.mxu0
        %v4214 = vadd.f32 %v4195, %v4213
        %4215 = vmatmul.bf16.gmra.mxu0 %v670
        %v4216 = vpop.f32.mrf.mxu0
        %v4217 = vadd.f32 %v4198, %v4216
        %v4218 = vpop.f32.mrf.mxu0
        %v4219 = vadd.f32 %v4200, %v4218
        %4220 = vdwg.mxu0
        %4221 = vmatpush.bf16.msra.mxu0 %v3851
        %4222 = vmatpush.bf16.msra.mxu0 %v3848
        %4223 = vmatpush.bf16.msra.mxu0 %v3845
        %4224 = vmatpush.bf16.msra.mxu0 %v3842
        %4225 = vmatpush.bf16.msra.mxu0 %v3839
        %4226 = vmatpush.bf16.msra.mxu0 %v3836
        %4227 = vmatpush.bf16.msra.mxu0 %v3833
        %4228 = vmatpush.bf16.msra.mxu0 %v3830
        %4229 = vmatmul.bf16.gmra.mxu0 %v665
        %v4230 = vpop.f32.mrf.mxu0
        %v4231 = vadd.f32 %v4212, %v4230
        %v4232 = vpop.f32.mrf.mxu0
        %v4233 = vadd.f32 %v4214, %v4232
        %4234 = vmatmul.bf16.gmra.mxu0 %v671
        %v4235 = vpop.f32.mrf.mxu0
        %v4236 = vadd.f32 %v4217, %v4235
        %v4237 = vpop.f32.mrf.mxu0
        %v4238 = vadd.f32 %v4219, %v4237
        %4239 = vdwg.mxu0
        %4240 = vmatpush.bf16.msra.mxu0 %v3875
        %4241 = vmatpush.bf16.msra.mxu0 %v3872
        %4242 = vmatpush.bf16.msra.mxu0 %v3869
        %4243 = vmatpush.bf16.msra.mxu0 %v3866
        %4244 = vmatpush.bf16.msra.mxu0 %v3863
        %4245 = vmatpush.bf16.msra.mxu0 %v3860
        %4246 = vmatpush.bf16.msra.mxu0 %v3857
        %4247 = vmatpush.bf16.msra.mxu0 %v3854
        %4248 = vmatmul.bf16.gmra.mxu0 %v666
        %v4249 = vpop.f32.mrf.mxu0
        %v4250 = vadd.f32 %v4231, %v4249
        %v4251 = vpop.f32.mrf.mxu0
        %v4252 = vadd.f32 %v4233, %v4251
        %4253 = vmatmul.bf16.gmra.mxu0 %v672
        %v4254 = vpop.f32.mrf.mxu0
        %v4255 = vadd.f32 %v4236, %v4254
        %v4256 = vpop.f32.mrf.mxu0
        %v4257 = vadd.f32 %v4238, %v4256
        %4258 = vdwg.mxu0
        %4259 = vmatpush.bf16.msra.mxu0 %v3899
        %4260 = vmatpush.bf16.msra.mxu0 %v3896
        %4261 = vmatpush.bf16.msra.mxu0 %v3893
        %4262 = vmatpush.bf16.msra.mxu0 %v3890
        %4263 = vmatpush.bf16.msra.mxu0 %v3887
        %4264 = vmatpush.bf16.msra.mxu0 %v3884
        %4265 = vmatpush.bf16.msra.mxu0 %v3881
        %4266 = vmatpush.bf16.msra.mxu0 %v3878
        %4267 = vmatmul.bf16.gmra.mxu0 %v667
        %v4268 = vpop.f32.mrf.mxu0
        %v4269 = vadd.f32 %v4250, %v4268
        %v4270 = vpop.f32.mrf.mxu0
        %v4271 = vadd.f32 %v4252, %v4270
        %4272 = vmatmul.bf16.gmra.mxu0 %v673
        %v4273 = vpop.f32.mrf.mxu0
        %v4274 = vadd.f32 %v4255, %v4273
        %v4275 = vpop.f32.mrf.mxu0
        %v4276 = vadd.f32 %v4257, %v4275
        %4277 = vdwg.mxu0
        %4278 = vmatpush.bf16.msra.mxu0 %v3923
        %4279 = vmatpush.bf16.msra.mxu0 %v3920
        %4280 = vmatpush.bf16.msra.mxu0 %v3917
        %4281 = vmatpush.bf16.msra.mxu0 %v3914
        %4282 = vmatpush.bf16.msra.mxu0 %v3911
        %4283 = vmatpush.bf16.msra.mxu0 %v3908
        %4284 = vmatpush.bf16.msra.mxu0 %v3905
        %4285 = vmatpush.bf16.msra.mxu0 %v3902
        %4286 = vmatmul.bf16.gmra.mxu0 %v668
        %v4287 = vpop.f32.mrf.mxu0
        %v4288 = vadd.f32 %v4269, %v4287
        %v4289 = vpop.f32.mrf.mxu0
        %v4290 = vadd.f32 %v4271, %v4289
        %4291 = vmatmul.bf16.gmra.mxu0 %v674
        %v4292 = vpop.f32.mrf.mxu0
        %v4293 = vadd.f32 %v4274, %v4292
        %v4294 = vpop.f32.mrf.mxu0
        %v4295 = vadd.f32 %v4276, %v4294
        %4296 = vdwg.mxu0
        %4297 = vmatpush.bf16.msra.mxu0 %v3804
        %4298 = vmatpush.bf16.msra.mxu0 %v3801
        %4299 = vmatpush.bf16.msra.mxu0 %v3798
        %4300 = vmatpush.bf16.msra.mxu0 %v3795
        %4301 = vmatpush.bf16.msra.mxu0 %v3792
        %4302 = vmatpush.bf16.msra.mxu0 %v3789
        %4303 = vmatpush.bf16.msra.mxu0 %v3786
        %4304 = vmatpush.bf16.msra.mxu0 %v3783
        %4305 = vmatmul.bf16.gmra.mxu0 %v663
        %v4306 = vpop.f32.mrf.mxu0
        %v4307 = vadd.f32 0.0, %v4306
        %v4308 = vpop.f32.mrf.mxu0
        %v4309 = vadd.f32 0.0, %v4308
        %4310 = vmatmul.bf16.gmra.mxu0 %v669
        %v4311 = vpop.f32.mrf.mxu0
        %v4312 = vadd.f32 0.0, %v4311
        %v4313 = vpop.f32.mrf.mxu0
        %v4314 = vadd.f32 0.0, %v4313
        %4315 = vdwg.mxu0
        %4316 = vmatpush.bf16.msra.mxu0 %v3828
        %4317 = vmatpush.bf16.msra.mxu0 %v3825
        %4318 = vmatpush.bf16.msra.mxu0 %v3822
        %4319 = vmatpush.bf16.msra.mxu0 %v3819
        %4320 = vmatpush.bf16.msra.mxu0 %v3816
        %4321 = vmatpush.bf16.msra.mxu0 %v3813
        %4322 = vmatpush.bf16.msra.mxu0 %v3810
        %4323 = vmatpush.bf16.msra.mxu0 %v3807
        %4324 = vmatmul.bf16.gmra.mxu0 %v664
        %v4325 = vpop.f32.mrf.mxu0
        %v4326 = vadd.f32 %v4307, %v4325
        %v4327 = vpop.f32.mrf.mxu0
        %v4328 = vadd.f32 %v4309, %v4327
        %4329 = vmatmul.bf16.gmra.mxu0 %v670
        %v4330 = vpop.f32.mrf.mxu0
        %v4331 = vadd.f32 %v4312, %v4330
        %v4332 = vpop.f32.mrf.mxu0
        %v4333 = vadd.f32 %v4314, %v4332
        %4334 = vdwg.mxu0
        %4335 = vmatpush.bf16.msra.mxu0 %v3852
        %4336 = vmatpush.bf16.msra.mxu0 %v3849
        %4337 = vmatpush.bf16.msra.mxu0 %v3846
        %4338 = vmatpush.bf16.msra.mxu0 %v3843
        %4339 = vmatpush.bf16.msra.mxu0 %v3840
        %4340 = vmatpush.bf16.msra.mxu0 %v3837
        %4341 = vmatpush.bf16.msra.mxu0 %v3834
        %4342 = vmatpush.bf16.msra.mxu0 %v3831
        %4343 = vmatmul.bf16.gmra.mxu0 %v665
        %v4344 = vpop.f32.mrf.mxu0
        %v4345 = vadd.f32 %v4326, %v4344
        %v4346 = vpop.f32.mrf.mxu0
        %v4347 = vadd.f32 %v4328, %v4346
        %4348 = vmatmul.bf16.gmra.mxu0 %v671
        %v4349 = vpop.f32.mrf.mxu0
        %v4350 = vadd.f32 %v4331, %v4349
        %v4351 = vpop.f32.mrf.mxu0
        %v4352 = vadd.f32 %v4333, %v4351
        %4353 = vdwg.mxu0
        %4354 = vmatpush.bf16.msra.mxu0 %v3876
        %4355 = vmatpush.bf16.msra.mxu0 %v3873
        %4356 = vmatpush.bf16.msra.mxu0 %v3870
        %4357 = vmatpush.bf16.msra.mxu0 %v3867
        %4358 = vmatpush.bf16.msra.mxu0 %v3864
        %4359 = vmatpush.bf16.msra.mxu0 %v3861
        %4360 = vmatpush.bf16.msra.mxu0 %v3858
        %4361 = vmatpush.bf16.msra.mxu0 %v3855
        %4362 = vmatmul.bf16.gmra.mxu0 %v666
        %v4363 = vpop.f32.mrf.mxu0
        %v4364 = vadd.f32 %v4345, %v4363
        %v4365 = vpop.f32.mrf.mxu0
        %v4366 = vadd.f32 %v4347, %v4365
        %4367 = vmatmul.bf16.gmra.mxu0 %v672
        %v4368 = vpop.f32.mrf.mxu0
        %v4369 = vadd.f32 %v4350, %v4368
        %v4370 = vpop.f32.mrf.mxu0
        %v4371 = vadd.f32 %v4352, %v4370
        %4372 = vdwg.mxu0
        %4373 = vmatpush.bf16.msra.mxu0 %v3900
        %4374 = vmatpush.bf16.msra.mxu0 %v3897
        %4375 = vmatpush.bf16.msra.mxu0 %v3894
        %4376 = vmatpush.bf16.msra.mxu0 %v3891
        %4377 = vmatpush.bf16.msra.mxu0 %v3888
        %4378 = vmatpush.bf16.msra.mxu0 %v3885
        %4379 = vmatpush.bf16.msra.mxu0 %v3882
        %4380 = vmatpush.bf16.msra.mxu0 %v3879
        %4381 = vmatmul.bf16.gmra.mxu0 %v667
        %v4382 = vpop.f32.mrf.mxu0
        %v4383 = vadd.f32 %v4364, %v4382
        %v4384 = vpop.f32.mrf.mxu0
        %v4385 = vadd.f32 %v4366, %v4384
        %4386 = vmatmul.bf16.gmra.mxu0 %v673
        %v4387 = vpop.f32.mrf.mxu0
        %v4388 = vadd.f32 %v4369, %v4387
        %v4389 = vpop.f32.mrf.mxu0
        %v4390 = vadd.f32 %v4371, %v4389
        %4391 = vdwg.mxu0
        %4392 = vmatpush.bf16.msra.mxu0 %v3924
        %4393 = vmatpush.bf16.msra.mxu0 %v3921
        %4394 = vmatpush.bf16.msra.mxu0 %v3918
        %4395 = vmatpush.bf16.msra.mxu0 %v3915
        %4396 = vmatpush.bf16.msra.mxu0 %v3912
        %4397 = vmatpush.bf16.msra.mxu0 %v3909
        %4398 = vmatpush.bf16.msra.mxu0 %v3906
        %4399 = vmatpush.bf16.msra.mxu0 %v3903
        %4400 = vmatmul.bf16.gmra.mxu0 %v668
        %v4401 = vpop.f32.mrf.mxu0
        %v4402 = vadd.f32 %v4383, %v4401
        %v4403 = vpop.f32.mrf.mxu0
        %v4404 = vadd.f32 %v4385, %v4403
        %4405 = vmatmul.bf16.gmra.mxu0 %v674
        %v4406 = vpop.f32.mrf.mxu0
        %v4407 = vadd.f32 %v4388, %v4406
        %v4408 = vpop.f32.mrf.mxu0
        %v4409 = vadd.f32 %v4390, %v4408
        %4410 = vdwg.mxu0
        %vm4423 = vcmask 1040384
        %v4424 = vrot.slane %v1560, 7
        %v4425 = vrot.slane %v1674, 7
        %v4426 = vrot.slane %v1788, 7
        %v4427 = vrot.slane %v1562, 7
        %v4428 = vsel %vm4423, %v4424, %v4427
        %v4429 = vrot.slane %v1676, 7
        %v4430 = vsel %vm4423, %v4425, %v4429
        %v4431 = vrot.slane %v1790, 7
        %v4432 = vsel %vm4423, %v4426, %v4431
        %v4433 = vrot.slane %v1565, 7
        %v4434 = vrot.slane %v1679, 7
        %v4435 = vrot.slane %v1793, 7
        %v4436 = vrot.slane %v1567, 7
        %v4437 = vsel %vm4423, %v4433, %v4436
        %v4438 = vrot.slane %v1681, 7
        %v4439 = vsel %vm4423, %v4434, %v4438
        %v4440 = vrot.slane %v1795, 7
        %v4441 = vsel %vm4423, %v4435, %v4440
        %v4454 = vsel %vm4423, 0.0, %v4424
        %v4455 = vsel %vm4423, 0.0, %v4425
        %v4456 = vsel %vm4423, 0.0, %v4426
        %v4457 = vsel %vm4423, 0.0, %v4433
        %v4458 = vsel %vm4423, 0.0, %v4434
        %v4459 = vsel %vm4423, 0.0, %v4435
        %v4460 = vadd.f32 %v2871, %v4454
        %v4461 = vadd.f32 %v2985, %v4455
        %v4462 = vadd.f32 %v3099, %v4456
        %v4463 = vadd.f32 %v2873, %v4428
        %v4464 = vadd.f32 %v2987, %v4430
        %v4465 = vadd.f32 %v3101, %v4432
        %v4466 = vadd.f32 %v2876, %v4457
        %v4467 = vadd.f32 %v2990, %v4458
        %v4468 = vadd.f32 %v3104, %v4459
        %v4469 = vadd.f32 %v2878, %v4437
        %v4470 = vadd.f32 %v2992, %v4439
        %v4471 = vadd.f32 %v3106, %v4441
        %vm4484 = vcmask 1046528
        %v4485 = vrot.slane %v4174, 1
        %v4486 = vrot.slane %v4176, 1
        %v4487 = vsel %vm4484, %v4485, %v4486
        %v4488 = vrot.slane %v4288, 1
        %v4489 = vrot.slane %v4290, 1
        %v4490 = vsel %vm4484, %v4488, %v4489
        %v4491 = vrot.slane %v4402, 1
        %v4492 = vrot.slane %v4404, 1
        %v4493 = vsel %vm4484, %v4491, %v4492
        %v4494 = vrot.slane %v4179, 1
        %v4495 = vrot.slane %v4181, 1
        %v4496 = vsel %vm4484, %v4494, %v4495
        %v4497 = vrot.slane %v4293, 1
        %v4498 = vrot.slane %v4295, 1
        %v4499 = vsel %vm4484, %v4497, %v4498
        %v4500 = vrot.slane %v4407, 1
        %v4501 = vrot.slane %v4409, 1
        %v4502 = vsel %vm4484, %v4500, %v4501
        %v4515 = vsel %vm4484, %v4486, 0.0
        %v4516 = vsel %vm4484, %v4489, 0.0
        %v4517 = vsel %vm4484, %v4492, 0.0
        %v4518 = vsel %vm4484, %v4495, 0.0
        %v4519 = vsel %vm4484, %v4498, 0.0
        %v4520 = vsel %vm4484, %v4501, 0.0
        %v4521 = vadd.f32 %v4460, %v4487
        %v4522 = vadd.f32 %v4461, %v4490
        %v4523 = vadd.f32 %v4462, %v4493
        %v4524 = vadd.f32 %v4463, %v4515
        %v4525 = vadd.f32 %v4464, %v4516
        %v4526 = vadd.f32 %v4465, %v4517
        %v4527 = vadd.f32 %v4466, %v4496
        %v4528 = vadd.f32 %v4467, %v4499
        %v4529 = vadd.f32 %v4468, %v4502
        %v4530 = vadd.f32 %v4469, %v4518
        %v4531 = vadd.f32 %v4470, %v4519
        %v4532 = vadd.f32 %v4471, %v4520
        %v4533 = vmax.f32 %v4521, 0.0
        %v4534 = vmax.f32 %v4522, 0.0
        %v4535 = vmax.f32 %v4523, 0.0
        %v4536 = vmax.f32 %v4524, 0.0
        %v4537 = vmax.f32 %v4525, 0.0
        %v4538 = vmax.f32 %v4526, 0.0
        %v4539 = vmax.f32 %v4527, 0.0
        %v4540 = vmax.f32 %v4528, 0.0
        %v4541 = vmax.f32 %v4529, 0.0
        %v4542 = vmax.f32 %v4530, 0.0
        %v4543 = vmax.f32 %v4531, 0.0
        %v4544 = vmax.f32 %v4532, 0.0
        %v4545 = vpack.c.bf16 %v4534, %v4533
        %v4546 = vpack.c.bf16 %v4535, %v4535
        %v4547 = vpack.c.bf16 %v4537, %v4536
        %v4548 = vpack.c.bf16 %v4538, %v4538
        %v4549 = vpack.c.bf16 %v4540, %v4539
        %v4550 = vpack.c.bf16 %v4541, %v4541
        %v4551 = vpack.c.bf16 %v4543, %v4542
        %v4552 = vpack.c.bf16 %v4544, %v4544
        %v4553 = vld [vmem:[#allocation6] sm:$0xff]
        %v4554 = vld [vmem:[#allocation6 + $0x8] sm:$0xff]
        %v4555 = vld [vmem:[#allocation6 + $0x10] sm:$0xff]
        %v4556 = vld [vmem:[#allocation6 + $0x18] sm:$0xff]
        %v4557 = vld [vmem:[#allocation6 + $0x20] sm:$0xff]
        %v4558 = vld [vmem:[#allocation6 + $0x28] sm:$0xff]
        %v4559 = vld [vmem:[#allocation6 + $0x30] sm:$0xff]
        %v4560 = vld [vmem:[#allocation6 + $0x38] sm:$0xff]
        %v4561 = vld [vmem:[#allocation6 + $0x40] sm:$0xff]
        %v4562 = vld [vmem:[#allocation6 + $0x48] sm:$0xff]
        %v4563 = vld [vmem:[#allocation6 + $0x50] sm:$0xff]
        %v4564 = vld [vmem:[#allocation6 + $0x58] sm:$0xff]
        %v4565 = vld [vmem:[#allocation6 + $0x60] sm:$0xff]
        %v4566 = vld [vmem:[#allocation6 + $0x68] sm:$0xff]
        %v4567 = vld [vmem:[#allocation6 + $0x70] sm:$0xff]
        %v4568 = vld [vmem:[#allocation6 + $0x78] sm:$0xff]
        %v4569 = vld [vmem:[#allocation6 + $0x80] sm:$0xff]
        %v4570 = vld [vmem:[#allocation6 + $0x88] sm:$0xff]
        %v4571 = vld [vmem:[#allocation6 + $0x90] sm:$0xff]
        %v4572 = vld [vmem:[#allocation6 + $0x98] sm:$0xff]
        %v4573 = vld [vmem:[#allocation6 + $0xa0] sm:$0xff]
        %v4574 = vld [vmem:[#allocation6 + $0xa8] sm:$0xff]
        %v4575 = vld [vmem:[#allocation6 + $0xb0] sm:$0xff]
        %v4576 = vld [vmem:[#allocation6 + $0xb8] sm:$0xff]
        %v4577 = vld [vmem:[#allocation6 + $0xc0] sm:$0xff]
        %v4578 = vld [vmem:[#allocation6 + $0xc8] sm:$0xff]
        %v4579 = vld [vmem:[#allocation6 + $0xd0] sm:$0xff]
        %v4580 = vld [vmem:[#allocation6 + $0xd8] sm:$0xff]
        %v4581 = vld [vmem:[#allocation6 + $0xe0] sm:$0xff]
        %v4582 = vld [vmem:[#allocation6 + $0xe8] sm:$0xff]
        %v4583 = vld [vmem:[#allocation6 + $0xf0] sm:$0xff]
        %v4584 = vld [vmem:[#allocation6 + $0xf8] sm:$0xff]
        %v4585 = vld [vmem:[#allocation6 + $0x100] sm:$0xff]
        %v4586 = vld [vmem:[#allocation6 + $0x108] sm:$0xff]
        %v4587 = vld [vmem:[#allocation6 + $0x110] sm:$0xff]
        %v4588 = vld [vmem:[#allocation6 + $0x118] sm:$0xff]
        %v4589 = vld [vmem:[#allocation6 + $0x120] sm:$0xff]
        %v4590 = vld [vmem:[#allocation6 + $0x128] sm:$0xff]
        %v4591 = vld [vmem:[#allocation6 + $0x130] sm:$0xff]
        %v4592 = vld [vmem:[#allocation6 + $0x138] sm:$0xff]
        %v4593 = vld [vmem:[#allocation6 + $0x140] sm:$0xff]
        %v4594 = vld [vmem:[#allocation6 + $0x148] sm:$0xff]
        %v4595 = vld [vmem:[#allocation6 + $0x150] sm:$0xff]
        %v4596 = vld [vmem:[#allocation6 + $0x158] sm:$0xff]
        %v4597 = vld [vmem:[#allocation6 + $0x160] sm:$0xff]
        %v4598 = vld [vmem:[#allocation6 + $0x168] sm:$0xff]
        %v4599 = vld [vmem:[#allocation6 + $0x170] sm:$0xff]
        %v4600 = vld [vmem:[#allocation6 + $0x178] sm:$0xff]
        %v4609 = vunpack.c.l.b16 %v4545
        %v4610 = vunpack.c.h.b16 %v4545
        %v4611 = vunpack.c.l.b16 %v4546
        %v4612 = vunpack.c.l.b16 %v4547
        %v4613 = vunpack.c.h.b16 %v4547
        %v4614 = vunpack.c.l.b16 %v4548
        %v4615 = vunpack.c.l.b16 %v4549
        %v4616 = vunpack.c.h.b16 %v4549
        %v4617 = vunpack.c.l.b16 %v4550
        %v4618 = vunpack.c.l.b16 %v4551
        %v4619 = vunpack.c.h.b16 %v4551
        %v4620 = vunpack.c.l.b16 %v4552
        %v4621 = vpack.c.b16 %v4612, %v4609
        %v4622 = vpack.c.b16 %v4613, %v4610
        %v4623 = vpack.c.b16 %v4614, %v4611
        %v4624 = vpack.c.b16 %v4618, %v4615
        %v4625 = vpack.c.b16 %v4619, %v4616
        %v4626 = vpack.c.b16 %v4620, %v4617
        %v4681 = vunpack.c.l.b16 %v4553
        %v4682 = vunpack.c.h.b16 %v4553
        %v4683 = vunpack.c.l.b16 %v4554
        %v4684 = vunpack.c.h.b16 %v4554
        %v4685 = vunpack.c.l.b16 %v4555
        %v4686 = vunpack.c.h.b16 %v4555
        %v4687 = vunpack.c.l.b16 %v4556
        %v4688 = vunpack.c.h.b16 %v4556
        %v4689 = vunpack.c.l.b16 %v4557
        %v4690 = vunpack.c.h.b16 %v4557
        %v4691 = vunpack.c.l.b16 %v4558
        %v4692 = vunpack.c.h.b16 %v4558
        %v4693 = vunpack.c.l.b16 %v4559
        %v4694 = vunpack.c.h.b16 %v4559
        %v4695 = vunpack.c.l.b16 %v4560
        %v4696 = vunpack.c.h.b16 %v4560
        %v4697 = vunpack.c.l.b16 %v4561
        %v4698 = vunpack.c.h.b16 %v4561
        %v4699 = vunpack.c.l.b16 %v4562
        %v4700 = vunpack.c.h.b16 %v4562
        %v4701 = vunpack.c.l.b16 %v4563
        %v4702 = vunpack.c.h.b16 %v4563
        %v4703 = vunpack.c.l.b16 %v4564
        %v4704 = vunpack.c.h.b16 %v4564
        %v4705 = vunpack.c.l.b16 %v4565
        %v4706 = vunpack.c.h.b16 %v4565
        %v4707 = vunpack.c.l.b16 %v4566
        %v4708 = vunpack.c.h.b16 %v4566
        %v4709 = vunpack.c.l.b16 %v4567
        %v4710 = vunpack.c.h.b16 %v4567
        %v4711 = vunpack.c.l.b16 %v4568
        %v4712 = vunpack.c.h.b16 %v4568
        %v4713 = vunpack.c.l.b16 %v4569
        %v4714 = vunpack.c.h.b16 %v4569
        %v4715 = vunpack.c.l.b16 %v4570
        %v4716 = vunpack.c.h.b16 %v4570
        %v4717 = vunpack.c.l.b16 %v4571
        %v4718 = vunpack.c.h.b16 %v4571
        %v4719 = vunpack.c.l.b16 %v4572
        %v4720 = vunpack.c.h.b16 %v4572
        %v4721 = vunpack.c.l.b16 %v4573
        %v4722 = vunpack.c.h.b16 %v4573
        %v4723 = vunpack.c.l.b16 %v4574
        %v4724 = vunpack.c.h.b16 %v4574
        %v4725 = vunpack.c.l.b16 %v4575
        %v4726 = vunpack.c.h.b16 %v4575
        %v4727 = vunpack.c.l.b16 %v4576
        %v4728 = vunpack.c.h.b16 %v4576
        %v4729 = vunpack.c.l.b16 %v4577
        %v4730 = vunpack.c.h.b16 %v4577
        %v4731 = vunpack.c.l.b16 %v4578
        %v4732 = vunpack.c.h.b16 %v4578
        %v4733 = vunpack.c.l.b16 %v4579
        %v4734 = vunpack.c.h.b16 %v4579
        %v4735 = vunpack.c.l.b16 %v4580
        %v4736 = vunpack.c.h.b16 %v4580
        %v4737 = vunpack.c.l.b16 %v4581
        %v4738 = vunpack.c.h.b16 %v4581
        %v4739 = vunpack.c.l.b16 %v4582
        %v4740 = vunpack.c.h.b16 %v4582
        %v4741 = vunpack.c.l.b16 %v4583
        %v4742 = vunpack.c.h.b16 %v4583
        %v4743 = vunpack.c.l.b16 %v4584
        %v4744 = vunpack.c.h.b16 %v4584
        %v4745 = vunpack.c.l.b16 %v4585
        %v4746 = vunpack.c.h.b16 %v4585
        %v4747 = vunpack.c.l.b16 %v4586
        %v4748 = vunpack.c.h.b16 %v4586
        %v4749 = vunpack.c.l.b16 %v4587
        %v4750 = vunpack.c.h.b16 %v4587
        %v4751 = vunpack.c.l.b16 %v4588
        %v4752 = vunpack.c.h.b16 %v4588
        %v4753 = vunpack.c.l.b16 %v4589
        %v4754 = vunpack.c.h.b16 %v4589
        %v4755 = vunpack.c.l.b16 %v4590
        %v4756 = vunpack.c.h.b16 %v4590
        %v4757 = vunpack.c.l.b16 %v4591
        %v4758 = vunpack.c.h.b16 %v4591
        %v4759 = vunpack.c.l.b16 %v4592
        %v4760 = vunpack.c.h.b16 %v4592
        %v4761 = vunpack.c.l.b16 %v4593
        %v4762 = vunpack.c.h.b16 %v4593
        %v4763 = vunpack.c.l.b16 %v4594
        %v4764 = vunpack.c.h.b16 %v4594
        %v4765 = vunpack.c.l.b16 %v4595
        %v4766 = vunpack.c.h.b16 %v4595
        %v4767 = vunpack.c.l.b16 %v4596
        %v4768 = vunpack.c.h.b16 %v4596
        %v4769 = vunpack.c.l.b16 %v4597
        %v4770 = vunpack.c.h.b16 %v4597
        %v4771 = vunpack.c.l.b16 %v4598
        %v4772 = vunpack.c.h.b16 %v4598
        %v4773 = vunpack.c.l.b16 %v4599
        %v4774 = vunpack.c.h.b16 %v4599
        %v4775 = vunpack.c.l.b16 %v4600
        %v4776 = vunpack.c.h.b16 %v4600
        %v4777 = vpack.c.b16 %v4683, %v4681
        %v4778 = vpack.c.b16 %v4684, %v4682
        %v4779 = vpack.c.b16 %v4687, %v4685
        %v4780 = vpack.c.b16 %v4688, %v4686
        %v4781 = vpack.c.b16 %v4691, %v4689
        %v4782 = vpack.c.b16 %v4692, %v4690
        %v4783 = vpack.c.b16 %v4695, %v4693
        %v4784 = vpack.c.b16 %v4696, %v4694
        %v4785 = vpack.c.b16 %v4699, %v4697
        %v4786 = vpack.c.b16 %v4700, %v4698
        %v4787 = vpack.c.b16 %v4703, %v4701
        %v4788 = vpack.c.b16 %v4704, %v4702
        %v4789 = vpack.c.b16 %v4707, %v4705
        %v4790 = vpack.c.b16 %v4708, %v4706
        %v4791 = vpack.c.b16 %v4711, %v4709
        %v4792 = vpack.c.b16 %v4712, %v4710
        %v4793 = vpack.c.b16 %v4715, %v4713
        %v4794 = vpack.c.b16 %v4716, %v4714
        %v4795 = vpack.c.b16 %v4719, %v4717
        %v4796 = vpack.c.b16 %v4720, %v4718
        %v4797 = vpack.c.b16 %v4723, %v4721
        %v4798 = vpack.c.b16 %v4724, %v4722
        %v4799 = vpack.c.b16 %v4727, %v4725
        %v4800 = vpack.c.b16 %v4728, %v4726
        %v4801 = vpack.c.b16 %v4731, %v4729
        %v4802 = vpack.c.b16 %v4732, %v4730
        %v4803 = vpack.c.b16 %v4735, %v4733
        %v4804 = vpack.c.b16 %v4736, %v4734
        %v4805 = vpack.c.b16 %v4739, %v4737
        %v4806 = vpack.c.b16 %v4740, %v4738
        %v4807 = vpack.c.b16 %v4743, %v4741
        %v4808 = vpack.c.b16 %v4744, %v4742
        %v4809 = vpack.c.b16 %v4747, %v4745
        %v4810 = vpack.c.b16 %v4748, %v4746
        %v4811 = vpack.c.b16 %v4751, %v4749
        %v4812 = vpack.c.b16 %v4752, %v4750
        %v4813 = vpack.c.b16 %v4755, %v4753
        %v4814 = vpack.c.b16 %v4756, %v4754
        %v4815 = vpack.c.b16 %v4759, %v4757
        %v4816 = vpack.c.b16 %v4760, %v4758
        %v4817 = vpack.c.b16 %v4763, %v4761
        %v4818 = vpack.c.b16 %v4764, %v4762
        %v4819 = vpack.c.b16 %v4767, %v4765
        %v4820 = vpack.c.b16 %v4768, %v4766
        %v4821 = vpack.c.b16 %v4771, %v4769
        %v4822 = vpack.c.b16 %v4772, %v4770
        %v4823 = vpack.c.b16 %v4775, %v4773
        %v4824 = vpack.c.b16 %v4776, %v4774
        %4873 = vmatpush.bf16.msra.mxu0 %v4791
        %4874 = vmatpush.bf16.msra.mxu0 %v4789
        %4875 = vmatpush.bf16.msra.mxu0 %v4787
        %4876 = vmatpush.bf16.msra.mxu0 %v4785
        %4877 = vmatpush.bf16.msra.mxu0 %v4783
        %4878 = vmatpush.bf16.msra.mxu0 %v4781
        %4879 = vmatpush.bf16.msra.mxu0 %v4779
        %4880 = vmatpush.bf16.msra.mxu0 %v4777
        %4881 = vmatmul.bf16.gmra.mxu0 %v4621
        %v4882 = vpop.f32.mrf.mxu0
        %v4883 = vadd.f32 0.0, %v4882
        %v4884 = vpop.f32.mrf.mxu0
        %v4885 = vadd.f32 0.0, %v4884
        %4886 = vmatmul.bf16.gmra.mxu0 %v4624
        %v4887 = vpop.f32.mrf.mxu0
        %v4888 = vadd.f32 0.0, %v4887
        %v4889 = vpop.f32.mrf.mxu0
        %v4890 = vadd.f32 0.0, %v4889
        %4891 = vdwg.mxu0
        %4892 = vmatpush.bf16.msra.mxu0 %v4807
        %4893 = vmatpush.bf16.msra.mxu0 %v4805
        %4894 = vmatpush.bf16.msra.mxu0 %v4803
        %4895 = vmatpush.bf16.msra.mxu0 %v4801
        %4896 = vmatpush.bf16.msra.mxu0 %v4799
        %4897 = vmatpush.bf16.msra.mxu0 %v4797
        %4898 = vmatpush.bf16.msra.mxu0 %v4795
        %4899 = vmatpush.bf16.msra.mxu0 %v4793
        %4900 = vmatmul.bf16.gmra.mxu0 %v4622
        %v4901 = vpop.f32.mrf.mxu0
        %v4902 = vadd.f32 %v4883, %v4901
        %v4903 = vpop.f32.mrf.mxu0
        %v4904 = vadd.f32 %v4885, %v4903
        %4905 = vmatmul.bf16.gmra.mxu0 %v4625
        %v4906 = vpop.f32.mrf.mxu0
        %v4907 = vadd.f32 %v4888, %v4906
        %v4908 = vpop.f32.mrf.mxu0
        %v4909 = vadd.f32 %v4890, %v4908
        %4910 = vdwg.mxu0
        %4911 = vmatpush.bf16.msra.mxu0 %v4823
        %4912 = vmatpush.bf16.msra.mxu0 %v4821
        %4913 = vmatpush.bf16.msra.mxu0 %v4819
        %4914 = vmatpush.bf16.msra.mxu0 %v4817
        %4915 = vmatpush.bf16.msra.mxu0 %v4815
        %4916 = vmatpush.bf16.msra.mxu0 %v4813
        %4917 = vmatpush.bf16.msra.mxu0 %v4811
        %4918 = vmatpush.bf16.msra.mxu0 %v4809
        %4919 = vmatmul.bf16.gmra.mxu0 %v4623
        %v4920 = vpop.f32.mrf.mxu0
        %v4921 = vadd.f32 %v4902, %v4920
        %v4922 = vpop.f32.mrf.mxu0
        %v4923 = vadd.f32 %v4904, %v4922
        %4924 = vmatmul.bf16.gmra.mxu0 %v4626
        %v4925 = vpop.f32.mrf.mxu0
        %v4926 = vadd.f32 %v4907, %v4925
        %v4927 = vpop.f32.mrf.mxu0
        %v4928 = vadd.f32 %v4909, %v4927
        %4929 = vdwg.mxu0
        %4930 = vmatpush.bf16.msra.mxu0 %v4792
        %4931 = vmatpush.bf16.msra.mxu0 %v4790
        %4932 = vmatpush.bf16.msra.mxu0 %v4788
        %4933 = vmatpush.bf16.msra.mxu0 %v4786
        %4934 = vmatpush.bf16.msra.mxu0 %v4784
        %4935 = vmatpush.bf16.msra.mxu0 %v4782
        %4936 = vmatpush.bf16.msra.mxu0 %v4780
        %4937 = vmatpush.bf16.msra.mxu0 %v4778
        %4938 = vmatmul.bf16.gmra.mxu0 %v4621
        %v4939 = vpop.f32.mrf.mxu0
        %v4940 = vadd.f32 0.0, %v4939
        %v4941 = vpop.f32.mrf.mxu0
        %v4942 = vadd.f32 0.0, %v4941
        %4943 = vmatmul.bf16.gmra.mxu0 %v4624
        %v4944 = vpop.f32.mrf.mxu0
        %v4945 = vadd.f32 0.0, %v4944
        %v4946 = vpop.f32.mrf.mxu0
        %v4947 = vadd.f32 0.0, %v4946
        %4948 = vdwg.mxu0
        %4949 = vmatpush.bf16.msra.mxu0 %v4808
        %4950 = vmatpush.bf16.msra.mxu0 %v4806
        %4951 = vmatpush.bf16.msra.mxu0 %v4804
        %4952 = vmatpush.bf16.msra.mxu0 %v4802
        %4953 = vmatpush.bf16.msra.mxu0 %v4800
        %4954 = vmatpush.bf16.msra.mxu0 %v4798
        %4955 = vmatpush.bf16.msra.mxu0 %v4796
        %4956 = vmatpush.bf16.msra.mxu0 %v4794
        %4957 = vmatmul.bf16.gmra.mxu0 %v4622
        %v4958 = vpop.f32.mrf.mxu0
        %v4959 = vadd.f32 %v4940, %v4958
        %v4960 = vpop.f32.mrf.mxu0
        %v4961 = vadd.f32 %v4942, %v4960
        %4962 = vmatmul.bf16.gmra.mxu0 %v4625
        %v4963 = vpop.f32.mrf.mxu0
        %v4964 = vadd.f32 %v4945, %v4963
        %v4965 = vpop.f32.mrf.mxu0
        %v4966 = vadd.f32 %v4947, %v4965
        %4967 = vdwg.mxu0
        %4968 = vmatpush.bf16.msra.mxu0 %v4824
        %4969 = vmatpush.bf16.msra.mxu0 %v4822
        %4970 = vmatpush.bf16.msra.mxu0 %v4820
        %4971 = vmatpush.bf16.msra.mxu0 %v4818
        %4972 = vmatpush.bf16.msra.mxu0 %v4816
        %4973 = vmatpush.bf16.msra.mxu0 %v4814
        %4974 = vmatpush.bf16.msra.mxu0 %v4812
        %4975 = vmatpush.bf16.msra.mxu0 %v4810
        %4976 = vmatmul.bf16.gmra.mxu0 %v4623
        %v4977 = vpop.f32.mrf.mxu0
        %v4978 = vadd.f32 %v4959, %v4977
        %v4979 = vpop.f32.mrf.mxu0
        %v4980 = vadd.f32 %v4961, %v4979
        %4981 = vmatmul.bf16.gmra.mxu0 %v4626
        %v4982 = vpop.f32.mrf.mxu0
        %v4983 = vadd.f32 %v4964, %v4982
        %v4984 = vpop.f32.mrf.mxu0
        %v4985 = vadd.f32 %v4966, %v4984
        %4986 = vdwg.mxu0
        %s4987 = scalar_lea.vmem [#allocation6], 384
        %v4988 = vld [vmem:[%s4987] sm:$0xff]
        %v4989 = vld [vmem:[%s4987 + $0x8] sm:$0xff]
        %v4990 = vld [vmem:[%s4987 + $0x10] sm:$0xff]
        %v4991 = vld [vmem:[%s4987 + $0x18] sm:$0xff]
        %v4992 = vld [vmem:[%s4987 + $0x20] sm:$0xff]
        %v4993 = vld [vmem:[%s4987 + $0x28] sm:$0xff]
        %v4994 = vld [vmem:[%s4987 + $0x30] sm:$0xff]
        %v4995 = vld [vmem:[%s4987 + $0x38] sm:$0xff]
        %v4996 = vld [vmem:[%s4987 + $0x40] sm:$0xff]
        %v4997 = vld [vmem:[%s4987 + $0x48] sm:$0xff]
        %v4998 = vld [vmem:[%s4987 + $0x50] sm:$0xff]
        %v4999 = vld [vmem:[%s4987 + $0x58] sm:$0xff]
        %v5000 = vld [vmem:[%s4987 + $0x60] sm:$0xff]
        %v5001 = vld [vmem:[%s4987 + $0x68] sm:$0xff]
        %v5002 = vld [vmem:[%s4987 + $0x70] sm:$0xff]
        %v5003 = vld [vmem:[%s4987 + $0x78] sm:$0xff]
        %v5004 = vld [vmem:[%s4987 + $0x80] sm:$0xff]
        %v5005 = vld [vmem:[%s4987 + $0x88] sm:$0xff]
        %v5006 = vld [vmem:[%s4987 + $0x90] sm:$0xff]
        %v5007 = vld [vmem:[%s4987 + $0x98] sm:$0xff]
        %v5008 = vld [vmem:[%s4987 + $0xa0] sm:$0xff]
        %v5009 = vld [vmem:[%s4987 + $0xa8] sm:$0xff]
        %v5010 = vld [vmem:[%s4987 + $0xb0] sm:$0xff]
        %v5011 = vld [vmem:[%s4987 + $0xb8] sm:$0xff]
        %v5012 = vld [vmem:[%s4987 + $0xc0] sm:$0xff]
        %v5013 = vld [vmem:[%s4987 + $0xc8] sm:$0xff]
        %v5014 = vld [vmem:[%s4987 + $0xd0] sm:$0xff]
        %v5015 = vld [vmem:[%s4987 + $0xd8] sm:$0xff]
        %v5016 = vld [vmem:[%s4987 + $0xe0] sm:$0xff]
        %v5017 = vld [vmem:[%s4987 + $0xe8] sm:$0xff]
        %v5018 = vld [vmem:[%s4987 + $0xf0] sm:$0xff]
        %v5019 = vld [vmem:[%s4987 + $0xf8] sm:$0xff]
        %v5020 = vld [vmem:[%s4987 + $0x100] sm:$0xff]
        %v5021 = vld [vmem:[%s4987 + $0x108] sm:$0xff]
        %v5022 = vld [vmem:[%s4987 + $0x110] sm:$0xff]
        %v5023 = vld [vmem:[%s4987 + $0x118] sm:$0xff]
        %v5024 = vld [vmem:[%s4987 + $0x120] sm:$0xff]
        %v5025 = vld [vmem:[%s4987 + $0x128] sm:$0xff]
        %v5026 = vld [vmem:[%s4987 + $0x130] sm:$0xff]
        %v5027 = vld [vmem:[%s4987 + $0x138] sm:$0xff]
        %v5028 = vld [vmem:[%s4987 + $0x140] sm:$0xff]
        %v5029 = vld [vmem:[%s4987 + $0x148] sm:$0xff]
        %v5030 = vld [vmem:[%s4987 + $0x150] sm:$0xff]
        %v5031 = vld [vmem:[%s4987 + $0x158] sm:$0xff]
        %v5032 = vld [vmem:[%s4987 + $0x160] sm:$0xff]
        %v5033 = vld [vmem:[%s4987 + $0x168] sm:$0xff]
        %v5034 = vld [vmem:[%s4987 + $0x170] sm:$0xff]
        %v5035 = vld [vmem:[%s4987 + $0x178] sm:$0xff]
        %v5036 = vld [vmem:[#allocation10] sm:$0x3]
        %v5038 = vperm.slane %v5036, 0
        %v5039 = vperm.slane %v5036, 1
        %v5090 = vunpack.c.l.b16 %v4988
        %v5091 = vunpack.c.h.b16 %v4988
        %v5092 = vunpack.c.l.b16 %v4989
        %v5093 = vunpack.c.h.b16 %v4989
        %v5094 = vunpack.c.l.b16 %v4990
        %v5095 = vunpack.c.h.b16 %v4990
        %v5096 = vunpack.c.l.b16 %v4991
        %v5097 = vunpack.c.h.b16 %v4991
        %v5098 = vunpack.c.l.b16 %v4992
        %v5099 = vunpack.c.h.b16 %v4992
        %v5100 = vunpack.c.l.b16 %v4993
        %v5101 = vunpack.c.h.b16 %v4993
        %v5102 = vunpack.c.l.b16 %v4994
        %v5103 = vunpack.c.h.b16 %v4994
        %v5104 = vunpack.c.l.b16 %v4995
        %v5105 = vunpack.c.h.b16 %v4995
        %v5106 = vunpack.c.l.b16 %v4996
        %v5107 = vunpack.c.h.b16 %v4996
        %v5108 = vunpack.c.l.b16 %v4997
        %v5109 = vunpack.c.h.b16 %v4997
        %v5110 = vunpack.c.l.b16 %v4998
        %v5111 = vunpack.c.h.b16 %v4998
        %v5112 = vunpack.c.l.b16 %v4999
        %v5113 = vunpack.c.h.b16 %v4999
        %v5114 = vunpack.c.l.b16 %v5000
        %v5115 = vunpack.c.h.b16 %v5000
        %v5116 = vunpack.c.l.b16 %v5001
        %v5117 = vunpack.c.h.b16 %v5001
        %v5118 = vunpack.c.l.b16 %v5002
        %v5119 = vunpack.c.h.b16 %v5002
        %v5120 = vunpack.c.l.b16 %v5003
        %v5121 = vunpack.c.h.b16 %v5003
        %v5122 = vunpack.c.l.b16 %v5004
        %v5123 = vunpack.c.h.b16 %v5004
        %v5124 = vunpack.c.l.b16 %v5005
        %v5125 = vunpack.c.h.b16 %v5005
        %v5126 = vunpack.c.l.b16 %v5006
        %v5127 = vunpack.c.h.b16 %v5006
        %v5128 = vunpack.c.l.b16 %v5007
        %v5129 = vunpack.c.h.b16 %v5007
        %v5130 = vunpack.c.l.b16 %v5008
        %v5131 = vunpack.c.h.b16 %v5008
        %v5132 = vunpack.c.l.b16 %v5009
        %v5133 = vunpack.c.h.b16 %v5009
        %v5134 = vunpack.c.l.b16 %v5010
        %v5135 = vunpack.c.h.b16 %v5010
        %v5136 = vunpack.c.l.b16 %v5011
        %v5137 = vunpack.c.h.b16 %v5011
        %v5138 = vunpack.c.l.b16 %v5012
        %v5139 = vunpack.c.h.b16 %v5012
        %v5140 = vunpack.c.l.b16 %v5013
        %v5141 = vunpack.c.h.b16 %v5013
        %v5142 = vunpack.c.l.b16 %v5014
        %v5143 = vunpack.c.h.b16 %v5014
        %v5144 = vunpack.c.l.b16 %v5015
        %v5145 = vunpack.c.h.b16 %v5015
        %v5146 = vunpack.c.l.b16 %v5016
        %v5147 = vunpack.c.h.b16 %v5016
        %v5148 = vunpack.c.l.b16 %v5017
        %v5149 = vunpack.c.h.b16 %v5017
        %v5150 = vunpack.c.l.b16 %v5018
        %v5151 = vunpack.c.h.b16 %v5018
        %v5152 = vunpack.c.l.b16 %v5019
        %v5153 = vunpack.c.h.b16 %v5019
        %v5154 = vunpack.c.l.b16 %v5020
        %v5155 = vunpack.c.h.b16 %v5020
        %v5156 = vunpack.c.l.b16 %v5021
        %v5157 = vunpack.c.h.b16 %v5021
        %v5158 = vunpack.c.l.b16 %v5022
        %v5159 = vunpack.c.h.b16 %v5022
        %v5160 = vunpack.c.l.b16 %v5023
        %v5161 = vunpack.c.h.b16 %v5023
        %v5162 = vunpack.c.l.b16 %v5024
        %v5163 = vunpack.c.h.b16 %v5024
        %v5164 = vunpack.c.l.b16 %v5025
        %v5165 = vunpack.c.h.b16 %v5025
        %v5166 = vunpack.c.l.b16 %v5026
        %v5167 = vunpack.c.h.b16 %v5026
        %v5168 = vunpack.c.l.b16 %v5027
        %v5169 = vunpack.c.h.b16 %v5027
        %v5170 = vunpack.c.l.b16 %v5028
        %v5171 = vunpack.c.h.b16 %v5028
        %v5172 = vunpack.c.l.b16 %v5029
        %v5173 = vunpack.c.h.b16 %v5029
        %v5174 = vunpack.c.l.b16 %v5030
        %v5175 = vunpack.c.h.b16 %v5030
        %v5176 = vunpack.c.l.b16 %v5031
        %v5177 = vunpack.c.h.b16 %v5031
        %v5178 = vunpack.c.l.b16 %v5032
        %v5179 = vunpack.c.h.b16 %v5032
        %v5180 = vunpack.c.l.b16 %v5033
        %v5181 = vunpack.c.h.b16 %v5033
        %v5182 = vunpack.c.l.b16 %v5034
        %v5183 = vunpack.c.h.b16 %v5034
        %v5184 = vunpack.c.l.b16 %v5035
        %v5185 = vunpack.c.h.b16 %v5035
        %v5186 = vpack.c.b16 %v5092, %v5090
        %v5187 = vpack.c.b16 %v5093, %v5091
        %v5188 = vpack.c.b16 %v5096, %v5094
        %v5189 = vpack.c.b16 %v5097, %v5095
        %v5190 = vpack.c.b16 %v5100, %v5098
        %v5191 = vpack.c.b16 %v5101, %v5099
        %v5192 = vpack.c.b16 %v5104, %v5102
        %v5193 = vpack.c.b16 %v5105, %v5103
        %v5194 = vpack.c.b16 %v5108, %v5106
        %v5195 = vpack.c.b16 %v5109, %v5107
        %v5196 = vpack.c.b16 %v5112, %v5110
        %v5197 = vpack.c.b16 %v5113, %v5111
        %v5198 = vpack.c.b16 %v5116, %v5114
        %v5199 = vpack.c.b16 %v5117, %v5115
        %v5200 = vpack.c.b16 %v5120, %v5118
        %v5201 = vpack.c.b16 %v5121, %v5119
        %v5202 = vpack.c.b16 %v5124, %v5122
        %v5203 = vpack.c.b16 %v5125, %v5123
        %v5204 = vpack.c.b16 %v5128, %v5126
        %v5205 = vpack.c.b16 %v5129, %v5127
        %v5206 = vpack.c.b16 %v5132, %v5130
        %v5207 = vpack.c.b16 %v5133, %v5131
        %v5208 = vpack.c.b16 %v5136, %v5134
        %v5209 = vpack.c.b16 %v5137, %v5135
        %v5210 = vpack.c.b16 %v5140, %v5138
        %v5211 = vpack.c.b16 %v5141, %v5139
        %v5212 = vpack.c.b16 %v5144, %v5142
        %v5213 = vpack.c.b16 %v5145, %v5143
        %v5214 = vpack.c.b16 %v5148, %v5146
        %v5215 = vpack.c.b16 %v5149, %v5147
        %v5216 = vpack.c.b16 %v5152, %v5150
        %v5217 = vpack.c.b16 %v5153, %v5151
        %v5218 = vpack.c.b16 %v5156, %v5154
        %v5219 = vpack.c.b16 %v5157, %v5155
        %v5220 = vpack.c.b16 %v5160, %v5158
        %v5221 = vpack.c.b16 %v5161, %v5159
        %v5222 = vpack.c.b16 %v5164, %v5162
        %v5223 = vpack.c.b16 %v5165, %v5163
        %v5224 = vpack.c.b16 %v5168, %v5166
        %v5225 = vpack.c.b16 %v5169, %v5167
        %v5226 = vpack.c.b16 %v5172, %v5170
        %v5227 = vpack.c.b16 %v5173, %v5171
        %v5228 = vpack.c.b16 %v5176, %v5174
        %v5229 = vpack.c.b16 %v5177, %v5175
        %v5230 = vpack.c.b16 %v5180, %v5178
        %v5231 = vpack.c.b16 %v5181, %v5179
        %v5232 = vpack.c.b16 %v5184, %v5182
        %v5233 = vpack.c.b16 %v5185, %v5183
        %5282 = vmatpush.bf16.msra.mxu0 %v5200
        %5283 = vmatpush.bf16.msra.mxu0 %v5198
        %5284 = vmatpush.bf16.msra.mxu0 %v5196
        %5285 = vmatpush.bf16.msra.mxu0 %v5194
        %5286 = vmatpush.bf16.msra.mxu0 %v5192
        %5287 = vmatpush.bf16.msra.mxu0 %v5190
        %5288 = vmatpush.bf16.msra.mxu0 %v5188
        %5289 = vmatpush.bf16.msra.mxu0 %v5186
        %5290 = vmatmul.bf16.gmra.mxu0 %v4621
        %v5291 = vpop.f32.mrf.mxu0
        %v5292 = vadd.f32 %v5038, %v5291
        %v5293 = vpop.f32.mrf.mxu0
        %v5294 = vadd.f32 %v5038, %v5293
        %5295 = vmatmul.bf16.gmra.mxu0 %v4624
        %v5296 = vpop.f32.mrf.mxu0
        %v5297 = vadd.f32 %v5038, %v5296
        %v5298 = vpop.f32.mrf.mxu0
        %v5299 = vadd.f32 %v5038, %v5298
        %5300 = vdwg.mxu0
        %5301 = vmatpush.bf16.msra.mxu0 %v5216
        %5302 = vmatpush.bf16.msra.mxu0 %v5214
        %5303 = vmatpush.bf16.msra.mxu0 %v5212
        %5304 = vmatpush.bf16.msra.mxu0 %v5210
        %5305 = vmatpush.bf16.msra.mxu0 %v5208
        %5306 = vmatpush.bf16.msra.mxu0 %v5206
        %5307 = vmatpush.bf16.msra.mxu0 %v5204
        %5308 = vmatpush.bf16.msra.mxu0 %v5202
        %5309 = vmatmul.bf16.gmra.mxu0 %v4622
        %v5310 = vpop.f32.mrf.mxu0
        %v5311 = vadd.f32 %v5292, %v5310
        %v5312 = vpop.f32.mrf.mxu0
        %v5313 = vadd.f32 %v5294, %v5312
        %5314 = vmatmul.bf16.gmra.mxu0 %v4625
        %v5315 = vpop.f32.mrf.mxu0
        %v5316 = vadd.f32 %v5297, %v5315
        %v5317 = vpop.f32.mrf.mxu0
        %v5318 = vadd.f32 %v5299, %v5317
        %5319 = vdwg.mxu0
        %5320 = vmatpush.bf16.msra.mxu0 %v5232
        %5321 = vmatpush.bf16.msra.mxu0 %v5230
        %5322 = vmatpush.bf16.msra.mxu0 %v5228
        %5323 = vmatpush.bf16.msra.mxu0 %v5226
        %5324 = vmatpush.bf16.msra.mxu0 %v5224
        %5325 = vmatpush.bf16.msra.mxu0 %v5222
        %5326 = vmatpush.bf16.msra.mxu0 %v5220
        %5327 = vmatpush.bf16.msra.mxu0 %v5218
        %5328 = vmatmul.bf16.gmra.mxu0 %v4623
        %v5329 = vpop.f32.mrf.mxu0
        %v5330 = vadd.f32 %v5311, %v5329
        %v5331 = vpop.f32.mrf.mxu0
        %v5332 = vadd.f32 %v5313, %v5331
        %5333 = vmatmul.bf16.gmra.mxu0 %v4626
        %v5334 = vpop.f32.mrf.mxu0
        %v5335 = vadd.f32 %v5316, %v5334
        %v5336 = vpop.f32.mrf.mxu0
        %v5337 = vadd.f32 %v5318, %v5336
        %5338 = vdwg.mxu0
        %5339 = vmatpush.bf16.msra.mxu0 %v5201
        %5340 = vmatpush.bf16.msra.mxu0 %v5199
        %5341 = vmatpush.bf16.msra.mxu0 %v5197
        %5342 = vmatpush.bf16.msra.mxu0 %v5195
        %5343 = vmatpush.bf16.msra.mxu0 %v5193
        %5344 = vmatpush.bf16.msra.mxu0 %v5191
        %5345 = vmatpush.bf16.msra.mxu0 %v5189
        %5346 = vmatpush.bf16.msra.mxu0 %v5187
        %5347 = vmatmul.bf16.gmra.mxu0 %v4621
        %v5348 = vpop.f32.mrf.mxu0
        %v5349 = vadd.f32 %v5039, %v5348
        %v5350 = vpop.f32.mrf.mxu0
        %v5351 = vadd.f32 %v5039, %v5350
        %5352 = vmatmul.bf16.gmra.mxu0 %v4624
        %v5353 = vpop.f32.mrf.mxu0
        %v5354 = vadd.f32 %v5039, %v5353
        %v5355 = vpop.f32.mrf.mxu0
        %v5356 = vadd.f32 %v5039, %v5355
        %5357 = vdwg.mxu0
        %5358 = vmatpush.bf16.msra.mxu0 %v5217
        %5359 = vmatpush.bf16.msra.mxu0 %v5215
        %5360 = vmatpush.bf16.msra.mxu0 %v5213
        %5361 = vmatpush.bf16.msra.mxu0 %v5211
        %5362 = vmatpush.bf16.msra.mxu0 %v5209
        %5363 = vmatpush.bf16.msra.mxu0 %v5207
        %5364 = vmatpush.bf16.msra.mxu0 %v5205
        %5365 = vmatpush.bf16.msra.mxu0 %v5203
        %5366 = vmatmul.bf16.gmra.mxu0 %v4622
        %v5367 = vpop.f32.mrf.mxu0
        %v5368 = vadd.f32 %v5349, %v5367
        %v5369 = vpop.f32.mrf.mxu0
        %v5370 = vadd.f32 %v5351, %v5369
        %5371 = vmatmul.bf16.gmra.mxu0 %v4625
        %v5372 = vpop.f32.mrf.mxu0
        %v5373 = vadd.f32 %v5354, %v5372
        %v5374 = vpop.f32.mrf.mxu0
        %v5375 = vadd.f32 %v5356, %v5374
        %5376 = vdwg.mxu0
        %5377 = vmatpush.bf16.msra.mxu0 %v5233
        %5378 = vmatpush.bf16.msra.mxu0 %v5231
        %5379 = vmatpush.bf16.msra.mxu0 %v5229
        %5380 = vmatpush.bf16.msra.mxu0 %v5227
        %5381 = vmatpush.bf16.msra.mxu0 %v5225
        %5382 = vmatpush.bf16.msra.mxu0 %v5223
        %5383 = vmatpush.bf16.msra.mxu0 %v5221
        %5384 = vmatpush.bf16.msra.mxu0 %v5219
        %5385 = vmatmul.bf16.gmra.mxu0 %v4623
        %v5386 = vpop.f32.mrf.mxu0
        %v5387 = vadd.f32 %v5368, %v5386
        %v5388 = vpop.f32.mrf.mxu0
        %v5389 = vadd.f32 %v5370, %v5388
        %5390 = vmatmul.bf16.gmra.mxu0 %v4626
        %v5391 = vpop.f32.mrf.mxu0
        %v5392 = vadd.f32 %v5373, %v5391
        %v5393 = vpop.f32.mrf.mxu0
        %v5394 = vadd.f32 %v5375, %v5393
        %5395 = vdwg.mxu0
        %s5396 = scalar_lea.vmem [#allocation6], 768
        %v5397 = vld [vmem:[%s5396] sm:$0xff]
        %v5398 = vld [vmem:[%s5396 + $0x8] sm:$0xff]
        %v5399 = vld [vmem:[%s5396 + $0x10] sm:$0xff]
        %v5400 = vld [vmem:[%s5396 + $0x18] sm:$0xff]
        %v5401 = vld [vmem:[%s5396 + $0x20] sm:$0xff]
        %v5402 = vld [vmem:[%s5396 + $0x28] sm:$0xff]
        %v5403 = vld [vmem:[%s5396 + $0x30] sm:$0xff]
        %v5404 = vld [vmem:[%s5396 + $0x38] sm:$0xff]
        %v5405 = vld [vmem:[%s5396 + $0x40] sm:$0xff]
        %v5406 = vld [vmem:[%s5396 + $0x48] sm:$0xff]
        %v5407 = vld [vmem:[%s5396 + $0x50] sm:$0xff]
        %v5408 = vld [vmem:[%s5396 + $0x58] sm:$0xff]
        %v5409 = vld [vmem:[%s5396 + $0x60] sm:$0xff]
        %v5410 = vld [vmem:[%s5396 + $0x68] sm:$0xff]
        %v5411 = vld [vmem:[%s5396 + $0x70] sm:$0xff]
        %v5412 = vld [vmem:[%s5396 + $0x78] sm:$0xff]
        %v5413 = vld [vmem:[%s5396 + $0x80] sm:$0xff]
        %v5414 = vld [vmem:[%s5396 + $0x88] sm:$0xff]
        %v5415 = vld [vmem:[%s5396 + $0x90] sm:$0xff]
        %v5416 = vld [vmem:[%s5396 + $0x98] sm:$0xff]
        %v5417 = vld [vmem:[%s5396 + $0xa0] sm:$0xff]
        %v5418 = vld [vmem:[%s5396 + $0xa8] sm:$0xff]
        %v5419 = vld [vmem:[%s5396 + $0xb0] sm:$0xff]
        %v5420 = vld [vmem:[%s5396 + $0xb8] sm:$0xff]
        %v5421 = vld [vmem:[%s5396 + $0xc0] sm:$0xff]
        %v5422 = vld [vmem:[%s5396 + $0xc8] sm:$0xff]
        %v5423 = vld [vmem:[%s5396 + $0xd0] sm:$0xff]
        %v5424 = vld [vmem:[%s5396 + $0xd8] sm:$0xff]
        %v5425 = vld [vmem:[%s5396 + $0xe0] sm:$0xff]
        %v5426 = vld [vmem:[%s5396 + $0xe8] sm:$0xff]
        %v5427 = vld [vmem:[%s5396 + $0xf0] sm:$0xff]
        %v5428 = vld [vmem:[%s5396 + $0xf8] sm:$0xff]
        %v5429 = vld [vmem:[%s5396 + $0x100] sm:$0xff]
        %v5430 = vld [vmem:[%s5396 + $0x108] sm:$0xff]
        %v5431 = vld [vmem:[%s5396 + $0x110] sm:$0xff]
        %v5432 = vld [vmem:[%s5396 + $0x118] sm:$0xff]
        %v5433 = vld [vmem:[%s5396 + $0x120] sm:$0xff]
        %v5434 = vld [vmem:[%s5396 + $0x128] sm:$0xff]
        %v5435 = vld [vmem:[%s5396 + $0x130] sm:$0xff]
        %v5436 = vld [vmem:[%s5396 + $0x138] sm:$0xff]
        %v5437 = vld [vmem:[%s5396 + $0x140] sm:$0xff]
        %v5438 = vld [vmem:[%s5396 + $0x148] sm:$0xff]
        %v5439 = vld [vmem:[%s5396 + $0x150] sm:$0xff]
        %v5440 = vld [vmem:[%s5396 + $0x158] sm:$0xff]
        %v5441 = vld [vmem:[%s5396 + $0x160] sm:$0xff]
        %v5442 = vld [vmem:[%s5396 + $0x168] sm:$0xff]
        %v5443 = vld [vmem:[%s5396 + $0x170] sm:$0xff]
        %v5444 = vld [vmem:[%s5396 + $0x178] sm:$0xff]
        %v5493 = vunpack.c.l.b16 %v5397
        %v5494 = vunpack.c.h.b16 %v5397
        %v5495 = vunpack.c.l.b16 %v5398
        %v5496 = vunpack.c.h.b16 %v5398
        %v5497 = vunpack.c.l.b16 %v5399
        %v5498 = vunpack.c.h.b16 %v5399
        %v5499 = vunpack.c.l.b16 %v5400
        %v5500 = vunpack.c.h.b16 %v5400
        %v5501 = vunpack.c.l.b16 %v5401
        %v5502 = vunpack.c.h.b16 %v5401
        %v5503 = vunpack.c.l.b16 %v5402
        %v5504 = vunpack.c.h.b16 %v5402
        %v5505 = vunpack.c.l.b16 %v5403
        %v5506 = vunpack.c.h.b16 %v5403
        %v5507 = vunpack.c.l.b16 %v5404
        %v5508 = vunpack.c.h.b16 %v5404
        %v5509 = vunpack.c.l.b16 %v5405
        %v5510 = vunpack.c.h.b16 %v5405
        %v5511 = vunpack.c.l.b16 %v5406
        %v5512 = vunpack.c.h.b16 %v5406
        %v5513 = vunpack.c.l.b16 %v5407
        %v5514 = vunpack.c.h.b16 %v5407
        %v5515 = vunpack.c.l.b16 %v5408
        %v5516 = vunpack.c.h.b16 %v5408
        %v5517 = vunpack.c.l.b16 %v5409
        %v5518 = vunpack.c.h.b16 %v5409
        %v5519 = vunpack.c.l.b16 %v5410
        %v5520 = vunpack.c.h.b16 %v5410
        %v5521 = vunpack.c.l.b16 %v5411
        %v5522 = vunpack.c.h.b16 %v5411
        %v5523 = vunpack.c.l.b16 %v5412
        %v5524 = vunpack.c.h.b16 %v5412
        %v5525 = vunpack.c.l.b16 %v5413
        %v5526 = vunpack.c.h.b16 %v5413
        %v5527 = vunpack.c.l.b16 %v5414
        %v5528 = vunpack.c.h.b16 %v5414
        %v5529 = vunpack.c.l.b16 %v5415
        %v5530 = vunpack.c.h.b16 %v5415
        %v5531 = vunpack.c.l.b16 %v5416
        %v5532 = vunpack.c.h.b16 %v5416
        %v5533 = vunpack.c.l.b16 %v5417
        %v5534 = vunpack.c.h.b16 %v5417
        %v5535 = vunpack.c.l.b16 %v5418
        %v5536 = vunpack.c.h.b16 %v5418
        %v5537 = vunpack.c.l.b16 %v5419
        %v5538 = vunpack.c.h.b16 %v5419
        %v5539 = vunpack.c.l.b16 %v5420
        %v5540 = vunpack.c.h.b16 %v5420
        %v5541 = vunpack.c.l.b16 %v5421
        %v5542 = vunpack.c.h.b16 %v5421
        %v5543 = vunpack.c.l.b16 %v5422
        %v5544 = vunpack.c.h.b16 %v5422
        %v5545 = vunpack.c.l.b16 %v5423
        %v5546 = vunpack.c.h.b16 %v5423
        %v5547 = vunpack.c.l.b16 %v5424
        %v5548 = vunpack.c.h.b16 %v5424
        %v5549 = vunpack.c.l.b16 %v5425
        %v5550 = vunpack.c.h.b16 %v5425
        %v5551 = vunpack.c.l.b16 %v5426
        %v5552 = vunpack.c.h.b16 %v5426
        %v5553 = vunpack.c.l.b16 %v5427
        %v5554 = vunpack.c.h.b16 %v5427
        %v5555 = vunpack.c.l.b16 %v5428
        %v5556 = vunpack.c.h.b16 %v5428
        %v5557 = vunpack.c.l.b16 %v5429
        %v5558 = vunpack.c.h.b16 %v5429
        %v5559 = vunpack.c.l.b16 %v5430
        %v5560 = vunpack.c.h.b16 %v5430
        %v5561 = vunpack.c.l.b16 %v5431
        %v5562 = vunpack.c.h.b16 %v5431
        %v5563 = vunpack.c.l.b16 %v5432
        %v5564 = vunpack.c.h.b16 %v5432
        %v5565 = vunpack.c.l.b16 %v5433
        %v5566 = vunpack.c.h.b16 %v5433
        %v5567 = vunpack.c.l.b16 %v5434
        %v5568 = vunpack.c.h.b16 %v5434
        %v5569 = vunpack.c.l.b16 %v5435
        %v5570 = vunpack.c.h.b16 %v5435
        %v5571 = vunpack.c.l.b16 %v5436
        %v5572 = vunpack.c.h.b16 %v5436
        %v5573 = vunpack.c.l.b16 %v5437
        %v5574 = vunpack.c.h.b16 %v5437
        %v5575 = vunpack.c.l.b16 %v5438
        %v5576 = vunpack.c.h.b16 %v5438
        %v5577 = vunpack.c.l.b16 %v5439
        %v5578 = vunpack.c.h.b16 %v5439
        %v5579 = vunpack.c.l.b16 %v5440
        %v5580 = vunpack.c.h.b16 %v5440
        %v5581 = vunpack.c.l.b16 %v5441
        %v5582 = vunpack.c.h.b16 %v5441
        %v5583 = vunpack.c.l.b16 %v5442
        %v5584 = vunpack.c.h.b16 %v5442
        %v5585 = vunpack.c.l.b16 %v5443
        %v5586 = vunpack.c.h.b16 %v5443
        %v5587 = vunpack.c.l.b16 %v5444
        %v5588 = vunpack.c.h.b16 %v5444
        %v5589 = vpack.c.b16 %v5495, %v5493
        %v5590 = vpack.c.b16 %v5496, %v5494
        %v5591 = vpack.c.b16 %v5499, %v5497
        %v5592 = vpack.c.b16 %v5500, %v5498
        %v5593 = vpack.c.b16 %v5503, %v5501
        %v5594 = vpack.c.b16 %v5504, %v5502
        %v5595 = vpack.c.b16 %v5507, %v5505
        %v5596 = vpack.c.b16 %v5508, %v5506
        %v5597 = vpack.c.b16 %v5511, %v5509
        %v5598 = vpack.c.b16 %v5512, %v5510
        %v5599 = vpack.c.b16 %v5515, %v5513
        %v5600 = vpack.c.b16 %v5516, %v5514
        %v5601 = vpack.c.b16 %v5519, %v5517
        %v5602 = vpack.c.b16 %v5520, %v5518
        %v5603 = vpack.c.b16 %v5523, %v5521
        %v5604 = vpack.c.b16 %v5524, %v5522
        %v5605 = vpack.c.b16 %v5527, %v5525
        %v5606 = vpack.c.b16 %v5528, %v5526
        %v5607 = vpack.c.b16 %v5531, %v5529
        %v5608 = vpack.c.b16 %v5532, %v5530
        %v5609 = vpack.c.b16 %v5535, %v5533
        %v5610 = vpack.c.b16 %v5536, %v5534
        %v5611 = vpack.c.b16 %v5539, %v5537
        %v5612 = vpack.c.b16 %v5540, %v5538
        %v5613 = vpack.c.b16 %v5543, %v5541
        %v5614 = vpack.c.b16 %v5544, %v5542
        %v5615 = vpack.c.b16 %v5547, %v5545
        %v5616 = vpack.c.b16 %v5548, %v5546
        %v5617 = vpack.c.b16 %v5551, %v5549
        %v5618 = vpack.c.b16 %v5552, %v5550
        %v5619 = vpack.c.b16 %v5555, %v5553
        %v5620 = vpack.c.b16 %v5556, %v5554
        %v5621 = vpack.c.b16 %v5559, %v5557
        %v5622 = vpack.c.b16 %v5560, %v5558
        %v5623 = vpack.c.b16 %v5563, %v5561
        %v5624 = vpack.c.b16 %v5564, %v5562
        %v5625 = vpack.c.b16 %v5567, %v5565
        %v5626 = vpack.c.b16 %v5568, %v5566
        %v5627 = vpack.c.b16 %v5571, %v5569
        %v5628 = vpack.c.b16 %v5572, %v5570
        %v5629 = vpack.c.b16 %v5575, %v5573
        %v5630 = vpack.c.b16 %v5576, %v5574
        %v5631 = vpack.c.b16 %v5579, %v5577
        %v5632 = vpack.c.b16 %v5580, %v5578
        %v5633 = vpack.c.b16 %v5583, %v5581
        %v5634 = vpack.c.b16 %v5584, %v5582
        %v5635 = vpack.c.b16 %v5587, %v5585
        %v5636 = vpack.c.b16 %v5588, %v5586
        %5685 = vmatpush.bf16.msra.mxu0 %v5603
        %5686 = vmatpush.bf16.msra.mxu0 %v5601
        %5687 = vmatpush.bf16.msra.mxu0 %v5599
        %5688 = vmatpush.bf16.msra.mxu0 %v5597
        %5689 = vmatpush.bf16.msra.mxu0 %v5595
        %5690 = vmatpush.bf16.msra.mxu0 %v5593
        %5691 = vmatpush.bf16.msra.mxu0 %v5591
        %5692 = vmatpush.bf16.msra.mxu0 %v5589
        %5693 = vmatmul.bf16.gmra.mxu0 %v4621
        %v5694 = vpop.f32.mrf.mxu0
        %v5695 = vadd.f32 0.0, %v5694
        %v5696 = vpop.f32.mrf.mxu0
        %v5697 = vadd.f32 0.0, %v5696
        %5698 = vmatmul.bf16.gmra.mxu0 %v4624
        %v5699 = vpop.f32.mrf.mxu0
        %v5700 = vadd.f32 0.0, %v5699
        %v5701 = vpop.f32.mrf.mxu0
        %v5702 = vadd.f32 0.0, %v5701
        %5703 = vdwg.mxu0
        %5704 = vmatpush.bf16.msra.mxu0 %v5619
        %5705 = vmatpush.bf16.msra.mxu0 %v5617
        %5706 = vmatpush.bf16.msra.mxu0 %v5615
        %5707 = vmatpush.bf16.msra.mxu0 %v5613
        %5708 = vmatpush.bf16.msra.mxu0 %v5611
        %5709 = vmatpush.bf16.msra.mxu0 %v5609
        %5710 = vmatpush.bf16.msra.mxu0 %v5607
        %5711 = vmatpush.bf16.msra.mxu0 %v5605
        %5712 = vmatmul.bf16.gmra.mxu0 %v4622
        %v5713 = vpop.f32.mrf.mxu0
        %v5714 = vadd.f32 %v5695, %v5713
        %v5715 = vpop.f32.mrf.mxu0
        %v5716 = vadd.f32 %v5697, %v5715
        %5717 = vmatmul.bf16.gmra.mxu0 %v4625
        %v5718 = vpop.f32.mrf.mxu0
        %v5719 = vadd.f32 %v5700, %v5718
        %v5720 = vpop.f32.mrf.mxu0
        %v5721 = vadd.f32 %v5702, %v5720
        %5722 = vdwg.mxu0
        %5723 = vmatpush.bf16.msra.mxu0 %v5635
        %5724 = vmatpush.bf16.msra.mxu0 %v5633
        %5725 = vmatpush.bf16.msra.mxu0 %v5631
        %5726 = vmatpush.bf16.msra.mxu0 %v5629
        %5727 = vmatpush.bf16.msra.mxu0 %v5627
        %5728 = vmatpush.bf16.msra.mxu0 %v5625
        %5729 = vmatpush.bf16.msra.mxu0 %v5623
        %5730 = vmatpush.bf16.msra.mxu0 %v5621
        %5731 = vmatmul.bf16.gmra.mxu0 %v4623
        %v5732 = vpop.f32.mrf.mxu0
        %v5733 = vadd.f32 %v5714, %v5732
        %v5734 = vpop.f32.mrf.mxu0
        %v5735 = vadd.f32 %v5716, %v5734
        %5736 = vmatmul.bf16.gmra.mxu0 %v4626
        %v5737 = vpop.f32.mrf.mxu0
        %v5738 = vadd.f32 %v5719, %v5737
        %v5739 = vpop.f32.mrf.mxu0
        %v5740 = vadd.f32 %v5721, %v5739
        %5741 = vdwg.mxu0
        %5742 = vmatpush.bf16.msra.mxu0 %v5604
        %5743 = vmatpush.bf16.msra.mxu0 %v5602
        %5744 = vmatpush.bf16.msra.mxu0 %v5600
        %5745 = vmatpush.bf16.msra.mxu0 %v5598
        %5746 = vmatpush.bf16.msra.mxu0 %v5596
        %5747 = vmatpush.bf16.msra.mxu0 %v5594
        %5748 = vmatpush.bf16.msra.mxu0 %v5592
        %5749 = vmatpush.bf16.msra.mxu0 %v5590
        %5750 = vmatmul.bf16.gmra.mxu0 %v4621
        %v5751 = vpop.f32.mrf.mxu0
        %v5752 = vadd.f32 0.0, %v5751
        %v5753 = vpop.f32.mrf.mxu0
        %v5754 = vadd.f32 0.0, %v5753
        %5755 = vmatmul.bf16.gmra.mxu0 %v4624
        %v5756 = vpop.f32.mrf.mxu0
        %v5757 = vadd.f32 0.0, %v5756
        %v5758 = vpop.f32.mrf.mxu0
        %v5759 = vadd.f32 0.0, %v5758
        %5760 = vdwg.mxu0
        %5761 = vmatpush.bf16.msra.mxu0 %v5620
        %5762 = vmatpush.bf16.msra.mxu0 %v5618
        %5763 = vmatpush.bf16.msra.mxu0 %v5616
        %5764 = vmatpush.bf16.msra.mxu0 %v5614
        %5765 = vmatpush.bf16.msra.mxu0 %v5612
        %5766 = vmatpush.bf16.msra.mxu0 %v5610
        %5767 = vmatpush.bf16.msra.mxu0 %v5608
        %5768 = vmatpush.bf16.msra.mxu0 %v5606
        %5769 = vmatmul.bf16.gmra.mxu0 %v4622
        %v5770 = vpop.f32.mrf.mxu0
        %v5771 = vadd.f32 %v5752, %v5770
        %v5772 = vpop.f32.mrf.mxu0
        %v5773 = vadd.f32 %v5754, %v5772
        %5774 = vmatmul.bf16.gmra.mxu0 %v4625
        %v5775 = vpop.f32.mrf.mxu0
        %v5776 = vadd.f32 %v5757, %v5775
        %v5777 = vpop.f32.mrf.mxu0
        %v5778 = vadd.f32 %v5759, %v5777
        %5779 = vdwg.mxu0
        %5780 = vmatpush.bf16.msra.mxu0 %v5636
        %5781 = vmatpush.bf16.msra.mxu0 %v5634
        %5782 = vmatpush.bf16.msra.mxu0 %v5632
        %5783 = vmatpush.bf16.msra.mxu0 %v5630
        %5784 = vmatpush.bf16.msra.mxu0 %v5628
        %5785 = vmatpush.bf16.msra.mxu0 %v5626
        %5786 = vmatpush.bf16.msra.mxu0 %v5624
        %5787 = vmatpush.bf16.msra.mxu0 %v5622
        %5788 = vmatmul.bf16.gmra.mxu0 %v4623
        %v5789 = vpop.f32.mrf.mxu0
        %v5790 = vadd.f32 %v5771, %v5789
        %v5791 = vpop.f32.mrf.mxu0
        %v5792 = vadd.f32 %v5773, %v5791
        %5793 = vmatmul.bf16.gmra.mxu0 %v4626
        %v5794 = vpop.f32.mrf.mxu0
        %v5795 = vadd.f32 %v5776, %v5794
        %v5796 = vpop.f32.mrf.mxu0
        %v5797 = vadd.f32 %v5778, %v5796
        %5798 = vdwg.mxu0
        %v5807 = vrot.slane %v4921, 7
        %v5808 = vrot.slane %v4978, 7
        %v5809 = vrot.slane %v4923, 7
        %v5810 = vsel %vm4423, %v5807, %v5809
        %v5811 = vrot.slane %v4980, 7
        %v5812 = vsel %vm4423, %v5808, %v5811
        %v5813 = vrot.slane %v4926, 7
        %v5814 = vrot.slane %v4983, 7
        %v5815 = vrot.slane %v4928, 7
        %v5816 = vsel %vm4423, %v5813, %v5815
        %v5817 = vrot.slane %v4985, 7
        %v5818 = vsel %vm4423, %v5814, %v5817
        %v5827 = vsel %vm4423, 0.0, %v5807
        %v5828 = vsel %vm4423, 0.0, %v5808
        %v5829 = vsel %vm4423, 0.0, %v5813
        %v5830 = vsel %vm4423, 0.0, %v5814
        %v5831 = vadd.f32 %v5330, %v5827
        %v5832 = vadd.f32 %v5387, %v5828
        %v5833 = vadd.f32 %v5332, %v5810
        %v5834 = vadd.f32 %v5389, %v5812
        %v5835 = vadd.f32 %v5335, %v5829
        %v5836 = vadd.f32 %v5392, %v5830
        %v5837 = vadd.f32 %v5337, %v5816
        %v5838 = vadd.f32 %v5394, %v5818
        %v5847 = vrot.slane %v5733, 1
        %v5848 = vrot.slane %v5735, 1
        %v5849 = vsel %vm4484, %v5847, %v5848
        %v5850 = vrot.slane %v5790, 1
        %v5851 = vrot.slane %v5792, 1
        %v5852 = vsel %vm4484, %v5850, %v5851
        %v5853 = vrot.slane %v5738, 1
        %v5854 = vrot.slane %v5740, 1
        %v5855 = vsel %vm4484, %v5853, %v5854
        %v5856 = vrot.slane %v5795, 1
        %v5857 = vrot.slane %v5797, 1
        %v5858 = vsel %vm4484, %v5856, %v5857
        %v5867 = vsel %vm4484, %v5848, 0.0
        %v5868 = vsel %vm4484, %v5851, 0.0
        %v5869 = vsel %vm4484, %v5854, 0.0
        %v5870 = vsel %vm4484, %v5857, 0.0
        %v5871 = vadd.f32 %v5831, %v5849
        %v5872 = vadd.f32 %v5832, %v5852
        %v5873 = vadd.f32 %v5833, %v5867
        %v5874 = vadd.f32 %v5834, %v5868
        %v5875 = vadd.f32 %v5835, %v5855
        %v5876 = vadd.f32 %v5836, %v5858
        %v5877 = vadd.f32 %v5837, %v5869
        %v5878 = vadd.f32 %v5838, %v5870
        %v5879 = vmax.f32 %v5871, 0.0
        %v5880 = vmax.f32 %v5872, 0.0
        %v5881 = vmax.f32 %v5873, 0.0
        %v5882 = vmax.f32 %v5874, 0.0
        %v5883 = vmax.f32 %v5875, 0.0
        %v5884 = vmax.f32 %v5876, 0.0
        %v5885 = vmax.f32 %v5877, 0.0
        %v5886 = vmax.f32 %v5878, 0.0
        %v5887 = vpack.c.bf16 %v5880, %v5879
        %v5888 = vpack.c.bf16 %v5882, %v5881
        %v5889 = vpack.c.bf16 %v5884, %v5883
        %v5890 = vpack.c.bf16 %v5886, %v5885
        %v5891 = vld [vmem:[#allocation7] sm:$0xf]
        %v5892 = vld [vmem:[#allocation7 + $0x4] sm:$0xf]
        %v5893 = vld [vmem:[#allocation7 + $0x8] sm:$0xf]
        %v5894 = vld [vmem:[#allocation7 + $0xc] sm:$0xf]
        %v5895 = vld [vmem:[#allocation7 + $0x10] sm:$0xf]
        %v5896 = vld [vmem:[#allocation7 + $0x14] sm:$0xf]
        %v5897 = vld [vmem:[#allocation7 + $0x18] sm:$0xf]
        %v5898 = vld [vmem:[#allocation7 + $0x1c] sm:$0xf]
        %v5899 = vld [vmem:[#allocation7 + $0x20] sm:$0xf]
        %v5900 = vld [vmem:[#allocation7 + $0x24] sm:$0xf]
        %v5901 = vld [vmem:[#allocation7 + $0x28] sm:$0xf]
        %v5902 = vld [vmem:[#allocation7 + $0x2c] sm:$0xf]
        %v5903 = vld [vmem:[#allocation7 + $0x30] sm:$0xf]
        %v5904 = vld [vmem:[#allocation7 + $0x34] sm:$0xf]
        %v5905 = vld [vmem:[#allocation7 + $0x38] sm:$0xf]
        %v5906 = vld [vmem:[#allocation7 + $0x3c] sm:$0xf]
        %v5907 = vld [vmem:[#allocation7 + $0x40] sm:$0xf]
        %v5908 = vld [vmem:[#allocation7 + $0x44] sm:$0xf]
        %v5909 = vld [vmem:[#allocation7 + $0x48] sm:$0xf]
        %v5910 = vld [vmem:[#allocation7 + $0x4c] sm:$0xf]
        %v5911 = vld [vmem:[#allocation7 + $0x50] sm:$0xf]
        %v5912 = vld [vmem:[#allocation7 + $0x54] sm:$0xf]
        %v5913 = vld [vmem:[#allocation7 + $0x58] sm:$0xf]
        %v5914 = vld [vmem:[#allocation7 + $0x5c] sm:$0xf]
        %v5915 = vld [vmem:[#allocation7 + $0x60] sm:$0xf]
        %v5916 = vld [vmem:[#allocation7 + $0x64] sm:$0xf]
        %v5917 = vld [vmem:[#allocation7 + $0x68] sm:$0xf]
        %v5918 = vld [vmem:[#allocation7 + $0x6c] sm:$0xf]
        %v5919 = vld [vmem:[#allocation7 + $0x70] sm:$0xf]
        %v5920 = vld [vmem:[#allocation7 + $0x74] sm:$0xf]
        %v5921 = vld [vmem:[#allocation7 + $0x78] sm:$0xf]
        %v5922 = vld [vmem:[#allocation7 + $0x7c] sm:$0xf]
        %v5927 = vunpack.c.l.b16 %v5887
        %v5928 = vunpack.c.h.b16 %v5887
        %v5929 = vunpack.c.l.b16 %v5888
        %v5930 = vunpack.c.h.b16 %v5888
        %v5931 = vunpack.c.l.b16 %v5889
        %v5932 = vunpack.c.h.b16 %v5889
        %v5933 = vunpack.c.l.b16 %v5890
        %v5934 = vunpack.c.h.b16 %v5890
        %v5935 = vpack.c.b16 %v5929, %v5927
        %v5936 = vpack.c.b16 %v5930, %v5928
        %v5937 = vpack.c.b16 %v5933, %v5931
        %v5938 = vpack.c.b16 %v5934, %v5932
        %v5975 = vunpack.c.l.b16 %v5891
        %v5976 = vunpack.c.l.b16 %v5892
        %v5977 = vunpack.c.l.b16 %v5893
        %v5978 = vunpack.c.l.b16 %v5894
        %v5979 = vunpack.c.l.b16 %v5895
        %v5980 = vunpack.c.l.b16 %v5896
        %v5981 = vunpack.c.l.b16 %v5897
        %v5982 = vunpack.c.l.b16 %v5898
        %v5983 = vunpack.c.l.b16 %v5899
        %v5984 = vunpack.c.l.b16 %v5900
        %v5985 = vunpack.c.l.b16 %v5901
        %v5986 = vunpack.c.l.b16 %v5902
        %v5987 = vunpack.c.l.b16 %v5903
        %v5988 = vunpack.c.l.b16 %v5904
        %v5989 = vunpack.c.l.b16 %v5905
        %v5990 = vunpack.c.l.b16 %v5906
        %v5991 = vunpack.c.l.b16 %v5907
        %v5992 = vunpack.c.l.b16 %v5908
        %v5993 = vunpack.c.l.b16 %v5909
        %v5994 = vunpack.c.l.b16 %v5910
        %v5995 = vunpack.c.l.b16 %v5911
        %v5996 = vunpack.c.l.b16 %v5912
        %v5997 = vunpack.c.l.b16 %v5913
        %v5998 = vunpack.c.l.b16 %v5914
        %v5999 = vunpack.c.l.b16 %v5915
        %v6000 = vunpack.c.l.b16 %v5916
        %v6001 = vunpack.c.l.b16 %v5917
        %v6002 = vunpack.c.l.b16 %v5918
        %v6003 = vunpack.c.l.b16 %v5919
        %v6004 = vunpack.c.l.b16 %v5920
        %v6005 = vunpack.c.l.b16 %v5921
        %v6006 = vunpack.c.l.b16 %v5922
        %v6007 = vpack.c.b16 %v5976, %v5975
        %v6008 = vpack.c.b16 %v5978, %v5977
        %v6009 = vpack.c.b16 %v5980, %v5979
        %v6010 = vpack.c.b16 %v5982, %v5981
        %v6011 = vpack.c.b16 %v5984, %v5983
        %v6012 = vpack.c.b16 %v5986, %v5985
        %v6013 = vpack.c.b16 %v5988, %v5987
        %v6014 = vpack.c.b16 %v5990, %v5989
        %v6015 = vpack.c.b16 %v5992, %v5991
        %v6016 = vpack.c.b16 %v5994, %v5993
        %v6017 = vpack.c.b16 %v5996, %v5995
        %v6018 = vpack.c.b16 %v5998, %v5997
        %v6019 = vpack.c.b16 %v6000, %v5999
        %v6020 = vpack.c.b16 %v6002, %v6001
        %v6021 = vpack.c.b16 %v6004, %v6003
        %v6022 = vpack.c.b16 %v6006, %v6005
        %6039 = vmatpush.bf16.msra.mxu0 %v6014
        %6040 = vmatpush.bf16.msra.mxu0 %v6013
        %6041 = vmatpush.bf16.msra.mxu0 %v6012
        %6042 = vmatpush.bf16.msra.mxu0 %v6011
        %6043 = vmatpush.bf16.msra.mxu0 %v6010
        %6044 = vmatpush.bf16.msra.mxu0 %v6009
        %6045 = vmatpush.bf16.msra.mxu0 %v6008
        %6046 = vmatpush.bf16.msra.mxu0 %v6007
        %6047 = vmatmul.bf16.gmra.mxu0 %v5935
        %v6048 = vpop.f32.mrf.mxu0
        %v6049 = vadd.f32 0.0, %v6048
        %v6050 = vpop.f32.mrf.mxu0
        %v6051 = vadd.f32 0.0, %v6050
        %6052 = vmatmul.bf16.gmra.mxu0 %v5937
        %v6053 = vpop.f32.mrf.mxu0
        %v6054 = vadd.f32 0.0, %v6053
        %v6055 = vpop.f32.mrf.mxu0
        %v6056 = vadd.f32 0.0, %v6055
        %6057 = vdwg.mxu0
        %6058 = vmatpush.bf16.msra.mxu0 %v6022
        %6059 = vmatpush.bf16.msra.mxu0 %v6021
        %6060 = vmatpush.bf16.msra.mxu0 %v6020
        %6061 = vmatpush.bf16.msra.mxu0 %v6019
        %6062 = vmatpush.bf16.msra.mxu0 %v6018
        %6063 = vmatpush.bf16.msra.mxu0 %v6017
        %6064 = vmatpush.bf16.msra.mxu0 %v6016
        %6065 = vmatpush.bf16.msra.mxu0 %v6015
        %6066 = vmatmul.bf16.gmra.mxu0 %v5936
        %v6067 = vpop.f32.mrf.mxu0
        %v6068 = vadd.f32 %v6049, %v6067
        %v6069 = vpop.f32.mrf.mxu0
        %v6070 = vadd.f32 %v6051, %v6069
        %6071 = vmatmul.bf16.gmra.mxu0 %v5938
        %v6072 = vpop.f32.mrf.mxu0
        %v6073 = vadd.f32 %v6054, %v6072
        %v6074 = vpop.f32.mrf.mxu0
        %v6075 = vadd.f32 %v6056, %v6074
        %6076 = vdwg.mxu0
        %s6077 = scalar_lea.vmem [#allocation7], 128
        %v6078 = vld [vmem:[%s6077] sm:$0xf]
        %v6079 = vld [vmem:[%s6077 + $0x4] sm:$0xf]
        %v6080 = vld [vmem:[%s6077 + $0x8] sm:$0xf]
        %v6081 = vld [vmem:[%s6077 + $0xc] sm:$0xf]
        %v6082 = vld [vmem:[%s6077 + $0x10] sm:$0xf]
        %v6083 = vld [vmem:[%s6077 + $0x14] sm:$0xf]
        %v6084 = vld [vmem:[%s6077 + $0x18] sm:$0xf]
        %v6085 = vld [vmem:[%s6077 + $0x1c] sm:$0xf]
        %v6086 = vld [vmem:[%s6077 + $0x20] sm:$0xf]
        %v6087 = vld [vmem:[%s6077 + $0x24] sm:$0xf]
        %v6088 = vld [vmem:[%s6077 + $0x28] sm:$0xf]
        %v6089 = vld [vmem:[%s6077 + $0x2c] sm:$0xf]
        %v6090 = vld [vmem:[%s6077 + $0x30] sm:$0xf]
        %v6091 = vld [vmem:[%s6077 + $0x34] sm:$0xf]
        %v6092 = vld [vmem:[%s6077 + $0x38] sm:$0xf]
        %v6093 = vld [vmem:[%s6077 + $0x3c] sm:$0xf]
        %v6094 = vld [vmem:[%s6077 + $0x40] sm:$0xf]
        %v6095 = vld [vmem:[%s6077 + $0x44] sm:$0xf]
        %v6096 = vld [vmem:[%s6077 + $0x48] sm:$0xf]
        %v6097 = vld [vmem:[%s6077 + $0x4c] sm:$0xf]
        %v6098 = vld [vmem:[%s6077 + $0x50] sm:$0xf]
        %v6099 = vld [vmem:[%s6077 + $0x54] sm:$0xf]
        %v6100 = vld [vmem:[%s6077 + $0x58] sm:$0xf]
        %v6101 = vld [vmem:[%s6077 + $0x5c] sm:$0xf]
        %v6102 = vld [vmem:[%s6077 + $0x60] sm:$0xf]
        %v6103 = vld [vmem:[%s6077 + $0x64] sm:$0xf]
        %v6104 = vld [vmem:[%s6077 + $0x68] sm:$0xf]
        %v6105 = vld [vmem:[%s6077 + $0x6c] sm:$0xf]
        %v6106 = vld [vmem:[%s6077 + $0x70] sm:$0xf]
        %v6107 = vld [vmem:[%s6077 + $0x74] sm:$0xf]
        %v6108 = vld [vmem:[%s6077 + $0x78] sm:$0xf]
        %v6109 = vld [vmem:[%s6077 + $0x7c] sm:$0xf]
        %v6110 = vld [vmem:[#allocation12] sm:$0x1]
        %v6112 = vperm.slane %v6110, 0
        %v6146 = vunpack.c.l.b16 %v6078
        %v6147 = vunpack.c.l.b16 %v6079
        %v6148 = vunpack.c.l.b16 %v6080
        %v6149 = vunpack.c.l.b16 %v6081
        %v6150 = vunpack.c.l.b16 %v6082
        %v6151 = vunpack.c.l.b16 %v6083
        %v6152 = vunpack.c.l.b16 %v6084
        %v6153 = vunpack.c.l.b16 %v6085
        %v6154 = vunpack.c.l.b16 %v6086
        %v6155 = vunpack.c.l.b16 %v6087
        %v6156 = vunpack.c.l.b16 %v6088
        %v6157 = vunpack.c.l.b16 %v6089
        %v6158 = vunpack.c.l.b16 %v6090
        %v6159 = vunpack.c.l.b16 %v6091
        %v6160 = vunpack.c.l.b16 %v6092
        %v6161 = vunpack.c.l.b16 %v6093
        %v6162 = vunpack.c.l.b16 %v6094
        %v6163 = vunpack.c.l.b16 %v6095
        %v6164 = vunpack.c.l.b16 %v6096
        %v6165 = vunpack.c.l.b16 %v6097
        %v6166 = vunpack.c.l.b16 %v6098
        %v6167 = vunpack.c.l.b16 %v6099
        %v6168 = vunpack.c.l.b16 %v6100
        %v6169 = vunpack.c.l.b16 %v6101
        %v6170 = vunpack.c.l.b16 %v6102
        %v6171 = vunpack.c.l.b16 %v6103
        %v6172 = vunpack.c.l.b16 %v6104
        %v6173 = vunpack.c.l.b16 %v6105
        %v6174 = vunpack.c.l.b16 %v6106
        %v6175 = vunpack.c.l.b16 %v6107
        %v6176 = vunpack.c.l.b16 %v6108
        %v6177 = vunpack.c.l.b16 %v6109
        %v6178 = vpack.c.b16 %v6147, %v6146
        %v6179 = vpack.c.b16 %v6149, %v6148
        %v6180 = vpack.c.b16 %v6151, %v6150
        %v6181 = vpack.c.b16 %v6153, %v6152
        %v6182 = vpack.c.b16 %v6155, %v6154
        %v6183 = vpack.c.b16 %v6157, %v6156
        %v6184 = vpack.c.b16 %v6159, %v6158
        %v6185 = vpack.c.b16 %v6161, %v6160
        %v6186 = vpack.c.b16 %v6163, %v6162
        %v6187 = vpack.c.b16 %v6165, %v6164
        %v6188 = vpack.c.b16 %v6167, %v6166
        %v6189 = vpack.c.b16 %v6169, %v6168
        %v6190 = vpack.c.b16 %v6171, %v6170
        %v6191 = vpack.c.b16 %v6173, %v6172
        %v6192 = vpack.c.b16 %v6175, %v6174
        %v6193 = vpack.c.b16 %v6177, %v6176
        %6210 = vmatpush.bf16.msra.mxu0 %v6185
        %6211 = vmatpush.bf16.msra.mxu0 %v6184
        %6212 = vmatpush.bf16.msra.mxu0 %v6183
        %6213 = vmatpush.bf16.msra.mxu0 %v6182
        %6214 = vmatpush.bf16.msra.mxu0 %v6181
        %6215 = vmatpush.bf16.msra.mxu0 %v6180
        %6216 = vmatpush.bf16.msra.mxu0 %v6179
        %6217 = vmatpush.bf16.msra.mxu0 %v6178
        %6218 = vmatmul.bf16.gmra.mxu0 %v5935
        %v6219 = vpop.f32.mrf.mxu0
        %v6220 = vadd.f32 %v6112, %v6219
        %v6221 = vpop.f32.mrf.mxu0
        %v6222 = vadd.f32 %v6112, %v6221
        %6223 = vmatmul.bf16.gmra.mxu0 %v5937
        %v6224 = vpop.f32.mrf.mxu0
        %v6225 = vadd.f32 %v6112, %v6224
        %v6226 = vpop.f32.mrf.mxu0
        %v6227 = vadd.f32 %v6112, %v6226
        %6228 = vdwg.mxu0
        %6229 = vmatpush.bf16.msra.mxu0 %v6193
        %6230 = vmatpush.bf16.msra.mxu0 %v6192
        %6231 = vmatpush.bf16.msra.mxu0 %v6191
        %6232 = vmatpush.bf16.msra.mxu0 %v6190
        %6233 = vmatpush.bf16.msra.mxu0 %v6189
        %6234 = vmatpush.bf16.msra.mxu0 %v6188
        %6235 = vmatpush.bf16.msra.mxu0 %v6187
        %6236 = vmatpush.bf16.msra.mxu0 %v6186
        %6237 = vmatmul.bf16.gmra.mxu0 %v5936
        %v6238 = vpop.f32.mrf.mxu0
        %v6239 = vadd.f32 %v6220, %v6238
        %v6240 = vpop.f32.mrf.mxu0
        %v6241 = vadd.f32 %v6222, %v6240
        %6242 = vmatmul.bf16.gmra.mxu0 %v5938
        %v6243 = vpop.f32.mrf.mxu0
        %v6244 = vadd.f32 %v6225, %v6243
        %v6245 = vpop.f32.mrf.mxu0
        %v6246 = vadd.f32 %v6227, %v6245
        %6247 = vdwg.mxu0
        %s6248 = scalar_lea.vmem [#allocation7], 256
        %v6249 = vld [vmem:[%s6248] sm:$0xf]
        %v6250 = vld [vmem:[%s6248 + $0x4] sm:$0xf]
        %v6251 = vld [vmem:[%s6248 + $0x8] sm:$0xf]
        %v6252 = vld [vmem:[%s6248 + $0xc] sm:$0xf]
        %v6253 = vld [vmem:[%s6248 + $0x10] sm:$0xf]
        %v6254 = vld [vmem:[%s6248 + $0x14] sm:$0xf]
        %v6255 = vld [vmem:[%s6248 + $0x18] sm:$0xf]
        %v6256 = vld [vmem:[%s6248 + $0x1c] sm:$0xf]
        %v6257 = vld [vmem:[%s6248 + $0x20] sm:$0xf]
        %v6258 = vld [vmem:[%s6248 + $0x24] sm:$0xf]
        %v6259 = vld [vmem:[%s6248 + $0x28] sm:$0xf]
        %v6260 = vld [vmem:[%s6248 + $0x2c] sm:$0xf]
        %v6261 = vld [vmem:[%s6248 + $0x30] sm:$0xf]
        %v6262 = vld [vmem:[%s6248 + $0x34] sm:$0xf]
        %v6263 = vld [vmem:[%s6248 + $0x38] sm:$0xf]
        %v6264 = vld [vmem:[%s6248 + $0x3c] sm:$0xf]
        %v6265 = vld [vmem:[%s6248 + $0x40] sm:$0xf]
        %v6266 = vld [vmem:[%s6248 + $0x44] sm:$0xf]
        %v6267 = vld [vmem:[%s6248 + $0x48] sm:$0xf]
        %v6268 = vld [vmem:[%s6248 + $0x4c] sm:$0xf]
        %v6269 = vld [vmem:[%s6248 + $0x50] sm:$0xf]
        %v6270 = vld [vmem:[%s6248 + $0x54] sm:$0xf]
        %v6271 = vld [vmem:[%s6248 + $0x58] sm:$0xf]
        %v6272 = vld [vmem:[%s6248 + $0x5c] sm:$0xf]
        %v6273 = vld [vmem:[%s6248 + $0x60] sm:$0xf]
        %v6274 = vld [vmem:[%s6248 + $0x64] sm:$0xf]
        %v6275 = vld [vmem:[%s6248 + $0x68] sm:$0xf]
        %v6276 = vld [vmem:[%s6248 + $0x6c] sm:$0xf]
        %v6277 = vld [vmem:[%s6248 + $0x70] sm:$0xf]
        %v6278 = vld [vmem:[%s6248 + $0x74] sm:$0xf]
        %v6279 = vld [vmem:[%s6248 + $0x78] sm:$0xf]
        %v6280 = vld [vmem:[%s6248 + $0x7c] sm:$0xf]
        %v6313 = vunpack.c.l.b16 %v6249
        %v6314 = vunpack.c.l.b16 %v6250
        %v6315 = vunpack.c.l.b16 %v6251
        %v6316 = vunpack.c.l.b16 %v6252
        %v6317 = vunpack.c.l.b16 %v6253
        %v6318 = vunpack.c.l.b16 %v6254
        %v6319 = vunpack.c.l.b16 %v6255
        %v6320 = vunpack.c.l.b16 %v6256
        %v6321 = vunpack.c.l.b16 %v6257
        %v6322 = vunpack.c.l.b16 %v6258
        %v6323 = vunpack.c.l.b16 %v6259
        %v6324 = vunpack.c.l.b16 %v6260
        %v6325 = vunpack.c.l.b16 %v6261
        %v6326 = vunpack.c.l.b16 %v6262
        %v6327 = vunpack.c.l.b16 %v6263
        %v6328 = vunpack.c.l.b16 %v6264
        %v6329 = vunpack.c.l.b16 %v6265
        %v6330 = vunpack.c.l.b16 %v6266
        %v6331 = vunpack.c.l.b16 %v6267
        %v6332 = vunpack.c.l.b16 %v6268
        %v6333 = vunpack.c.l.b16 %v6269
        %v6334 = vunpack.c.l.b16 %v6270
        %v6335 = vunpack.c.l.b16 %v6271
        %v6336 = vunpack.c.l.b16 %v6272
        %v6337 = vunpack.c.l.b16 %v6273
        %v6338 = vunpack.c.l.b16 %v6274
        %v6339 = vunpack.c.l.b16 %v6275
        %v6340 = vunpack.c.l.b16 %v6276
        %v6341 = vunpack.c.l.b16 %v6277
        %v6342 = vunpack.c.l.b16 %v6278
        %v6343 = vunpack.c.l.b16 %v6279
        %v6344 = vunpack.c.l.b16 %v6280
        %v6345 = vpack.c.b16 %v6314, %v6313
        %v6346 = vpack.c.b16 %v6316, %v6315
        %v6347 = vpack.c.b16 %v6318, %v6317
        %v6348 = vpack.c.b16 %v6320, %v6319
        %v6349 = vpack.c.b16 %v6322, %v6321
        %v6350 = vpack.c.b16 %v6324, %v6323
        %v6351 = vpack.c.b16 %v6326, %v6325
        %v6352 = vpack.c.b16 %v6328, %v6327
        %v6353 = vpack.c.b16 %v6330, %v6329
        %v6354 = vpack.c.b16 %v6332, %v6331
        %v6355 = vpack.c.b16 %v6334, %v6333
        %v6356 = vpack.c.b16 %v6336, %v6335
        %v6357 = vpack.c.b16 %v6338, %v6337
        %v6358 = vpack.c.b16 %v6340, %v6339
        %v6359 = vpack.c.b16 %v6342, %v6341
        %v6360 = vpack.c.b16 %v6344, %v6343
        %6377 = vmatpush.bf16.msra.mxu0 %v6352
        %6378 = vmatpush.bf16.msra.mxu0 %v6351
        %6379 = vmatpush.bf16.msra.mxu0 %v6350
        %6380 = vmatpush.bf16.msra.mxu0 %v6349
        %6381 = vmatpush.bf16.msra.mxu0 %v6348
        %6382 = vmatpush.bf16.msra.mxu0 %v6347
        %6383 = vmatpush.bf16.msra.mxu0 %v6346
        %6384 = vmatpush.bf16.msra.mxu0 %v6345
        %6385 = vmatmul.bf16.gmra.mxu0 %v5935
        %v6386 = vpop.f32.mrf.mxu0
        %v6387 = vadd.f32 0.0, %v6386
        %v6388 = vpop.f32.mrf.mxu0
        %v6389 = vadd.f32 0.0, %v6388
        %6390 = vmatmul.bf16.gmra.mxu0 %v5937
        %v6391 = vpop.f32.mrf.mxu0
        %v6392 = vadd.f32 0.0, %v6391
        %v6393 = vpop.f32.mrf.mxu0
        %v6394 = vadd.f32 0.0, %v6393
        %6395 = vdwg.mxu0
        %6396 = vmatpush.bf16.msra.mxu0 %v6360
        %6397 = vmatpush.bf16.msra.mxu0 %v6359
        %6398 = vmatpush.bf16.msra.mxu0 %v6358
        %6399 = vmatpush.bf16.msra.mxu0 %v6357
        %6400 = vmatpush.bf16.msra.mxu0 %v6356
        %6401 = vmatpush.bf16.msra.mxu0 %v6355
        %6402 = vmatpush.bf16.msra.mxu0 %v6354
        %6403 = vmatpush.bf16.msra.mxu0 %v6353
        %6404 = vmatmul.bf16.gmra.mxu0 %v5936
        %v6405 = vpop.f32.mrf.mxu0
        %v6406 = vadd.f32 %v6387, %v6405
        %v6407 = vpop.f32.mrf.mxu0
        %v6408 = vadd.f32 %v6389, %v6407
        %6409 = vmatmul.bf16.gmra.mxu0 %v5938
        %v6410 = vpop.f32.mrf.mxu0
        %v6411 = vadd.f32 %v6392, %v6410
        %v6412 = vpop.f32.mrf.mxu0
        %v6413 = vadd.f32 %v6394, %v6412
        %6414 = vdwg.mxu0
        %v6419 = vrot.slane %v6068, 7
        %v6420 = vrot.slane %v6070, 7
        %v6421 = vsel %vm4423, %v6419, %v6420
        %v6422 = vrot.slane %v6073, 7
        %v6423 = vrot.slane %v6075, 7
        %v6424 = vsel %vm4423, %v6422, %v6423
        %v6429 = vsel %vm4423, 0.0, %v6419
        %v6430 = vsel %vm4423, 0.0, %v6422
        %v6431 = vadd.f32 %v6239, %v6429
        %v6432 = vadd.f32 %v6241, %v6421
        %v6433 = vadd.f32 %v6244, %v6430
        %v6434 = vadd.f32 %v6246, %v6424
        %v6439 = vrot.slane %v6406, 1
        %v6440 = vrot.slane %v6408, 1
        %v6441 = vsel %vm4484, %v6439, %v6440
        %v6442 = vrot.slane %v6411, 1
        %v6443 = vrot.slane %v6413, 1
        %v6444 = vsel %vm4484, %v6442, %v6443
        %v6449 = vsel %vm4484, %v6440, 0.0
        %v6450 = vsel %vm4484, %v6443, 0.0
        %v6451 = vadd.f32 %v6431, %v6441
        %v6452 = vadd.f32 %v6432, %v6449
        %v6453 = vadd.f32 %v6433, %v6444
        %v6454 = vadd.f32 %v6434, %v6450
        %v6455 = vmax.f32 %v6451, 0.0
        %v6456 = vmax.f32 %v6452, 0.0
        %v6457 = vmax.f32 %v6453, 0.0
        %v6458 = vmax.f32 %v6454, 0.0
        %6459 = vst [vmem:[%s397] sm:$0xff] %v6455
        %6460 = vst [vmem:[%s397 + $0x8] sm:$0xff] %v6456
        %6461 = vst [vmem:[%s397 + $0x10] sm:$0xff] %v6457
        %6462 = vst [vmem:[%s397 + $0x18] sm:$0xff] %v6458
        %s6463 = smul.u32 2, %s24
        %p6464 = scmp.lt.s32.totalorder %s6463, 3
        %s6465 = scalar_select %p6464, %s6463, 3
        %s6466 = smul.addr %s6465, 2
        %s6467 = smul.addr %s6466, 8
        %s6468 = scalar_lea.vmem %s7, %s6467
        // Predicated region
        $region77: #{cnn_forward.1} parent=47 // pred_check
          %p6469 = pneg %p194
        $region78: #{cnn_forward.1} parent=47 // pred_check_branch
          %6471 = sbr.rel (%p6469) target = $region80
        $region79: #{cnn_forward.1} parent=47 // pred_region
          %s6472 = smul.u32 2, %s24
        $region80: #{cnn_forward.1} parent=47 // pred_fallthru
          _
      $region48: #{cnn_forward.1} parent=5 // pred_fallthru
        _
      %p6473 = scmp.le.s32.totalorder 2, %s19
      // Predicated region
      $region81: #{cnn_forward.1} parent=5 // pred_check
        %p6474 = pneg %p6473
      $region82: #{cnn_forward.1} parent=5 // pred_check_branch
        %6476 = sbr.rel (%p6474) target = $region84
      $region83: #{cnn_forward.1} parent=5 // pred_region
        %s6477 = ssub.s32 %s19, 2
        // Predicated region
        $region85: #{cnn_forward.1} parent=83 // pred_check
          %p6478 = pneg %p200
        $region86: #{cnn_forward.1} parent=83 // pred_check_branch
          %6480 = sbr.rel (%p6478) target = $region88
        $region87: #{cnn_forward.1} parent=83 // pred_region
          %s6481 = smul.u32 2, %s25
          %p6482 = scmp.lt.s32.totalorder %s6481, 3
          %s6483 = scalar_select %p6482, %s6481, 3
          %s6484 = smul.addr %s6483, 2
          %s6485 = smul.addr %s6484, 8
          %s6486 = scalar_lea.vmem %s7, %s6485
        $region88: #{cnn_forward.1} parent=83 // pred_fallthru
          _
      $region84: #{cnn_forward.1} parent=5 // pred_fallthru
        _
    $region6: #{cnn_forward.1} parent=1 // loop_footer
      %s23 = sadd.s32 1, %s19
    $region7: #{cnn_forward.1} parent=1 // loop_footer_branch
      %18 = sbr.rel target = $region3
    $region8: #{cnn_forward.1} parent=1 // loop_exit
      _
    %6487 = vsyncpa [#allocation3], 1
    %s6488 = scalar_lea.sflag [#allocation3], 1
    %6489 = vsyncpa %s6488, 1
    %6490 = vsyncpa [#allocation5], 1
    %6491 = vsyncpa [#allocation8], 1
    %6492 = vsyncpa [#allocation11], 1

</llo_original>
